<compile_context>
chip_gen: v7x
topology: tpu7x:2x2x1
jax: 0.10.0
libtpu: 0.0.40
codegen_flags: <defaults>
</compile_context>

<pallas_src>
import math

import jax
import jax.numpy as jnp
from jax.experimental import pallas as pl
from jax.experimental.pallas import tpu as pltpu


# --------------------------------------------------------------------------- #
# host-side helpers
# --------------------------------------------------------------------------- #

def positional_encoding_table(seq_len, d_model):
    position = jnp.arange(seq_len, dtype=jnp.float32)[:, None]
    div_term = jnp.exp(jnp.arange(0, d_model, 2, dtype=jnp.float32)
                       * (-math.log(10000.0) / d_model))
    pe = jnp.zeros((seq_len, d_model), jnp.float32)
    pe = pe.at[:, 0::2].set(jnp.sin(position * div_term))
    pe = pe.at[:, 1::2].set(jnp.cos(position * div_term))
    return pe


def init_params(key, *, d_model=64, hidden_dim=128, output_dim=8, seq_length=16):
    """Canonical (PyTorch-like) random parameters for CNN_Attention (eval mode)."""
    chans = [1, 4, 8, 16, d_model]
    keys = iter(jax.random.split(key, 64))
    params = {"convs": []}
    for cin, cout in zip(chans[:-1], chans[1:]):
        params["convs"].append(dict(
            w=jax.random.normal(next(keys), (cout, cin, 3), jnp.float32) / math.sqrt(cin * 3),
            b=0.05 * jax.random.normal(next(keys), (cout,), jnp.float32),
            gamma=1.0 + 0.1 * jax.random.normal(next(keys), (cout,), jnp.float32),
            beta=0.1 * jax.random.normal(next(keys), (cout,), jnp.float32),
            rmean=0.1 * jax.random.normal(next(keys), (cout,), jnp.float32),
            rvar=1.0 + 0.1 * jax.random.uniform(next(keys), (cout,), jnp.float32),
        ))

    def linear(k, din, dout):
        k1, k2 = jax.random.split(k)
        w = jax.random.normal(k1, (din, dout), jnp.float32) / math.sqrt(din)
        b = 0.02 * jax.random.normal(k2, (1, dout), jnp.float32)
        return w, b

    params["wq"], params["bq"] = linear(next(keys), d_model, d_model)
    params["wk"], params["bk"] = linear(next(keys), d_model, d_model)
    params["wv"], params["bv"] = linear(next(keys), d_model, d_model)

    feat = seq_length * d_model
    params["w1"], params["b1"] = linear(next(keys), feat, hidden_dim)
    params["w2"], params["b2"] = linear(next(keys), hidden_dim, hidden_dim)
    params["w3"], params["b3"] = linear(next(keys), hidden_dim, hidden_dim)
    params["w4"], params["b4"] = linear(next(keys), hidden_dim, output_dim)
    params["ln_g"] = (1.0 + 0.05 * jax.random.normal(next(keys), (hidden_dim,),
                                                     jnp.float32)).reshape(1, hidden_dim)
    params["ln_b"] = (0.05 * jax.random.normal(next(keys), (hidden_dim,),
                                               jnp.float32)).reshape(1, hidden_dim)
    return params


def prepare_kernel_params(p, *, d_model=64):
    """Fold eval-mode BN into conv weights, fold 1/sqrt(d) into Wq, cast matmul
    operands to bf16 (f32 accumulation stays inside the kernel)."""
    eps = 1e-5
    kp = {"convs": []}
    for c in p["convs"]:
        cout, cin, _ = c["w"].shape
        scale = c["gamma"] / jnp.sqrt(c["rvar"] + eps)
        # im2col weight layout: row index = tap*Cin + cin, columns = Cout
        w2d = (jnp.transpose(c["w"], (2, 1, 0)).reshape(3 * cin, cout)
               * scale[None, :]).astype(jnp.bfloat16)
        bias = (c["beta"] + scale * (c["b"] - c["rmean"])).reshape(1, cout)
        kp["convs"].append((w2d, bias.astype(jnp.float32)))

    inv = 1.0 / math.sqrt(d_model)                       # attention scale folded into Q
    kp["wq"] = (p["wq"] * inv).astype(jnp.bfloat16)
    kp["bq"] = (p["bq"] * inv).astype(jnp.float32)
    kp["wk"] = p["wk"].astype(jnp.bfloat16)
    kp["bk"] = p["bk"]
    kp["wv"] = p["wv"].astype(jnp.bfloat16)
    kp["bv"] = p["bv"]

    for n in ("w1", "w2", "w3", "w4"):
        kp[n] = p[n].astype(jnp.bfloat16)
    for n in ("b1", "b2", "b3", "b4", "ln_g", "ln_b"):
        kp[n] = p[n]
    return kp


# --------------------------------------------------------------------------- #
# fused Pallas forward
# --------------------------------------------------------------------------- #

def cnn_attention_forward(x, kp, *, seq_length=16, d_model=64):
    B, L = x.shape
    S, D = seq_length, d_model
    assert L % S == 0, "AdaptiveAvgPool1d emulated as an exact mean: need L % seq_length == 0"
    # TODO(synk): general AdaptiveAvgPool1d (uneven bins) not implemented.
    ratio = L // S
    H = kp["w1"].shape[1]
    O = kp["w4"].shape[1]
    BL, BS = B * L, B * S

    # constant operands (traced once under jit)
    pe_t = jnp.tile(positional_encoding_table(S, D), (B, 1))            # (B*S, D)
    # pool @ h  ==  per-batch adaptive-avg-pool, already in (B*S, D) layout
    pool = jnp.kron(jnp.eye(BS, dtype=jnp.float32),
                    jnp.ones((1, ratio), jnp.float32)) / ratio          # (B*S, B*L)

    x2d = x.reshape(BL, 1)               # positions on sublanes, channels on lanes
    (cw1, cb1), (cw2, cb2), (cw3, cb3), (cw4, cb4) = kp["convs"]

    def kernel(x_ref,
               cw1_ref, cb1_ref, cw2_ref, cb2_ref, cw3_ref, cb3_ref, cw4_ref, cb4_ref,
               pool_ref, pe_ref,
               wq_ref, bq_ref, wk_ref, bk_ref, wv_ref, bv_ref,
               w1_hbm, b1_ref, g_ref, beta_ref,
               w2_ref, b2_ref, w3_ref, b3_ref, w4_ref, b4_ref,
               out_ref,
               w1_buf, w1_sem):
        # Prefetch the large fc1 weight (bf16) from HBM into VMEM; the DMA
        # overlaps the conv + attention compute below.
        w1_copy = pltpu.make_async_copy(w1_hbm, w1_buf, w1_sem)
        w1_copy.start()

        # -------- conv path: activations (B*L, C), batch folded into sublanes ----
        def conv_bn_relu(h, w_ref, b_ref):
            cin = h.shape[1]
            pos = jax.lax.broadcasted_iota(jnp.int32, (BL, cin), 0) % L
            zrow = jnp.zeros((1, cin), jnp.float32)
            # in-kernel halo (padding=1), masked at every batch-segment boundary
            up = jnp.where(pos == 0, 0.0,
                           jnp.concatenate([zrow, h[:-1, :]], axis=0))   # x[l-1]
            dn = jnp.where(pos == L - 1, 0.0,
                           jnp.concatenate([h[1:, :], zrow], axis=0))    # x[l+1]
            im2col = jnp.concatenate([up, h, dn], axis=1).astype(jnp.bfloat16)
            y = jnp.dot(im2col, w_ref[...],
                        preferred_element_type=jnp.float32) + b_ref[...]
            return jnp.maximum(y, 0.0)                    # conv + folded BN + ReLU

        h = x_ref[...]                                    # (B*L, 1) float32
        for w_ref, b_ref in ((cw1_ref, cb1_ref), (cw2_ref, cb2_ref),
                             (cw3_ref, cb3_ref), (cw4_ref, cb4_ref)):
            h = conv_bn_relu(h, w_ref, b_ref)             # -> (B*L, d_model)

        # -------- adaptive avg pool + (already transposed) + positional encoding --
        a = jnp.dot(pool_ref[...], h, preferred_element_type=jnp.float32)  # (B*S, D)
        a = (a + pe_ref[...]).astype(jnp.bfloat16)

        # -------- self-attention (QKV batched over all B*S rows) ------------------
        q = jnp.dot(a, wq_ref[...], preferred_element_type=jnp.float32) + bq_ref[...]
        k = jnp.dot(a, wk_ref[...], preferred_element_type=jnp.float32) + bk_ref[...]
        v = jnp.dot(a, wv_ref[...], preferred_element_type=jnp.float32) + bv_ref[...]

        rows = []
        for b in range(B):                                # static unroll, B is tiny
            qb = q[b * S:(b + 1) * S].astype(jnp.bfloat16)
            kb = k[b * S:(b + 1) * S].astype(jnp.bfloat16)
            vb = v[b * S:(b + 1) * S].astype(jnp.bfloat16)
            s_bb = jnp.dot(qb, kb.T, preferred_element_type=jnp.float32)  # 1/sqrt(D) folded
            m = jnp.max(s_bb, axis=-1, keepdims=True)
            e = jnp.exp(s_bb - m)
            attn = e * pl.reciprocal(jnp.sum(e, axis=-1, keepdims=True), approx=True)
            ob = jnp.dot(attn.astype(jnp.bfloat16), vb,
                         preferred_element_type=jnp.float32)              # (S, D)
            # flatten (S, D) -> (1, S*D), lane-major, matches torch .view(B, -1)
            rows.append(jnp.concatenate([ob[s:s + 1, :] for s in range(S)], axis=1))
        feat = jnp.concatenate(rows, axis=0).astype(jnp.bfloat16)         # (B, S*D)

        # -------- MLP: fc1 -> LayerNorm -> ReLU -> fc2 -> ReLU -> fc3 -> ReLU -> fc4
        # TODO(synk): Dropout(p=0.1) is identity (eval mode); BN uses running stats.
        w1_copy.wait()
        h1 = jnp.dot(feat, w1_buf[...], preferred_element_type=jnp.float32) + b1_ref[...]
        mu = jnp.mean(h1, axis=-1, keepdims=True)
        var = jnp.mean((h1 - mu) ** 2, axis=-1, keepdims=True)
        h1 = (h1 - mu) * jax.lax.rsqrt(var + 1e-5) * g_ref[...] + beta_ref[...]
        h1 = jnp.maximum(h1, 0.0)
        h2 = jnp.maximum(jnp.dot(h1.astype(jnp.bfloat16), w2_ref[...],
                                 preferred_element_type=jnp.float32) + b2_ref[...], 0.0)
        h3 = jnp.maximum(jnp.dot(h2.astype(jnp.bfloat16), w3_ref[...],
                                 preferred_element_type=jnp.float32) + b3_ref[...], 0.0)
        out_ref[...] = jnp.dot(h3.astype(jnp.bfloat16), w4_ref[...],
                               preferred_element_type=jnp.float32) + b4_ref[...]

    args = [x2d,
            cw1, cb1, cw2, cb2, cw3, cb3, cw4, cb4,
            pool, pe_t,
            kp["wq"], kp["bq"], kp["wk"], kp["bk"], kp["wv"], kp["bv"],
            kp["w1"], kp["b1"], kp["ln_g"], kp["ln_b"],
            kp["w2"], kp["b2"], kp["w3"], kp["b3"], kp["w4"], kp["b4"]]

    vmem_spec = pl.BlockSpec(memory_space=pltpu.MemorySpace.VMEM)
    in_specs = [vmem_spec] * len(args)
    in_specs[17] = pl.BlockSpec(memory_space=pl.ANY)   # w1 stays in HBM, DMA'd manually

    return pl.pallas_call(
        kernel,
        out_shape=jax.ShapeDtypeStruct((B, O), jnp.float32),
        in_specs=in_specs,
        out_specs=pl.BlockSpec(memory_space=pltpu.MemorySpace.VMEM),
        scratch_shapes=[pltpu.VMEM(kp["w1"].shape, kp["w1"].dtype),
                        pltpu.SemaphoreType.DMA],
    )(*args)


# --------------------------------------------------------------------------- #
# pure-JAX reference (same prepared params, same dtype policy) for a smoke check
# --------------------------------------------------------------------------- #

def reference_forward(x, kp, *, seq_length=16, d_model=64):
    B, L = x.shape
    S, D = seq_length, d_model
    h = x[:, None, :]                                               # (B, 1, L)
    for w2d, bias in kp["convs"]:
        hp = jnp.pad(h, ((0, 0), (0, 0), (1, 1)))
        cols = jnp.concatenate([hp[:, :, t:t + L] for t in range(3)], axis=1)
        y = jnp.einsum("co,bcl->bol", w2d, cols.astype(jnp.bfloat16),
                       preferred_element_type=jnp.float32) + bias[:, :, None]
        h = jnp.maximum(y, 0.0)
    p = h.reshape(B, D, S, L // S).mean(axis=-1)                    # adaptive avg pool
    a = jnp.transpose(p, (0, 2, 1)) + positional_encoding_table(S, D)[None]
    a16 = a.astype(jnp.bfloat16)
    q = jnp.einsum("bsd,de->bse", a16, kp["wq"], preferred_element_type=jnp.float32) + kp["bq"]
    k = jnp.einsum("bsd,de->bse", a16, kp["wk"], preferred_element_type=jnp.float32) + kp["bk"]
    v = jnp.einsum("bsd,de->bse", a16, kp["wv"], preferred_element_type=jnp.float32) + kp["bv"]
    s = jnp.einsum("bqd,bkd->bqk", q.astype(jnp.bfloat16), k.astype(jnp.bfloat16),
                   preferred_element_type=jnp.float32)
    attn = jax.nn.softmax(s, axis=-1)
    o = jnp.einsum("bqk,bkd->bqd", attn.astype(jnp.bfloat16), v.astype(jnp.bfloat16),
                   preferred_element_type=jnp.float32)
    f = o.reshape(B, S * D)
    h1 = jnp.dot(f.astype(jnp.bfloat16), kp["w1"], preferred_element_type=jnp.float32) + kp["b1"]
    mu = h1.mean(-1, keepdims=True)
    var = ((h1 - mu) ** 2).mean(-1, keepdims=True)
    h1 = jnp.maximum((h1 - mu) / jnp.sqrt(var + 1e-5) * kp["ln_g"] + kp["ln_b"], 0.0)
    h2 = jnp.maximum(jnp.dot(h1.astype(jnp.bfloat16), kp["w2"],
                             preferred_element_type=jnp.float32) + kp["b2"], 0.0)
    h3 = jnp.maximum(jnp.dot(h2.astype(jnp.bfloat16), kp["w3"],
                             preferred_element_type=jnp.float32) + kp["b3"], 0.0)
    return jnp.dot(h3.astype(jnp.bfloat16), kp["w4"],
                   preferred_element_type=jnp.float32) + kp["b4"]


# --------------------------------------------------------------------------- #

if __name__ == "__main__":
    B, L_IN = 2, 32
    SEQ, D_MODEL, HIDDEN, OUT_DIM = 16, 64, 128, 8

    root = jax.random.PRNGKey(0)
    k_params, k_x = jax.random.split(root)
    params = init_params(k_params, d_model=D_MODEL, hidden_dim=HIDDEN,
                         output_dim=OUT_DIM, seq_length=SEQ)
    kp = prepare_kernel_params(params, d_model=D_MODEL)
    x = jax.random.normal(k_x, (B, L_IN), jnp.float32)

    fwd = jax.jit(lambda xx, pp: cnn_attention_forward(xx, pp, seq_length=SEQ,
                                                       d_model=D_MODEL))
    out = jax.block_until_ready(fwd(x, kp))
    assert out.shape == (B, OUT_DIM)

    ref = jax.block_until_ready(reference_forward(x, kp, seq_length=SEQ, d_model=D_MODEL))
    rel_err = float(jnp.max(jnp.abs(out - ref)) / (jnp.max(jnp.abs(ref)) + 1e-6))
    assert rel_err < 2e-2, f"kernel/reference mismatch: rel_err={rel_err:.4g}"

    print("KERNEL_OK")
</pallas_src>

<mosaic_0001>
module attributes {stable_mosaic.version = 11 : i64} {
  func.func @kernel(%arg0: memref<64x1xf32, #tpu.memory_space<vmem>>, %arg1: memref<3x4xbf16, #tpu.memory_space<vmem>>, %arg2: memref<1x4xf32, #tpu.memory_space<vmem>>, %arg3: memref<12x8xbf16, #tpu.memory_space<vmem>>, %arg4: memref<1x8xf32, #tpu.memory_space<vmem>>, %arg5: memref<24x16xbf16, #tpu.memory_space<vmem>>, %arg6: memref<1x16xf32, #tpu.memory_space<vmem>>, %arg7: memref<48x64xbf16, #tpu.memory_space<vmem>>, %arg8: memref<1x64xf32, #tpu.memory_space<vmem>>, %arg9: memref<32x64xf32, #tpu.memory_space<vmem>>, %arg10: memref<32x64xf32, #tpu.memory_space<vmem>>, %arg11: memref<64x64xbf16, #tpu.memory_space<vmem>>, %arg12: memref<1x64xf32, #tpu.memory_space<vmem>>, %arg13: memref<64x64xbf16, #tpu.memory_space<vmem>>, %arg14: memref<1x64xf32, #tpu.memory_space<vmem>>, %arg15: memref<64x64xbf16, #tpu.memory_space<vmem>>, %arg16: memref<1x64xf32, #tpu.memory_space<vmem>>, %arg17: memref<1024x128xbf16, #tpu.memory_space<any>>, %arg18: memref<1x128xf32, #tpu.memory_space<vmem>>, %arg19: memref<1x128xf32, #tpu.memory_space<vmem>>, %arg20: memref<1x128xf32, #tpu.memory_space<vmem>>, %arg21: memref<128x128xbf16, #tpu.memory_space<vmem>>, %arg22: memref<1x128xf32, #tpu.memory_space<vmem>>, %arg23: memref<128x128xbf16, #tpu.memory_space<vmem>>, %arg24: memref<1x128xf32, #tpu.memory_space<vmem>>, %arg25: memref<128x8xbf16, #tpu.memory_space<vmem>>, %arg26: memref<1x8xf32, #tpu.memory_space<vmem>>, %arg27: memref<2x8xf32, #tpu.memory_space<vmem>>, %arg28: memref<1024x128xbf16, #tpu.memory_space<vmem>>, %arg29: memref<!tpu.dma_semaphore, #tpu.memory_space<semaphore_mem>>) attributes {dimension_semantics = [], scalar_prefetch = 0 : i64, scratch_operands = 2 : i64, tpu.core_type = #tpu.core_type<tc>} {
    tpu.enqueue_dma source(%arg17 : memref<1024x128xbf16, #tpu.memory_space<any>>) target(%arg28 : memref<1024x128xbf16, #tpu.memory_space<vmem>>) target_semaphore(%arg29 : memref<!tpu.dma_semaphore, #tpu.memory_space<semaphore_mem>>)
    %c0 = arith.constant 0 : index
    %c0_0 = arith.constant 0 : index
    %0 = vector.load %arg0[%c0, %c0_0] : memref<64x1xf32, #tpu.memory_space<vmem>>, vector<64x1xf32>
    %1 = tpu.iota {dimensions = array<i32: 0>} : vector<64x1xi32>
    %c32_i32 = arith.constant 32 : i32
    %c0_i32 = arith.constant 0 : i32
    %2 = arith.cmpi eq, %c32_i32, %c0_i32 : i32
    %c1_i32 = arith.constant 1 : i32
    %3 = arith.select %2, %c1_i32, %c32_i32 : i32
    %4 = vector.broadcast %3 : i32 to vector<64x1xi32>
    %5 = arith.remsi %1, %4 : vector<64x1xi32>
    %c0_i32_1 = arith.constant 0 : i32
    %6 = vector.broadcast %c0_i32_1 : i32 to vector<64x1xi32>
    %7 = arith.cmpi ne, %5, %6 : vector<64x1xi32>
    %c0_i32_2 = arith.constant 0 : i32
    %8 = vector.broadcast %c0_i32_2 : i32 to vector<64x1xi32>
    %9 = arith.cmpi slt, %5, %8 : vector<64x1xi32>
    %c0_i32_3 = arith.constant 0 : i32
    %10 = arith.cmpi slt, %3, %c0_i32_3 : i32
    %11 = vector.broadcast %10 : i1 to vector<64x1xi1>
    %12 = vector.broadcast %11 : vector<64x1xi1> to vector<64x1xi1>
    %13 = arith.xori %9, %12 : vector<64x1xi1>
    %14 = arith.andi %13, %7 : vector<64x1xi1>
    %15 = vector.broadcast %3 : i32 to vector<64x1xi32>
    %16 = arith.addi %5, %15 : vector<64x1xi32>
    %17 = arith.select %14, %16, %5 : vector<64x1xi1>, vector<64x1xi32>
    %cst = arith.constant 0.000000e+00 : f32
    %18 = vector.broadcast %cst : f32 to vector<1x1xf32>
    %c0_i32_4 = arith.constant 0 : i32
    %19 = vector.broadcast %c0_i32_4 : i32 to vector<64x1xi32>
    %20 = arith.cmpi eq, %17, %19 : vector<64x1xi32>
    %21 = vector.extract_strided_slice %0 {offsets = [0, 0], sizes = [63, 1], strides = [1, 1]} : vector<64x1xf32> to vector<63x1xf32>
    %22 = tpu.concatenate %18, %21 in 0 : vector<1x1xf32>, vector<63x1xf32> -> vector<64x1xf32>
    %cst_5 = arith.constant 0.000000e+00 : f32
    %23 = vector.broadcast %cst_5 : f32 to vector<64x1xf32>
    %24 = arith.select %20, %23, %22 : vector<64x1xi1>, vector<64x1xf32>
    %c31_i32 = arith.constant 31 : i32
    %25 = vector.broadcast %c31_i32 : i32 to vector<64x1xi32>
    %26 = arith.cmpi eq, %17, %25 : vector<64x1xi32>
    %27 = vector.extract_strided_slice %0 {offsets = [1, 0], sizes = [63, 1], strides = [1, 1]} : vector<64x1xf32> to vector<63x1xf32>
    %28 = tpu.concatenate %27, %18 in 0 : vector<63x1xf32>, vector<1x1xf32> -> vector<64x1xf32>
    %cst_6 = arith.constant 0.000000e+00 : f32
    %29 = vector.broadcast %cst_6 : f32 to vector<64x1xf32>
    %30 = arith.select %26, %29, %28 : vector<64x1xi1>, vector<64x1xf32>
    %31 = tpu.concatenate %24, %0, %30 in 1 : vector<64x1xf32>, vector<64x1xf32>, vector<64x1xf32> -> vector<64x3xf32>
    %32 = arith.truncf %31 : vector<64x3xf32> to vector<64x3xbf16>
    %c0_7 = arith.constant 0 : index
    %c0_8 = arith.constant 0 : index
    %33 = vector.load %arg1[%c0_7, %c0_8] : memref<3x4xbf16, #tpu.memory_space<vmem>>, vector<3x4xbf16>
    %cst_9 = arith.constant dense<0.000000e+00> : vector<64x4xf32>
    %34 = tpu.matmul %32, %33, %cst_9 {dimension_numbers = #tpu.dot_dimension_numbers<[1], [0], [0], [1], [0, 0, 1, 1], [], []>} : vector<64x3xbf16>, vector<3x4xbf16>, vector<64x4xf32> -> vector<64x4xf32>
    %c0_10 = arith.constant 0 : index
    %c0_11 = arith.constant 0 : index
    %35 = vector.load %arg2[%c0_10, %c0_11] : memref<1x4xf32, #tpu.memory_space<vmem>>, vector<1x4xf32>
    %36 = vector.broadcast %35 : vector<1x4xf32> to vector<64x4xf32>
    %37 = arith.addf %34, %36 : vector<64x4xf32>
    %cst_12 = arith.constant 0.000000e+00 : f32
    %38 = vector.broadcast %cst_12 : f32 to vector<64x4xf32>
    %39 = arith.maximumf %37, %38 : vector<64x4xf32>
    %40 = tpu.iota {dimensions = array<i32: 0>} : vector<64x4xi32>
    %c32_i32_13 = arith.constant 32 : i32
    %c0_i32_14 = arith.constant 0 : i32
    %41 = arith.cmpi eq, %c32_i32_13, %c0_i32_14 : i32
    %c1_i32_15 = arith.constant 1 : i32
    %42 = arith.select %41, %c1_i32_15, %c32_i32_13 : i32
    %43 = vector.broadcast %42 : i32 to vector<64x4xi32>
    %44 = arith.remsi %40, %43 : vector<64x4xi32>
    %c0_i32_16 = arith.constant 0 : i32
    %45 = vector.broadcast %c0_i32_16 : i32 to vector<64x4xi32>
    %46 = arith.cmpi ne, %44, %45 : vector<64x4xi32>
    %c0_i32_17 = arith.constant 0 : i32
    %47 = vector.broadcast %c0_i32_17 : i32 to vector<64x4xi32>
    %48 = arith.cmpi slt, %44, %47 : vector<64x4xi32>
    %c0_i32_18 = arith.constant 0 : i32
    %49 = arith.cmpi slt, %42, %c0_i32_18 : i32
    %50 = vector.broadcast %49 : i1 to vector<64x4xi1>
    %51 = vector.broadcast %50 : vector<64x4xi1> to vector<64x4xi1>
    %52 = arith.xori %48, %51 : vector<64x4xi1>
    %53 = arith.andi %52, %46 : vector<64x4xi1>
    %54 = vector.broadcast %42 : i32 to vector<64x4xi32>
    %55 = arith.addi %44, %54 : vector<64x4xi32>
    %56 = arith.select %53, %55, %44 : vector<64x4xi1>, vector<64x4xi32>
    %cst_19 = arith.constant 0.000000e+00 : f32
    %57 = vector.broadcast %cst_19 : f32 to vector<1x4xf32>
    %c0_i32_20 = arith.constant 0 : i32
    %58 = vector.broadcast %c0_i32_20 : i32 to vector<64x4xi32>
    %59 = arith.cmpi eq, %56, %58 : vector<64x4xi32>
    %60 = vector.extract_strided_slice %39 {offsets = [0, 0], sizes = [63, 4], strides = [1, 1]} : vector<64x4xf32> to vector<63x4xf32>
    %61 = tpu.concatenate %57, %60 in 0 : vector<1x4xf32>, vector<63x4xf32> -> vector<64x4xf32>
    %cst_21 = arith.constant 0.000000e+00 : f32
    %62 = vector.broadcast %cst_21 : f32 to vector<64x4xf32>
    %63 = arith.select %59, %62, %61 : vector<64x4xi1>, vector<64x4xf32>
    %c31_i32_22 = arith.constant 31 : i32
    %64 = vector.broadcast %c31_i32_22 : i32 to vector<64x4xi32>
    %65 = arith.cmpi eq, %56, %64 : vector<64x4xi32>
    %66 = vector.extract_strided_slice %39 {offsets = [1, 0], sizes = [63, 4], strides = [1, 1]} : vector<64x4xf32> to vector<63x4xf32>
    %67 = tpu.concatenate %66, %57 in 0 : vector<63x4xf32>, vector<1x4xf32> -> vector<64x4xf32>
    %cst_23 = arith.constant 0.000000e+00 : f32
    %68 = vector.broadcast %cst_23 : f32 to vector<64x4xf32>
    %69 = arith.select %65, %68, %67 : vector<64x4xi1>, vector<64x4xf32>
    %70 = tpu.concatenate %63, %39, %69 in 1 : vector<64x4xf32>, vector<64x4xf32>, vector<64x4xf32> -> vector<64x12xf32>
    %71 = arith.truncf %70 : vector<64x12xf32> to vector<64x12xbf16>
    %c0_24 = arith.constant 0 : index
    %c0_25 = arith.constant 0 : index
    %72 = vector.load %arg3[%c0_24, %c0_25] : memref<12x8xbf16, #tpu.memory_space<vmem>>, vector<12x8xbf16>
    %cst_26 = arith.constant dense<0.000000e+00> : vector<64x8xf32>
    %73 = tpu.matmul %71, %72, %cst_26 {dimension_numbers = #tpu.dot_dimension_numbers<[1], [0], [0], [1], [0, 0, 1, 1], [], []>} : vector<64x12xbf16>, vector<12x8xbf16>, vector<64x8xf32> -> vector<64x8xf32>
    %c0_27 = arith.constant 0 : index
    %c0_28 = arith.constant 0 : index
    %74 = vector.load %arg4[%c0_27, %c0_28] : memref<1x8xf32, #tpu.memory_space<vmem>>, vector<1x8xf32>
    %75 = vector.broadcast %74 : vector<1x8xf32> to vector<64x8xf32>
    %76 = arith.addf %73, %75 : vector<64x8xf32>
    %cst_29 = arith.constant 0.000000e+00 : f32
    %77 = vector.broadcast %cst_29 : f32 to vector<64x8xf32>
    %78 = arith.maximumf %76, %77 : vector<64x8xf32>
    %79 = tpu.iota {dimensions = array<i32: 0>} : vector<64x8xi32>
    %c32_i32_30 = arith.constant 32 : i32
    %c0_i32_31 = arith.constant 0 : i32
    %80 = arith.cmpi eq, %c32_i32_30, %c0_i32_31 : i32
    %c1_i32_32 = arith.constant 1 : i32
    %81 = arith.select %80, %c1_i32_32, %c32_i32_30 : i32
    %82 = vector.broadcast %81 : i32 to vector<64x8xi32>
    %83 = arith.remsi %79, %82 : vector<64x8xi32>
    %c0_i32_33 = arith.constant 0 : i32
    %84 = vector.broadcast %c0_i32_33 : i32 to vector<64x8xi32>
    %85 = arith.cmpi ne, %83, %84 : vector<64x8xi32>
    %c0_i32_34 = arith.constant 0 : i32
    %86 = vector.broadcast %c0_i32_34 : i32 to vector<64x8xi32>
    %87 = arith.cmpi slt, %83, %86 : vector<64x8xi32>
    %c0_i32_35 = arith.constant 0 : i32
    %88 = arith.cmpi slt, %81, %c0_i32_35 : i32
    %89 = vector.broadcast %88 : i1 to vector<64x8xi1>
    %90 = vector.broadcast %89 : vector<64x8xi1> to vector<64x8xi1>
    %91 = arith.xori %87, %90 : vector<64x8xi1>
    %92 = arith.andi %91, %85 : vector<64x8xi1>
    %93 = vector.broadcast %81 : i32 to vector<64x8xi32>
    %94 = arith.addi %83, %93 : vector<64x8xi32>
    %95 = arith.select %92, %94, %83 : vector<64x8xi1>, vector<64x8xi32>
    %cst_36 = arith.constant 0.000000e+00 : f32
    %96 = vector.broadcast %cst_36 : f32 to vector<1x8xf32>
    %c0_i32_37 = arith.constant 0 : i32
    %97 = vector.broadcast %c0_i32_37 : i32 to vector<64x8xi32>
    %98 = arith.cmpi eq, %95, %97 : vector<64x8xi32>
    %99 = vector.extract_strided_slice %78 {offsets = [0, 0], sizes = [63, 8], strides = [1, 1]} : vector<64x8xf32> to vector<63x8xf32>
    %100 = tpu.concatenate %96, %99 in 0 : vector<1x8xf32>, vector<63x8xf32> -> vector<64x8xf32>
    %cst_38 = arith.constant 0.000000e+00 : f32
    %101 = vector.broadcast %cst_38 : f32 to vector<64x8xf32>
    %102 = arith.select %98, %101, %100 : vector<64x8xi1>, vector<64x8xf32>
    %c31_i32_39 = arith.constant 31 : i32
    %103 = vector.broadcast %c31_i32_39 : i32 to vector<64x8xi32>
    %104 = arith.cmpi eq, %95, %103 : vector<64x8xi32>
    %105 = vector.extract_strided_slice %78 {offsets = [1, 0], sizes = [63, 8], strides = [1, 1]} : vector<64x8xf32> to vector<63x8xf32>
    %106 = tpu.concatenate %105, %96 in 0 : vector<63x8xf32>, vector<1x8xf32> -> vector<64x8xf32>
    %cst_40 = arith.constant 0.000000e+00 : f32
    %107 = vector.broadcast %cst_40 : f32 to vector<64x8xf32>
    %108 = arith.select %104, %107, %106 : vector<64x8xi1>, vector<64x8xf32>
    %109 = tpu.concatenate %102, %78, %108 in 1 : vector<64x8xf32>, vector<64x8xf32>, vector<64x8xf32> -> vector<64x24xf32>
    %110 = arith.truncf %109 : vector<64x24xf32> to vector<64x24xbf16>
    %c0_41 = arith.constant 0 : index
    %c0_42 = arith.constant 0 : index
    %111 = vector.load %arg5[%c0_41, %c0_42] : memref<24x16xbf16, #tpu.memory_space<vmem>>, vector<24x16xbf16>
    %cst_43 = arith.constant dense<0.000000e+00> : vector<64x16xf32>
    %112 = tpu.matmul %110, %111, %cst_43 {dimension_numbers = #tpu.dot_dimension_numbers<[1], [0], [0], [1], [0, 0, 1, 1], [], []>} : vector<64x24xbf16>, vector<24x16xbf16>, vector<64x16xf32> -> vector<64x16xf32>
    %c0_44 = arith.constant 0 : index
    %c0_45 = arith.constant 0 : index
    %113 = vector.load %arg6[%c0_44, %c0_45] : memref<1x16xf32, #tpu.memory_space<vmem>>, vector<1x16xf32>
    %114 = vector.broadcast %113 : vector<1x16xf32> to vector<64x16xf32>
    %115 = arith.addf %112, %114 : vector<64x16xf32>
    %cst_46 = arith.constant 0.000000e+00 : f32
    %116 = vector.broadcast %cst_46 : f32 to vector<64x16xf32>
    %117 = arith.maximumf %115, %116 : vector<64x16xf32>
    %118 = tpu.iota {dimensions = array<i32: 0>} : vector<64x16xi32>
    %c32_i32_47 = arith.constant 32 : i32
    %c0_i32_48 = arith.constant 0 : i32
    %119 = arith.cmpi eq, %c32_i32_47, %c0_i32_48 : i32
    %c1_i32_49 = arith.constant 1 : i32
    %120 = arith.select %119, %c1_i32_49, %c32_i32_47 : i32
    %121 = vector.broadcast %120 : i32 to vector<64x16xi32>
    %122 = arith.remsi %118, %121 : vector<64x16xi32>
    %c0_i32_50 = arith.constant 0 : i32
    %123 = vector.broadcast %c0_i32_50 : i32 to vector<64x16xi32>
    %124 = arith.cmpi ne, %122, %123 : vector<64x16xi32>
    %c0_i32_51 = arith.constant 0 : i32
    %125 = vector.broadcast %c0_i32_51 : i32 to vector<64x16xi32>
    %126 = arith.cmpi slt, %122, %125 : vector<64x16xi32>
    %c0_i32_52 = arith.constant 0 : i32
    %127 = arith.cmpi slt, %120, %c0_i32_52 : i32
    %128 = vector.broadcast %127 : i1 to vector<64x16xi1>
    %129 = vector.broadcast %128 : vector<64x16xi1> to vector<64x16xi1>
    %130 = arith.xori %126, %129 : vector<64x16xi1>
    %131 = arith.andi %130, %124 : vector<64x16xi1>
    %132 = vector.broadcast %120 : i32 to vector<64x16xi32>
    %133 = arith.addi %122, %132 : vector<64x16xi32>
    %134 = arith.select %131, %133, %122 : vector<64x16xi1>, vector<64x16xi32>
    %cst_53 = arith.constant 0.000000e+00 : f32
    %135 = vector.broadcast %cst_53 : f32 to vector<1x16xf32>
    %c0_i32_54 = arith.constant 0 : i32
    %136 = vector.broadcast %c0_i32_54 : i32 to vector<64x16xi32>
    %137 = arith.cmpi eq, %134, %136 : vector<64x16xi32>
    %138 = vector.extract_strided_slice %117 {offsets = [0, 0], sizes = [63, 16], strides = [1, 1]} : vector<64x16xf32> to vector<63x16xf32>
    %139 = tpu.concatenate %135, %138 in 0 : vector<1x16xf32>, vector<63x16xf32> -> vector<64x16xf32>
    %cst_55 = arith.constant 0.000000e+00 : f32
    %140 = vector.broadcast %cst_55 : f32 to vector<64x16xf32>
    %141 = arith.select %137, %140, %139 : vector<64x16xi1>, vector<64x16xf32>
    %c31_i32_56 = arith.constant 31 : i32
    %142 = vector.broadcast %c31_i32_56 : i32 to vector<64x16xi32>
    %143 = arith.cmpi eq, %134, %142 : vector<64x16xi32>
    %144 = vector.extract_strided_slice %117 {offsets = [1, 0], sizes = [63, 16], strides = [1, 1]} : vector<64x16xf32> to vector<63x16xf32>
    %145 = tpu.concatenate %144, %135 in 0 : vector<63x16xf32>, vector<1x16xf32> -> vector<64x16xf32>
    %cst_57 = arith.constant 0.000000e+00 : f32
    %146 = vector.broadcast %cst_57 : f32 to vector<64x16xf32>
    %147 = arith.select %143, %146, %145 : vector<64x16xi1>, vector<64x16xf32>
    %148 = tpu.concatenate %141, %117, %147 in 1 : vector<64x16xf32>, vector<64x16xf32>, vector<64x16xf32> -> vector<64x48xf32>
    %149 = arith.truncf %148 : vector<64x48xf32> to vector<64x48xbf16>
    %c0_58 = arith.constant 0 : index
    %c0_59 = arith.constant 0 : index
    %150 = vector.load %arg7[%c0_58, %c0_59] : memref<48x64xbf16, #tpu.memory_space<vmem>>, vector<48x64xbf16>
    %cst_60 = arith.constant dense<0.000000e+00> : vector<64x64xf32>
    %151 = tpu.matmul %149, %150, %cst_60 {dimension_numbers = #tpu.dot_dimension_numbers<[1], [0], [0], [1], [0, 0, 1, 1], [], []>} : vector<64x48xbf16>, vector<48x64xbf16>, vector<64x64xf32> -> vector<64x64xf32>
    %c0_61 = arith.constant 0 : index
    %c0_62 = arith.constant 0 : index
    %152 = vector.load %arg8[%c0_61, %c0_62] : memref<1x64xf32, #tpu.memory_space<vmem>>, vector<1x64xf32>
    %153 = vector.broadcast %152 : vector<1x64xf32> to vector<64x64xf32>
    %154 = arith.addf %151, %153 : vector<64x64xf32>
    %cst_63 = arith.constant 0.000000e+00 : f32
    %155 = vector.broadcast %cst_63 : f32 to vector<64x64xf32>
    %156 = arith.maximumf %154, %155 : vector<64x64xf32>
    %c0_64 = arith.constant 0 : index
    %c0_65 = arith.constant 0 : index
    %157 = vector.load %arg9[%c0_64, %c0_65] : memref<32x64xf32, #tpu.memory_space<vmem>>, vector<32x64xf32>
    %cst_66 = arith.constant dense<0.000000e+00> : vector<32x64xf32>
    %158 = tpu.matmul %157, %156, %cst_66 {dimension_numbers = #tpu.dot_dimension_numbers<[1], [0], [0], [1], [0, 0, 1, 1], [], []>} : vector<32x64xf32>, vector<64x64xf32>, vector<32x64xf32> -> vector<32x64xf32>
    %c0_67 = arith.constant 0 : index
    %c0_68 = arith.constant 0 : index
    %159 = vector.load %arg10[%c0_67, %c0_68] : memref<32x64xf32, #tpu.memory_space<vmem>>, vector<32x64xf32>
    %160 = arith.addf %158, %159 : vector<32x64xf32>
    %161 = arith.truncf %160 : vector<32x64xf32> to vector<32x64xbf16>
    %c0_69 = arith.constant 0 : index
    %c0_70 = arith.constant 0 : index
    %162 = vector.load %arg11[%c0_69, %c0_70] : memref<64x64xbf16, #tpu.memory_space<vmem>>, vector<64x64xbf16>
    %cst_71 = arith.constant dense<0.000000e+00> : vector<32x64xf32>
    %163 = tpu.matmul %161, %162, %cst_71 {dimension_numbers = #tpu.dot_dimension_numbers<[1], [0], [0], [1], [0, 0, 1, 1], [], []>} : vector<32x64xbf16>, vector<64x64xbf16>, vector<32x64xf32> -> vector<32x64xf32>
    %c0_72 = arith.constant 0 : index
    %c0_73 = arith.constant 0 : index
    %164 = vector.load %arg12[%c0_72, %c0_73] : memref<1x64xf32, #tpu.memory_space<vmem>>, vector<1x64xf32>
    %165 = vector.broadcast %164 : vector<1x64xf32> to vector<32x64xf32>
    %166 = arith.addf %163, %165 : vector<32x64xf32>
    %c0_74 = arith.constant 0 : index
    %c0_75 = arith.constant 0 : index
    %167 = vector.load %arg13[%c0_74, %c0_75] : memref<64x64xbf16, #tpu.memory_space<vmem>>, vector<64x64xbf16>
    %cst_76 = arith.constant dense<0.000000e+00> : vector<32x64xf32>
    %168 = tpu.matmul %161, %167, %cst_76 {dimension_numbers = #tpu.dot_dimension_numbers<[1], [0], [0], [1], [0, 0, 1, 1], [], []>} : vector<32x64xbf16>, vector<64x64xbf16>, vector<32x64xf32> -> vector<32x64xf32>
    %c0_77 = arith.constant 0 : index
    %c0_78 = arith.constant 0 : index
    %169 = vector.load %arg14[%c0_77, %c0_78] : memref<1x64xf32, #tpu.memory_space<vmem>>, vector<1x64xf32>
    %170 = vector.broadcast %169 : vector<1x64xf32> to vector<32x64xf32>
    %171 = arith.addf %168, %170 : vector<32x64xf32>
    %c0_79 = arith.constant 0 : index
    %c0_80 = arith.constant 0 : index
    %172 = vector.load %arg15[%c0_79, %c0_80] : memref<64x64xbf16, #tpu.memory_space<vmem>>, vector<64x64xbf16>
    %cst_81 = arith.constant dense<0.000000e+00> : vector<32x64xf32>
    %173 = tpu.matmul %161, %172, %cst_81 {dimension_numbers = #tpu.dot_dimension_numbers<[1], [0], [0], [1], [0, 0, 1, 1], [], []>} : vector<32x64xbf16>, vector<64x64xbf16>, vector<32x64xf32> -> vector<32x64xf32>
    %c0_82 = arith.constant 0 : index
    %c0_83 = arith.constant 0 : index
    %174 = vector.load %arg16[%c0_82, %c0_83] : memref<1x64xf32, #tpu.memory_space<vmem>>, vector<1x64xf32>
    %175 = vector.broadcast %174 : vector<1x64xf32> to vector<32x64xf32>
    %176 = arith.addf %173, %175 : vector<32x64xf32>
    %177 = vector.extract_strided_slice %166 {offsets = [0, 0], sizes = [16, 64], strides = [1, 1]} : vector<32x64xf32> to vector<16x64xf32>
    %178 = arith.truncf %177 : vector<16x64xf32> to vector<16x64xbf16>
    %179 = vector.extract_strided_slice %171 {offsets = [0, 0], sizes = [16, 64], strides = [1, 1]} : vector<32x64xf32> to vector<16x64xf32>
    %180 = arith.truncf %179 : vector<16x64xf32> to vector<16x64xbf16>
    %181 = vector.extract_strided_slice %176 {offsets = [0, 0], sizes = [16, 64], strides = [1, 1]} : vector<32x64xf32> to vector<16x64xf32>
    %182 = arith.truncf %181 : vector<16x64xf32> to vector<16x64xbf16>
    %183 = tpu.transpose %180, [1, 0] : vector<16x64xbf16> -> vector<64x16xbf16>
    %cst_84 = arith.constant dense<0.000000e+00> : vector<16x16xf32>
    %184 = tpu.matmul %178, %183, %cst_84 {dimension_numbers = #tpu.dot_dimension_numbers<[1], [0], [0], [1], [0, 0, 1, 1], [], []>} : vector<16x64xbf16>, vector<64x16xbf16>, vector<16x16xf32> -> vector<16x16xf32>
    %cst_85 = arith.constant dense<0xFF800000> : vector<16xf32>
    %185 = vector.multi_reduction <maximumf>, %184, %cst_85 [1] : vector<16x16xf32> to vector<16xf32>
    %186 = vector.shape_cast %185 : vector<16xf32> to vector<16x1xf32>
    %187 = vector.broadcast %186 : vector<16x1xf32> to vector<16x16xf32>
    %188 = arith.subf %184, %187 : vector<16x16xf32>
    %189 = math.exp %188 : vector<16x16xf32>
    %cst_86 = arith.constant dense<0.000000e+00> : vector<16xf32>
    %190 = vector.multi_reduction <add>, %189, %cst_86 [1] : vector<16x16xf32> to vector<16xf32>
    %191 = vector.shape_cast %190 : vector<16xf32> to vector<16x1xf32>
    %192 = tpu.reciprocal %191 {approx = true} : vector<16x1xf32> -> vector<16x1xf32>
    %193 = vector.broadcast %192 : vector<16x1xf32> to vector<16x16xf32>
    %194 = arith.mulf %189, %193 : vector<16x16xf32>
    %195 = arith.truncf %194 : vector<16x16xf32> to vector<16x16xbf16>
    %cst_87 = arith.constant dense<0.000000e+00> : vector<16x64xf32>
    %196 = tpu.matmul %195, %182, %cst_87 {dimension_numbers = #tpu.dot_dimension_numbers<[1], [0], [0], [1], [0, 0, 1, 1], [], []>} : vector<16x16xbf16>, vector<16x64xbf16>, vector<16x64xf32> -> vector<16x64xf32>
    %197 = vector.extract_strided_slice %196 {offsets = [0, 0], sizes = [1, 64], strides = [1, 1]} : vector<16x64xf32> to vector<1x64xf32>
    %198 = vector.extract_strided_slice %196 {offsets = [1, 0], sizes = [1, 64], strides = [1, 1]} : vector<16x64xf32> to vector<1x64xf32>
    %199 = vector.extract_strided_slice %196 {offsets = [2, 0], sizes = [1, 64], strides = [1, 1]} : vector<16x64xf32> to vector<1x64xf32>
    %200 = vector.extract_strided_slice %196 {offsets = [3, 0], sizes = [1, 64], strides = [1, 1]} : vector<16x64xf32> to vector<1x64xf32>
    %201 = vector.extract_strided_slice %196 {offsets = [4, 0], sizes = [1, 64], strides = [1, 1]} : vector<16x64xf32> to vector<1x64xf32>
    %202 = vector.extract_strided_slice %196 {offsets = [5, 0], sizes = [1, 64], strides = [1, 1]} : vector<16x64xf32> to vector<1x64xf32>
    %203 = vector.extract_strided_slice %196 {offsets = [6, 0], sizes = [1, 64], strides = [1, 1]} : vector<16x64xf32> to vector<1x64xf32>
    %204 = vector.extract_strided_slice %196 {offsets = [7, 0], sizes = [1, 64], strides = [1, 1]} : vector<16x64xf32> to vector<1x64xf32>
    %205 = vector.extract_strided_slice %196 {offsets = [8, 0], sizes = [1, 64], strides = [1, 1]} : vector<16x64xf32> to vector<1x64xf32>
    %206 = vector.extract_strided_slice %196 {offsets = [9, 0], sizes = [1, 64], strides = [1, 1]} : vector<16x64xf32> to vector<1x64xf32>
    %207 = vector.extract_strided_slice %196 {offsets = [10, 0], sizes = [1, 64], strides = [1, 1]} : vector<16x64xf32> to vector<1x64xf32>
    %208 = vector.extract_strided_slice %196 {offsets = [11, 0], sizes = [1, 64], strides = [1, 1]} : vector<16x64xf32> to vector<1x64xf32>
    %209 = vector.extract_strided_slice %196 {offsets = [12, 0], sizes = [1, 64], strides = [1, 1]} : vector<16x64xf32> to vector<1x64xf32>
    %210 = vector.extract_strided_slice %196 {offsets = [13, 0], sizes = [1, 64], strides = [1, 1]} : vector<16x64xf32> to vector<1x64xf32>
    %211 = vector.extract_strided_slice %196 {offsets = [14, 0], sizes = [1, 64], strides = [1, 1]} : vector<16x64xf32> to vector<1x64xf32>
    %212 = vector.extract_strided_slice %196 {offsets = [15, 0], sizes = [1, 64], strides = [1, 1]} : vector<16x64xf32> to vector<1x64xf32>
    %213 = tpu.concatenate %197, %198, %199, %200, %201, %202, %203, %204, %205, %206, %207, %208, %209, %210, %211, %212 in 1 : vector<1x64xf32>, vector<1x64xf32>, vector<1x64xf32>, vector<1x64xf32>, vector<1x64xf32>, vector<1x64xf32>, vector<1x64xf32>, vector<1x64xf32>, vector<1x64xf32>, vector<1x64xf32>, vector<1x64xf32>, vector<1x64xf32>, vector<1x64xf32>, vector<1x64xf32>, vector<1x64xf32>, vector<1x64xf32> -> vector<1x1024xf32>
    %214 = vector.extract_strided_slice %166 {offsets = [16, 0], sizes = [16, 64], strides = [1, 1]} : vector<32x64xf32> to vector<16x64xf32>
    %215 = arith.truncf %214 : vector<16x64xf32> to vector<16x64xbf16>
    %216 = vector.extract_strided_slice %171 {offsets = [16, 0], sizes = [16, 64], strides = [1, 1]} : vector<32x64xf32> to vector<16x64xf32>
    %217 = arith.truncf %216 : vector<16x64xf32> to vector<16x64xbf16>
    %218 = vector.extract_strided_slice %176 {offsets = [16, 0], sizes = [16, 64], strides = [1, 1]} : vector<32x64xf32> to vector<16x64xf32>
    %219 = arith.truncf %218 : vector<16x64xf32> to vector<16x64xbf16>
    %220 = tpu.transpose %217, [1, 0] : vector<16x64xbf16> -> vector<64x16xbf16>
    %cst_88 = arith.constant dense<0.000000e+00> : vector<16x16xf32>
    %221 = tpu.matmul %215, %220, %cst_88 {dimension_numbers = #tpu.dot_dimension_numbers<[1], [0], [0], [1], [0, 0, 1, 1], [], []>} : vector<16x64xbf16>, vector<64x16xbf16>, vector<16x16xf32> -> vector<16x16xf32>
    %cst_89 = arith.constant dense<0xFF800000> : vector<16xf32>
    %222 = vector.multi_reduction <maximumf>, %221, %cst_89 [1] : vector<16x16xf32> to vector<16xf32>
    %223 = vector.shape_cast %222 : vector<16xf32> to vector<16x1xf32>
    %224 = vector.broadcast %223 : vector<16x1xf32> to vector<16x16xf32>
    %225 = arith.subf %221, %224 : vector<16x16xf32>
    %226 = math.exp %225 : vector<16x16xf32>
    %cst_90 = arith.constant dense<0.000000e+00> : vector<16xf32>
    %227 = vector.multi_reduction <add>, %226, %cst_90 [1] : vector<16x16xf32> to vector<16xf32>
    %228 = vector.shape_cast %227 : vector<16xf32> to vector<16x1xf32>
    %229 = tpu.reciprocal %228 {approx = true} : vector<16x1xf32> -> vector<16x1xf32>
    %230 = vector.broadcast %229 : vector<16x1xf32> to vector<16x16xf32>
    %231 = arith.mulf %226, %230 : vector<16x16xf32>
    %232 = arith.truncf %231 : vector<16x16xf32> to vector<16x16xbf16>
    %cst_91 = arith.constant dense<0.000000e+00> : vector<16x64xf32>
    %233 = tpu.matmul %232, %219, %cst_91 {dimension_numbers = #tpu.dot_dimension_numbers<[1], [0], [0], [1], [0, 0, 1, 1], [], []>} : vector<16x16xbf16>, vector<16x64xbf16>, vector<16x64xf32> -> vector<16x64xf32>
    %234 = vector.extract_strided_slice %233 {offsets = [0, 0], sizes = [1, 64], strides = [1, 1]} : vector<16x64xf32> to vector<1x64xf32>
    %235 = vector.extract_strided_slice %233 {offsets = [1, 0], sizes = [1, 64], strides = [1, 1]} : vector<16x64xf32> to vector<1x64xf32>
    %236 = vector.extract_strided_slice %233 {offsets = [2, 0], sizes = [1, 64], strides = [1, 1]} : vector<16x64xf32> to vector<1x64xf32>
    %237 = vector.extract_strided_slice %233 {offsets = [3, 0], sizes = [1, 64], strides = [1, 1]} : vector<16x64xf32> to vector<1x64xf32>
    %238 = vector.extract_strided_slice %233 {offsets = [4, 0], sizes = [1, 64], strides = [1, 1]} : vector<16x64xf32> to vector<1x64xf32>
    %239 = vector.extract_strided_slice %233 {offsets = [5, 0], sizes = [1, 64], strides = [1, 1]} : vector<16x64xf32> to vector<1x64xf32>
    %240 = vector.extract_strided_slice %233 {offsets = [6, 0], sizes = [1, 64], strides = [1, 1]} : vector<16x64xf32> to vector<1x64xf32>
    %241 = vector.extract_strided_slice %233 {offsets = [7, 0], sizes = [1, 64], strides = [1, 1]} : vector<16x64xf32> to vector<1x64xf32>
    %242 = vector.extract_strided_slice %233 {offsets = [8, 0], sizes = [1, 64], strides = [1, 1]} : vector<16x64xf32> to vector<1x64xf32>
    %243 = vector.extract_strided_slice %233 {offsets = [9, 0], sizes = [1, 64], strides = [1, 1]} : vector<16x64xf32> to vector<1x64xf32>
    %244 = vector.extract_strided_slice %233 {offsets = [10, 0], sizes = [1, 64], strides = [1, 1]} : vector<16x64xf32> to vector<1x64xf32>
    %245 = vector.extract_strided_slice %233 {offsets = [11, 0], sizes = [1, 64], strides = [1, 1]} : vector<16x64xf32> to vector<1x64xf32>
    %246 = vector.extract_strided_slice %233 {offsets = [12, 0], sizes = [1, 64], strides = [1, 1]} : vector<16x64xf32> to vector<1x64xf32>
    %247 = vector.extract_strided_slice %233 {offsets = [13, 0], sizes = [1, 64], strides = [1, 1]} : vector<16x64xf32> to vector<1x64xf32>
    %248 = vector.extract_strided_slice %233 {offsets = [14, 0], sizes = [1, 64], strides = [1, 1]} : vector<16x64xf32> to vector<1x64xf32>
    %249 = vector.extract_strided_slice %233 {offsets = [15, 0], sizes = [1, 64], strides = [1, 1]} : vector<16x64xf32> to vector<1x64xf32>
    %250 = tpu.concatenate %234, %235, %236, %237, %238, %239, %240, %241, %242, %243, %244, %245, %246, %247, %248, %249 in 1 : vector<1x64xf32>, vector<1x64xf32>, vector<1x64xf32>, vector<1x64xf32>, vector<1x64xf32>, vector<1x64xf32>, vector<1x64xf32>, vector<1x64xf32>, vector<1x64xf32>, vector<1x64xf32>, vector<1x64xf32>, vector<1x64xf32>, vector<1x64xf32>, vector<1x64xf32>, vector<1x64xf32>, vector<1x64xf32> -> vector<1x1024xf32>
    %251 = tpu.concatenate %213, %250 in 0 : vector<1x1024xf32>, vector<1x1024xf32> -> vector<2x1024xf32>
    %252 = arith.truncf %251 : vector<2x1024xf32> to vector<2x1024xbf16>
    tpu.wait_dma2 semaphore(%arg29 : memref<!tpu.dma_semaphore, #tpu.memory_space<semaphore_mem>>) src(%arg17 : memref<1024x128xbf16, #tpu.memory_space<any>>) dst(%arg28 : memref<1024x128xbf16, #tpu.memory_space<vmem>>)
    %c0_92 = arith.constant 0 : index
    %c0_93 = arith.constant 0 : index
    %253 = vector.load %arg28[%c0_92, %c0_93] : memref<1024x128xbf16, #tpu.memory_space<vmem>>, vector<1024x128xbf16>
    %cst_94 = arith.constant dense<0.000000e+00> : vector<2x128xf32>
    %254 = tpu.matmul %252, %253, %cst_94 {dimension_numbers = #tpu.dot_dimension_numbers<[1], [0], [0], [1], [0, 0, 1, 1], [], []>} : vector<2x1024xbf16>, vector<1024x128xbf16>, vector<2x128xf32> -> vector<2x128xf32>
    %c0_95 = arith.constant 0 : index
    %c0_96 = arith.constant 0 : index
    %255 = vector.load %arg18[%c0_95, %c0_96] : memref<1x128xf32, #tpu.memory_space<vmem>>, vector<1x128xf32>
    %256 = vector.broadcast %255 : vector<1x128xf32> to vector<2x128xf32>
    %257 = arith.addf %254, %256 : vector<2x128xf32>
    %cst_97 = arith.constant dense<0.000000e+00> : vector<2xf32>
    %258 = vector.multi_reduction <add>, %257, %cst_97 [1] : vector<2x128xf32> to vector<2xf32>
    %259 = vector.shape_cast %258 : vector<2xf32> to vector<2x1xf32>
    %cst_98 = arith.constant 1.280000e+02 : f32
    %260 = vector.broadcast %cst_98 : f32 to vector<2x1xf32>
    %261 = arith.divf %259, %260 : vector<2x1xf32>
    %262 = vector.broadcast %261 : vector<2x1xf32> to vector<2x128xf32>
    %263 = arith.subf %257, %262 : vector<2x128xf32>
    %264 = arith.mulf %263, %263 : vector<2x128xf32>
    %cst_99 = arith.constant dense<0.000000e+00> : vector<2xf32>
    %265 = vector.multi_reduction <add>, %264, %cst_99 [1] : vector<2x128xf32> to vector<2xf32>
    %266 = vector.shape_cast %265 : vector<2xf32> to vector<2x1xf32>
    %cst_100 = arith.constant 1.280000e+02 : f32
    %267 = vector.broadcast %cst_100 : f32 to vector<2x1xf32>
    %268 = arith.divf %266, %267 : vector<2x1xf32>
    %269 = vector.broadcast %261 : vector<2x1xf32> to vector<2x128xf32>
    %270 = arith.subf %257, %269 : vector<2x128xf32>
    %cst_101 = arith.constant 9.99999974E-6 : f32
    %271 = vector.broadcast %cst_101 : f32 to vector<2x1xf32>
    %272 = arith.addf %268, %271 : vector<2x1xf32>
    %273 = math.rsqrt %272 : vector<2x1xf32>
    %274 = vector.broadcast %273 : vector<2x1xf32> to vector<2x128xf32>
    %275 = arith.mulf %270, %274 : vector<2x128xf32>
    %c0_102 = arith.constant 0 : index
    %c0_103 = arith.constant 0 : index
    %276 = vector.load %arg19[%c0_102, %c0_103] : memref<1x128xf32, #tpu.memory_space<vmem>>, vector<1x128xf32>
    %277 = vector.broadcast %276 : vector<1x128xf32> to vector<2x128xf32>
    %278 = arith.mulf %275, %277 : vector<2x128xf32>
    %c0_104 = arith.constant 0 : index
    %c0_105 = arith.constant 0 : index
    %279 = vector.load %arg20[%c0_104, %c0_105] : memref<1x128xf32, #tpu.memory_space<vmem>>, vector<1x128xf32>
    %280 = vector.broadcast %279 : vector<1x128xf32> to vector<2x128xf32>
    %281 = arith.addf %278, %280 : vector<2x128xf32>
    %cst_106 = arith.constant 0.000000e+00 : f32
    %282 = vector.broadcast %cst_106 : f32 to vector<2x128xf32>
    %283 = arith.maximumf %281, %282 : vector<2x128xf32>
    %284 = arith.truncf %283 : vector<2x128xf32> to vector<2x128xbf16>
    %c0_107 = arith.constant 0 : index
    %c0_108 = arith.constant 0 : index
    %285 = vector.load %arg21[%c0_107, %c0_108] : memref<128x128xbf16, #tpu.memory_space<vmem>>, vector<128x128xbf16>
    %cst_109 = arith.constant dense<0.000000e+00> : vector<2x128xf32>
    %286 = tpu.matmul %284, %285, %cst_109 {dimension_numbers = #tpu.dot_dimension_numbers<[1], [0], [0], [1], [0, 0, 1, 1], [], []>} : vector<2x128xbf16>, vector<128x128xbf16>, vector<2x128xf32> -> vector<2x128xf32>
    %c0_110 = arith.constant 0 : index
    %c0_111 = arith.constant 0 : index
    %287 = vector.load %arg22[%c0_110, %c0_111] : memref<1x128xf32, #tpu.memory_space<vmem>>, vector<1x128xf32>
    %288 = vector.broadcast %287 : vector<1x128xf32> to vector<2x128xf32>
    %289 = arith.addf %286, %288 : vector<2x128xf32>
    %cst_112 = arith.constant 0.000000e+00 : f32
    %290 = vector.broadcast %cst_112 : f32 to vector<2x128xf32>
    %291 = arith.maximumf %289, %290 : vector<2x128xf32>
    %292 = arith.truncf %291 : vector<2x128xf32> to vector<2x128xbf16>
    %c0_113 = arith.constant 0 : index
    %c0_114 = arith.constant 0 : index
    %293 = vector.load %arg23[%c0_113, %c0_114] : memref<128x128xbf16, #tpu.memory_space<vmem>>, vector<128x128xbf16>
    %cst_115 = arith.constant dense<0.000000e+00> : vector<2x128xf32>
    %294 = tpu.matmul %292, %293, %cst_115 {dimension_numbers = #tpu.dot_dimension_numbers<[1], [0], [0], [1], [0, 0, 1, 1], [], []>} : vector<2x128xbf16>, vector<128x128xbf16>, vector<2x128xf32> -> vector<2x128xf32>
    %c0_116 = arith.constant 0 : index
    %c0_117 = arith.constant 0 : index
    %295 = vector.load %arg24[%c0_116, %c0_117] : memref<1x128xf32, #tpu.memory_space<vmem>>, vector<1x128xf32>
    %296 = vector.broadcast %295 : vector<1x128xf32> to vector<2x128xf32>
    %297 = arith.addf %294, %296 : vector<2x128xf32>
    %cst_118 = arith.constant 0.000000e+00 : f32
    %298 = vector.broadcast %cst_118 : f32 to vector<2x128xf32>
    %299 = arith.maximumf %297, %298 : vector<2x128xf32>
    %300 = arith.truncf %299 : vector<2x128xf32> to vector<2x128xbf16>
    %c0_119 = arith.constant 0 : index
    %c0_120 = arith.constant 0 : index
    %301 = vector.load %arg25[%c0_119, %c0_120] : memref<128x8xbf16, #tpu.memory_space<vmem>>, vector<128x8xbf16>
    %cst_121 = arith.constant dense<0.000000e+00> : vector<2x8xf32>
    %302 = tpu.matmul %300, %301, %cst_121 {dimension_numbers = #tpu.dot_dimension_numbers<[1], [0], [0], [1], [0, 0, 1, 1], [], []>} : vector<2x128xbf16>, vector<128x8xbf16>, vector<2x8xf32> -> vector<2x8xf32>
    %c0_122 = arith.constant 0 : index
    %c0_123 = arith.constant 0 : index
    %303 = vector.load %arg26[%c0_122, %c0_123] : memref<1x8xf32, #tpu.memory_space<vmem>>, vector<1x8xf32>
    %304 = vector.broadcast %303 : vector<1x8xf32> to vector<2x8xf32>
    %305 = arith.addf %302, %304 : vector<2x8xf32>
    %c0_124 = arith.constant 0 : index
    %c0_125 = arith.constant 0 : index
    %306 = vector.load %arg27[%c0_124, %c0_125] : memref<2x8xf32, #tpu.memory_space<vmem>>, vector<2x8xf32>
    tpu.vector_store %arg27[%c0_124, %c0_125], %305 {strides = array<i32>} : memref<2x8xf32, #tpu.memory_space<vmem>>, vector<2x8xf32>,
    return
  }
}

</mosaic_0001>

<llo_original>
// kernel: _lambda_.1
$region0: #{_lambda_.1}
  #allocation0 [shape = 'u32[]', space=smem, size = 0x4, offset = 0x4, fixed_abs, tag = 'smem constant byte address 0x4 - core index']
  #allocation1 [shape = 'u32[144,128]{1,0:T(1,128)}', space=vmem, size = 0x12000, scoped, tag = 'internal scratch']
  #allocation2 [shape = 'bf16[1024,128]{1,0:T(16,128)(2,1)}', space=vmem, size = 0x40000, scoped, tag = 'scratch operand']
  #allocation3 [shape = 's32[1]{0}', space=sflag, size = 0x4, scoped, tag = 'scratch operand']
  #allocation29 [shape = 's32[]', space=sflag, size = 0x4, offset = 0, fixed_abs, tag = 'sflag constant byte address 0x0 - dummy sync flag']
  %s0 = inlined_call_operand.vmem [shape: f32[64,1], index: 0, kind: input, shape index: {}]
  %s1 = inlined_call_operand.hbm [shape: bf16[3,4], index: 1, kind: input, shape index: {}]
  %s2 = inlined_call_operand.hbm [shape: f32[1,4], index: 2, kind: input, shape index: {}]
  %s3 = inlined_call_operand.vmem [shape: bf16[12,8], index: 3, kind: input, shape index: {}]
  %s4 = inlined_call_operand.hbm [shape: f32[1,8], index: 4, kind: input, shape index: {}]
  %s5 = inlined_call_operand.vmem [shape: bf16[24,16], index: 5, kind: input, shape index: {}]
  %s6 = inlined_call_operand.hbm [shape: f32[1,16], index: 6, kind: input, shape index: {}]
  %s7 = inlined_call_operand.hbm [shape: bf16[48,64], index: 7, kind: input, shape index: {}]
  %s8 = inlined_call_operand.hbm [shape: f32[1,64], index: 8, kind: input, shape index: {}]
  %s9 = inlined_call_operand.vmem [shape: f32[32,64], index: 9, kind: input, shape index: {}]
  %s10 = inlined_call_operand.vmem [shape: f32[32,64], index: 10, kind: input, shape index: {}]
  %s11 = inlined_call_operand.vmem [shape: bf16[64,64], index: 11, kind: input, shape index: {}]
  %s12 = inlined_call_operand.hbm [shape: f32[1,64], index: 12, kind: input, shape index: {}]
  %s13 = inlined_call_operand.vmem [shape: bf16[64,64], index: 13, kind: input, shape index: {}]
  %s14 = inlined_call_operand.hbm [shape: f32[1,64], index: 14, kind: input, shape index: {}]
  %s15 = inlined_call_operand.vmem [shape: bf16[64,64], index: 15, kind: input, shape index: {}]
  %s16 = inlined_call_operand.hbm [shape: f32[1,64], index: 16, kind: input, shape index: {}]
  %s17 = inlined_call_operand.vmem [shape: bf16[1024,128], index: 17, kind: input, shape index: {}]
  %s18 = inlined_call_operand.hbm [shape: f32[1,128], index: 18, kind: input, shape index: {}]
  %s19 = inlined_call_operand.hbm [shape: f32[1,128], index: 19, kind: input, shape index: {}]
  %s20 = inlined_call_operand.hbm [shape: f32[1,128], index: 20, kind: input, shape index: {}]
  %s21 = inlined_call_operand.vmem [shape: bf16[128,128], index: 21, kind: input, shape index: {}]
  %s22 = inlined_call_operand.hbm [shape: f32[1,128], index: 22, kind: input, shape index: {}]
  %s23 = inlined_call_operand.vmem [shape: bf16[128,128], index: 23, kind: input, shape index: {}]
  %s24 = inlined_call_operand.hbm [shape: f32[1,128], index: 24, kind: input, shape index: {}]
  %s25 = inlined_call_operand.vmem [shape: bf16[128,8], index: 25, kind: input, shape index: {}]
  %s26 = inlined_call_operand.hbm [shape: f32[1,8], index: 26, kind: input, shape index: {}]
  %s27 = inlined_call_operand.hbm [shape: f32[2,8], index: 27, kind: output, shape index: {}]
  %s28 = sld [smem:[#allocation0]]
  $region208: #{_lambda_.1} parent=0
    _
  %s30 = ssub.s32 1, %s28
  %s31 = scalar_select 0, %s30, %s28
  $region1: #{_lambda_.1} parent=0
    #allocation4 [shape = 'u8[1024]{0}', space=vmem, size = 0x400, scoped, tag = 'input window, operand 1, single buffered']
    #allocation5 [shape = 's32[1]{0}', space=sflag, size = 0x4, scoped, tag = 'scoped memory for _lambda_.1']
    #allocation6 [shape = 's32[1]{0}', space=sflag, size = 0x4, scoped, tag = 'scoped memory for _lambda_.1']
    #allocation7 [shape = 'u8[512]{0}', space=vmem, size = 0x400, scoped, tag = 'input window, operand 2, single buffered']
    #allocation8 [shape = 's32[1]{0}', space=sflag, size = 0x4, scoped, tag = 'scoped memory for _lambda_.1']
    #allocation9 [shape = 'u8[512]{0}', space=vmem, size = 0x400, scoped, tag = 'input window, operand 4, single buffered']
    #allocation10 [shape = 'u8[512]{0}', space=vmem, size = 0x400, scoped, tag = 'input window, operand 6, single buffered']
    #allocation11 [shape = 's32[1]{0}', space=sflag, size = 0x4, scoped, tag = 'scoped memory for _lambda_.1']
    #allocation12 [shape = 'u8[12288]{0}', space=vmem, size = 0x3000, scoped, tag = 'input window, operand 7, single buffered']
    #allocation13 [shape = 'u8[512]{0}', space=vmem, size = 0x400, scoped, tag = 'input window, operand 8, single buffered']
    #allocation14 [shape = 's32[1]{0}', space=sflag, size = 0x4, scoped, tag = 'scoped memory for _lambda_.1']
    #allocation15 [shape = 'u8[512]{0}', space=vmem, size = 0x400, scoped, tag = 'input window, operand 12, single buffered']
    #allocation16 [shape = 'u8[512]{0}', space=vmem, size = 0x400, scoped, tag = 'input window, operand 14, single buffered']
    #allocation17 [shape = 's32[1]{0}', space=sflag, size = 0x4, scoped, tag = 'scoped memory for _lambda_.1']
    #allocation18 [shape = 'u8[512]{0}', space=vmem, size = 0x400, scoped, tag = 'input window, operand 16, single buffered']
    #allocation19 [shape = 'u8[512]{0}', space=vmem, size = 0x400, scoped, tag = 'input window, operand 18, single buffered']
    #allocation20 [shape = 's32[1]{0}', space=sflag, size = 0x4, scoped, tag = 'scoped memory for _lambda_.1']
    #allocation21 [shape = 'u8[512]{0}', space=vmem, size = 0x400, scoped, tag = 'input window, operand 19, single buffered']
    #allocation22 [shape = 'u8[512]{0}', space=vmem, size = 0x400, scoped, tag = 'input window, operand 20, single buffered']
    #allocation23 [shape = 's32[1]{0}', space=sflag, size = 0x4, scoped, tag = 'scoped memory for _lambda_.1']
    #allocation24 [shape = 'u8[512]{0}', space=vmem, size = 0x400, scoped, tag = 'input window, operand 22, single buffered']
    #allocation25 [shape = 'u8[512]{0}', space=vmem, size = 0x400, scoped, tag = 'input window, operand 24, single buffered']
    #allocation26 [shape = 's32[1]{0}', space=sflag, size = 0x4, scoped, tag = 'scoped memory for _lambda_.1']
    #allocation27 [shape = 'u8[512]{0}', space=vmem, size = 0x400, scoped, tag = 'input window, operand 26, single buffered']
    #allocation28 [shape = 'u8[1024]{0}', space=vmem, size = 0x400, scoped, tag = 'output window, operand 0, single buffered']
    %32 = vsyncpa [#allocation5], 0
    %33 = vsyncpa [#allocation8], 0
    %34 = vsyncpa [#allocation11], 0
    %35 = vsyncpa [#allocation14], 0
    %36 = vsyncpa [#allocation17], 0
    %37 = vsyncpa [#allocation20], 0
    %38 = vsyncpa [#allocation23], 0
    %39 = vsyncpa [#allocation26], 0
    %40 = vsyncpa [#allocation6], 0
    // Predicated region
    $region2: #{_lambda_.1} parent=1 // pred_check
      _
    $region3: #{_lambda_.1} parent=1 // pred_check_branch
      %42 = sbr.rel (0) target = $region5
    $region4: #{_lambda_.1} parent=1 // pred_region
      _
    $region5: #{_lambda_.1} parent=1 // pred_fallthru
      _
    // Predicated region
    $region6: #{_lambda_.1} parent=1 // pred_check
      _
    $region7: #{_lambda_.1} parent=1 // pred_check_branch
      %44 = sbr.rel (0) target = $region9
    $region8: #{_lambda_.1} parent=1 // pred_region
      %s46 = ssub.s32 32, 32
      %47 = vsyncadd [#allocation5], %s46
      %s49 = sshll.u32 [#allocation4], 4
      %s50 = int_to_ptr.vmem [resolvable:$true] %s49
      %52 = dma.hbm_to_vmem [thread:$0]  %s1, 32, %s50, [#allocation5]
    $region9: #{_lambda_.1} parent=1 // pred_fallthru
      _
    // Predicated region
    $region10: #{_lambda_.1} parent=1 // pred_check
      _
    $region11: #{_lambda_.1} parent=1 // pred_check_branch
      %54 = sbr.rel (0) target = $region13
    $region12: #{_lambda_.1} parent=1 // pred_region
      %s56 = ssub.s32 16, 16
      %57 = vsyncadd [#allocation8], %s56
      %s59 = sshll.u32 [#allocation7], 4
      %s60 = int_to_ptr.vmem [resolvable:$true] %s59
      %62 = dma.hbm_to_vmem [thread:$0]  %s2, 16, %s60, [#allocation8]
    $region13: #{_lambda_.1} parent=1 // pred_fallthru
      _
    // Predicated region
    $region14: #{_lambda_.1} parent=1 // pred_check
      _
    $region15: #{_lambda_.1} parent=1 // pred_check_branch
      %64 = sbr.rel (0) target = $region17
    $region16: #{_lambda_.1} parent=1 // pred_region
      _
    $region17: #{_lambda_.1} parent=1 // pred_fallthru
      _
    // Predicated region
    $region18: #{_lambda_.1} parent=1 // pred_check
      _
    $region19: #{_lambda_.1} parent=1 // pred_check_branch
      %66 = sbr.rel (0) target = $region21
    $region20: #{_lambda_.1} parent=1 // pred_region
      %s68 = ssub.s32 16, 16
      %69 = vsyncadd [#allocation8], %s68
      %s71 = sshll.u32 [#allocation9], 4
      %s72 = int_to_ptr.vmem [resolvable:$true] %s71
      %74 = dma.hbm_to_vmem [thread:$0]  %s4, 16, %s72, [#allocation8]
    $region21: #{_lambda_.1} parent=1 // pred_fallthru
      _
    // Predicated region
    $region22: #{_lambda_.1} parent=1 // pred_check
      _
    $region23: #{_lambda_.1} parent=1 // pred_check_branch
      %76 = sbr.rel (0) target = $region25
    $region24: #{_lambda_.1} parent=1 // pred_region
      _
    $region25: #{_lambda_.1} parent=1 // pred_fallthru
      _
    // Predicated region
    $region26: #{_lambda_.1} parent=1 // pred_check
      _
    $region27: #{_lambda_.1} parent=1 // pred_check_branch
      %78 = sbr.rel (0) target = $region29
    $region28: #{_lambda_.1} parent=1 // pred_region
      %s80 = ssub.s32 16, 16
      %81 = vsyncadd [#allocation11], %s80
      %s83 = sshll.u32 [#allocation10], 4
      %s84 = int_to_ptr.vmem [resolvable:$true] %s83
      %86 = dma.hbm_to_vmem [thread:$0]  %s6, 16, %s84, [#allocation11]
    $region29: #{_lambda_.1} parent=1 // pred_fallthru
      _
    // Predicated region
    $region30: #{_lambda_.1} parent=1 // pred_check
      _
    $region31: #{_lambda_.1} parent=1 // pred_check_branch
      %88 = sbr.rel (0) target = $region33
    $region32: #{_lambda_.1} parent=1 // pred_region
      %s90 = ssub.s32 384, 384
      %91 = vsyncadd [#allocation11], %s90
      %s92 = sshll.u32 [#allocation12], 4
      %s93 = int_to_ptr.vmem [resolvable:$true] %s92
      %98 = dma.hbm_to_vmem [thread:$0]  %s7, 384, %s93, [#allocation11], 64, 64, 4
    $region33: #{_lambda_.1} parent=1 // pred_fallthru
      _
    // Predicated region
    $region34: #{_lambda_.1} parent=1 // pred_check
      _
    $region35: #{_lambda_.1} parent=1 // pred_check_branch
      %100 = sbr.rel (0) target = $region37
    $region36: #{_lambda_.1} parent=1 // pred_region
      %s102 = ssub.s32 16, 16
      %103 = vsyncadd [#allocation14], %s102
      %s105 = sshll.u32 [#allocation13], 4
      %s106 = int_to_ptr.vmem [resolvable:$true] %s105
      %108 = dma.hbm_to_vmem [thread:$0]  %s8, 16, %s106, [#allocation14]
    $region37: #{_lambda_.1} parent=1 // pred_fallthru
      _
    // Predicated region
    $region38: #{_lambda_.1} parent=1 // pred_check
      _
    $region39: #{_lambda_.1} parent=1 // pred_check_branch
      %110 = sbr.rel (0) target = $region41
    $region40: #{_lambda_.1} parent=1 // pred_region
      _
    $region41: #{_lambda_.1} parent=1 // pred_fallthru
      _
    // Predicated region
    $region42: #{_lambda_.1} parent=1 // pred_check
      _
    $region43: #{_lambda_.1} parent=1 // pred_check_branch
      %112 = sbr.rel (0) target = $region45
    $region44: #{_lambda_.1} parent=1 // pred_region
      _
    $region45: #{_lambda_.1} parent=1 // pred_fallthru
      _
    // Predicated region
    $region46: #{_lambda_.1} parent=1 // pred_check
      _
    $region47: #{_lambda_.1} parent=1 // pred_check_branch
      %114 = sbr.rel (0) target = $region49
    $region48: #{_lambda_.1} parent=1 // pred_region
      _
    $region49: #{_lambda_.1} parent=1 // pred_fallthru
      _
    // Predicated region
    $region50: #{_lambda_.1} parent=1 // pred_check
      _
    $region51: #{_lambda_.1} parent=1 // pred_check_branch
      %116 = sbr.rel (0) target = $region53
    $region52: #{_lambda_.1} parent=1 // pred_region
      %s118 = ssub.s32 16, 16
      %119 = vsyncadd [#allocation14], %s118
      %s121 = sshll.u32 [#allocation15], 4
      %s122 = int_to_ptr.vmem [resolvable:$true] %s121
      %124 = dma.hbm_to_vmem [thread:$0]  %s12, 16, %s122, [#allocation14]
    $region53: #{_lambda_.1} parent=1 // pred_fallthru
      _
    // Predicated region
    $region54: #{_lambda_.1} parent=1 // pred_check
      _
    $region55: #{_lambda_.1} parent=1 // pred_check_branch
      %126 = sbr.rel (0) target = $region57
    $region56: #{_lambda_.1} parent=1 // pred_region
      _
    $region57: #{_lambda_.1} parent=1 // pred_fallthru
      _
    // Predicated region
    $region58: #{_lambda_.1} parent=1 // pred_check
      _
    $region59: #{_lambda_.1} parent=1 // pred_check_branch
      %128 = sbr.rel (0) target = $region61
    $region60: #{_lambda_.1} parent=1 // pred_region
      %s130 = ssub.s32 16, 16
      %131 = vsyncadd [#allocation17], %s130
      %s133 = sshll.u32 [#allocation16], 4
      %s134 = int_to_ptr.vmem [resolvable:$true] %s133
      %136 = dma.hbm_to_vmem [thread:$0]  %s14, 16, %s134, [#allocation17]
    $region61: #{_lambda_.1} parent=1 // pred_fallthru
      _
    // Predicated region
    $region62: #{_lambda_.1} parent=1 // pred_check
      _
    $region63: #{_lambda_.1} parent=1 // pred_check_branch
      %138 = sbr.rel (0) target = $region65
    $region64: #{_lambda_.1} parent=1 // pred_region
      _
    $region65: #{_lambda_.1} parent=1 // pred_fallthru
      _
    // Predicated region
    $region66: #{_lambda_.1} parent=1 // pred_check
      _
    $region67: #{_lambda_.1} parent=1 // pred_check_branch
      %140 = sbr.rel (0) target = $region69
    $region68: #{_lambda_.1} parent=1 // pred_region
      %s142 = ssub.s32 16, 16
      %143 = vsyncadd [#allocation17], %s142
      %s145 = sshll.u32 [#allocation18], 4
      %s146 = int_to_ptr.vmem [resolvable:$true] %s145
      %148 = dma.hbm_to_vmem [thread:$0]  %s16, 16, %s146, [#allocation17]
    $region69: #{_lambda_.1} parent=1 // pred_fallthru
      _
    // Predicated region
    $region70: #{_lambda_.1} parent=1 // pred_check
      _
    $region71: #{_lambda_.1} parent=1 // pred_check_branch
      %150 = sbr.rel (0) target = $region73
    $region72: #{_lambda_.1} parent=1 // pred_region
      %s152 = ssub.s32 16, 16
      %153 = vsyncadd [#allocation20], %s152
      %s155 = sshll.u32 [#allocation19], 4
      %s156 = int_to_ptr.vmem [resolvable:$true] %s155
      %158 = dma.hbm_to_vmem [thread:$0]  %s18, 16, %s156, [#allocation20]
    $region73: #{_lambda_.1} parent=1 // pred_fallthru
      _
    // Predicated region
    $region74: #{_lambda_.1} parent=1 // pred_check
      _
    $region75: #{_lambda_.1} parent=1 // pred_check_branch
      %160 = sbr.rel (0) target = $region77
    $region76: #{_lambda_.1} parent=1 // pred_region
      %s162 = ssub.s32 16, 16
      %163 = vsyncadd [#allocation20], %s162
      %s165 = sshll.u32 [#allocation21], 4
      %s166 = int_to_ptr.vmem [resolvable:$true] %s165
      %168 = dma.hbm_to_vmem [thread:$0]  %s19, 16, %s166, [#allocation20]
    $region77: #{_lambda_.1} parent=1 // pred_fallthru
      _
    // Predicated region
    $region78: #{_lambda_.1} parent=1 // pred_check
      _
    $region79: #{_lambda_.1} parent=1 // pred_check_branch
      %170 = sbr.rel (0) target = $region81
    $region80: #{_lambda_.1} parent=1 // pred_region
      %s172 = ssub.s32 16, 16
      %173 = vsyncadd [#allocation23], %s172
      %s175 = sshll.u32 [#allocation22], 4
      %s176 = int_to_ptr.vmem [resolvable:$true] %s175
      %178 = dma.hbm_to_vmem [thread:$0]  %s20, 16, %s176, [#allocation23]
    $region81: #{_lambda_.1} parent=1 // pred_fallthru
      _
    // Predicated region
    $region82: #{_lambda_.1} parent=1 // pred_check
      _
    $region83: #{_lambda_.1} parent=1 // pred_check_branch
      %180 = sbr.rel (0) target = $region85
    $region84: #{_lambda_.1} parent=1 // pred_region
      _
    $region85: #{_lambda_.1} parent=1 // pred_fallthru
      _
    // Predicated region
    $region86: #{_lambda_.1} parent=1 // pred_check
      _
    $region87: #{_lambda_.1} parent=1 // pred_check_branch
      %182 = sbr.rel (0) target = $region89
    $region88: #{_lambda_.1} parent=1 // pred_region
      %s184 = ssub.s32 16, 16
      %185 = vsyncadd [#allocation23], %s184
      %s187 = sshll.u32 [#allocation24], 4
      %s188 = int_to_ptr.vmem [resolvable:$true] %s187
      %190 = dma.hbm_to_vmem [thread:$0]  %s22, 16, %s188, [#allocation23]
    $region89: #{_lambda_.1} parent=1 // pred_fallthru
      _
    // Predicated region
    $region90: #{_lambda_.1} parent=1 // pred_check
      _
    $region91: #{_lambda_.1} parent=1 // pred_check_branch
      %192 = sbr.rel (0) target = $region93
    $region92: #{_lambda_.1} parent=1 // pred_region
      _
    $region93: #{_lambda_.1} parent=1 // pred_fallthru
      _
    // Predicated region
    $region94: #{_lambda_.1} parent=1 // pred_check
      _
    $region95: #{_lambda_.1} parent=1 // pred_check_branch
      %194 = sbr.rel (0) target = $region97
    $region96: #{_lambda_.1} parent=1 // pred_region
      %s196 = ssub.s32 16, 16
      %197 = vsyncadd [#allocation26], %s196
      %s199 = sshll.u32 [#allocation25], 4
      %s200 = int_to_ptr.vmem [resolvable:$true] %s199
      %202 = dma.hbm_to_vmem [thread:$0]  %s24, 16, %s200, [#allocation26]
    $region97: #{_lambda_.1} parent=1 // pred_fallthru
      _
    // Predicated region
    $region98: #{_lambda_.1} parent=1 // pred_check
      _
    $region99: #{_lambda_.1} parent=1 // pred_check_branch
      %204 = sbr.rel (0) target = $region101
    $region100: #{_lambda_.1} parent=1 // pred_region
      _
    $region101: #{_lambda_.1} parent=1 // pred_fallthru
      _
    // Predicated region
    $region102: #{_lambda_.1} parent=1 // pred_check
      _
    $region103: #{_lambda_.1} parent=1 // pred_check_branch
      %206 = sbr.rel (0) target = $region105
    $region104: #{_lambda_.1} parent=1 // pred_region
      %s208 = ssub.s32 16, 16
      %209 = vsyncadd [#allocation26], %s208
      %s211 = sshll.u32 [#allocation27], 4
      %s212 = int_to_ptr.vmem [resolvable:$true] %s211
      %214 = dma.hbm_to_vmem [thread:$0]  %s26, 16, %s212, [#allocation26]
    $region105: #{_lambda_.1} parent=1 // pred_fallthru
      _
    // Predicated region
    $region106: #{_lambda_.1} parent=1 // pred_check
      _
    $region107: #{_lambda_.1} parent=1 // pred_check_branch
      %216 = sbr.rel (0) target = $region109
    $region108: #{_lambda_.1} parent=1 // pred_region
      %217 = dma.done [#allocation5], 32
    $region109: #{_lambda_.1} parent=1 // pred_fallthru
      _
    // Predicated region
    $region110: #{_lambda_.1} parent=1 // pred_check
      _
    $region111: #{_lambda_.1} parent=1 // pred_check_branch
      %219 = sbr.rel (0) target = $region113
    $region112: #{_lambda_.1} parent=1 // pred_region
      %220 = dma.done [#allocation8], 16
    $region113: #{_lambda_.1} parent=1 // pred_fallthru
      _
    // Predicated region
    $region114: #{_lambda_.1} parent=1 // pred_check
      _
    $region115: #{_lambda_.1} parent=1 // pred_check_branch
      %222 = sbr.rel (0) target = $region117
    $region116: #{_lambda_.1} parent=1 // pred_region
      %223 = dma.done [#allocation8], 16
    $region117: #{_lambda_.1} parent=1 // pred_fallthru
      _
    // Predicated region
    $region118: #{_lambda_.1} parent=1 // pred_check
      _
    $region119: #{_lambda_.1} parent=1 // pred_check_branch
      %225 = sbr.rel (0) target = $region121
    $region120: #{_lambda_.1} parent=1 // pred_region
      %226 = dma.done [#allocation11], 16
    $region121: #{_lambda_.1} parent=1 // pred_fallthru
      _
    // Predicated region
    $region122: #{_lambda_.1} parent=1 // pred_check
      _
    $region123: #{_lambda_.1} parent=1 // pred_check_branch
      %228 = sbr.rel (0) target = $region125
    $region124: #{_lambda_.1} parent=1 // pred_region
      %229 = dma.done [#allocation11], 384
    $region125: #{_lambda_.1} parent=1 // pred_fallthru
      _
    // Predicated region
    $region126: #{_lambda_.1} parent=1 // pred_check
      _
    $region127: #{_lambda_.1} parent=1 // pred_check_branch
      %231 = sbr.rel (0) target = $region129
    $region128: #{_lambda_.1} parent=1 // pred_region
      %232 = dma.done [#allocation14], 16
    $region129: #{_lambda_.1} parent=1 // pred_fallthru
      _
    // Predicated region
    $region130: #{_lambda_.1} parent=1 // pred_check
      _
    $region131: #{_lambda_.1} parent=1 // pred_check_branch
      %234 = sbr.rel (0) target = $region133
    $region132: #{_lambda_.1} parent=1 // pred_region
      %235 = dma.done [#allocation14], 16
    $region133: #{_lambda_.1} parent=1 // pred_fallthru
      _
    // Predicated region
    $region134: #{_lambda_.1} parent=1 // pred_check
      _
    $region135: #{_lambda_.1} parent=1 // pred_check_branch
      %237 = sbr.rel (0) target = $region137
    $region136: #{_lambda_.1} parent=1 // pred_region
      %238 = dma.done [#allocation17], 16
    $region137: #{_lambda_.1} parent=1 // pred_fallthru
      _
    // Predicated region
    $region138: #{_lambda_.1} parent=1 // pred_check
      _
    $region139: #{_lambda_.1} parent=1 // pred_check_branch
      %240 = sbr.rel (0) target = $region141
    $region140: #{_lambda_.1} parent=1 // pred_region
      %241 = dma.done [#allocation17], 16
    $region141: #{_lambda_.1} parent=1 // pred_fallthru
      _
    // Predicated region
    $region142: #{_lambda_.1} parent=1 // pred_check
      _
    $region143: #{_lambda_.1} parent=1 // pred_check_branch
      %243 = sbr.rel (0) target = $region145
    $region144: #{_lambda_.1} parent=1 // pred_region
      %244 = dma.done [#allocation20], 16
    $region145: #{_lambda_.1} parent=1 // pred_fallthru
      _
    // Predicated region
    $region146: #{_lambda_.1} parent=1 // pred_check
      _
    $region147: #{_lambda_.1} parent=1 // pred_check_branch
      %246 = sbr.rel (0) target = $region149
    $region148: #{_lambda_.1} parent=1 // pred_region
      %247 = dma.done [#allocation20], 16
    $region149: #{_lambda_.1} parent=1 // pred_fallthru
      _
    // Predicated region
    $region150: #{_lambda_.1} parent=1 // pred_check
      _
    $region151: #{_lambda_.1} parent=1 // pred_check_branch
      %249 = sbr.rel (0) target = $region153
    $region152: #{_lambda_.1} parent=1 // pred_region
      %250 = dma.done [#allocation23], 16
    $region153: #{_lambda_.1} parent=1 // pred_fallthru
      _
    // Predicated region
    $region154: #{_lambda_.1} parent=1 // pred_check
      _
    $region155: #{_lambda_.1} parent=1 // pred_check_branch
      %252 = sbr.rel (0) target = $region157
    $region156: #{_lambda_.1} parent=1 // pred_region
      %253 = dma.done [#allocation23], 16
    $region157: #{_lambda_.1} parent=1 // pred_fallthru
      _
    // Predicated region
    $region158: #{_lambda_.1} parent=1 // pred_check
      _
    $region159: #{_lambda_.1} parent=1 // pred_check_branch
      %255 = sbr.rel (0) target = $region161
    $region160: #{_lambda_.1} parent=1 // pred_region
      %256 = dma.done [#allocation26], 16
    $region161: #{_lambda_.1} parent=1 // pred_fallthru
      _
    // Predicated region
    $region162: #{_lambda_.1} parent=1 // pred_check
      _
    $region163: #{_lambda_.1} parent=1 // pred_check_branch
      %258 = sbr.rel (0) target = $region165
    $region164: #{_lambda_.1} parent=1 // pred_region
      %259 = dma.done [#allocation26], 16
    $region165: #{_lambda_.1} parent=1 // pred_fallthru
      _
    %p262 = scmp.lt.u32.totalorder 512, 8
    %p263 = pneg %p262
    // Predicated region
    $region166: #{_lambda_.1} parent=1 // pred_check
      _
    $region167: #{_lambda_.1} parent=1 // pred_check_branch
      %265 = sbr.rel (%p262) target = $region169
    $region168: #{_lambda_.1} parent=1 // pred_region
      %s280 = sand.u32 512, 7
      %p281 = scmp.eq.s32.totalorder %s280, 0
      // Predicated region
      $region181: #{_lambda_.1} parent=168 // pred_check
        %p282 = pneg %p281
      $region182: #{_lambda_.1} parent=168 // pred_check_branch
        %284 = sbr.rel (%p282) target = $region184
      $region183: #{_lambda_.1} parent=168 // pred_region
        loop: start=0, step=1, limit=1
        $region185: #{_lambda_.1} parent=183 // loop_pre_header
          _
        $region186: #{_lambda_.1} parent=183 // loop_header
          %s286 = sphi 0, %s290
          %p287 = scmp.ge.s32.totalorder %s286, 1
          %s291 = sphi %s17, %s17
          %s292 = sphi [#allocation2], [#allocation2]
        $region187: #{_lambda_.1} parent=183 // loop_header_branch
          %289 = sbr.rel (%p287) target = $region191
        $region188: #{_lambda_.1} parent=183 // loop_body
          %v293 = vld [vmem:[%s291] sm:$0xff]
          %294 = vst [vmem:[%s292] sm:$0xff] %v293
          %v295 = vld [vmem:[%s291 + $0x8] sm:$0xff]
          %296 = vst [vmem:[%s292 + $0x8] sm:$0xff] %v295
          %v297 = vld [vmem:[%s291 + $0x10] sm:$0xff]
          %298 = vst [vmem:[%s292 + $0x10] sm:$0xff] %v297
          %v299 = vld [vmem:[%s291 + $0x18] sm:$0xff]
          %300 = vst [vmem:[%s292 + $0x18] sm:$0xff] %v299
          %v301 = vld [vmem:[%s291 + $0x20] sm:$0xff]
          %302 = vst [vmem:[%s292 + $0x20] sm:$0xff] %v301
          %v303 = vld [vmem:[%s291 + $0x28] sm:$0xff]
          %304 = vst [vmem:[%s292 + $0x28] sm:$0xff] %v303
          %v305 = vld [vmem:[%s291 + $0x30] sm:$0xff]
          %306 = vst [vmem:[%s292 + $0x30] sm:$0xff] %v305
          %v307 = vld [vmem:[%s291 + $0x38] sm:$0xff]
          %308 = vst [vmem:[%s292 + $0x38] sm:$0xff] %v307
          %v309 = vld [vmem:[%s291 + $0x40] sm:$0xff]
          %310 = vst [vmem:[%s292 + $0x40] sm:$0xff] %v309
          %v311 = vld [vmem:[%s291 + $0x48] sm:$0xff]
          %312 = vst [vmem:[%s292 + $0x48] sm:$0xff] %v311
          %v313 = vld [vmem:[%s291 + $0x50] sm:$0xff]
          %314 = vst [vmem:[%s292 + $0x50] sm:$0xff] %v313
          %v315 = vld [vmem:[%s291 + $0x58] sm:$0xff]
          %316 = vst [vmem:[%s292 + $0x58] sm:$0xff] %v315
          %v317 = vld [vmem:[%s291 + $0x60] sm:$0xff]
          %318 = vst [vmem:[%s292 + $0x60] sm:$0xff] %v317
          %v319 = vld [vmem:[%s291 + $0x68] sm:$0xff]
          %320 = vst [vmem:[%s292 + $0x68] sm:$0xff] %v319
          %v321 = vld [vmem:[%s291 + $0x70] sm:$0xff]
          %322 = vst [vmem:[%s292 + $0x70] sm:$0xff] %v321
          %v323 = vld [vmem:[%s291 + $0x78] sm:$0xff]
          %324 = vst [vmem:[%s292 + $0x78] sm:$0xff] %v323
          %v325 = vld [vmem:[%s291 + $0x80] sm:$0xff]
          %326 = vst [vmem:[%s292 + $0x80] sm:$0xff] %v325
          %v327 = vld [vmem:[%s291 + $0x88] sm:$0xff]
          %328 = vst [vmem:[%s292 + $0x88] sm:$0xff] %v327
          %v329 = vld [vmem:[%s291 + $0x90] sm:$0xff]
          %330 = vst [vmem:[%s292 + $0x90] sm:$0xff] %v329
          %v331 = vld [vmem:[%s291 + $0x98] sm:$0xff]
          %332 = vst [vmem:[%s292 + $0x98] sm:$0xff] %v331
          %v333 = vld [vmem:[%s291 + $0xa0] sm:$0xff]
          %334 = vst [vmem:[%s292 + $0xa0] sm:$0xff] %v333
          %v335 = vld [vmem:[%s291 + $0xa8] sm:$0xff]
          %336 = vst [vmem:[%s292 + $0xa8] sm:$0xff] %v335
          %v337 = vld [vmem:[%s291 + $0xb0] sm:$0xff]
          %338 = vst [vmem:[%s292 + $0xb0] sm:$0xff] %v337
          %v339 = vld [vmem:[%s291 + $0xb8] sm:$0xff]
          %340 = vst [vmem:[%s292 + $0xb8] sm:$0xff] %v339
          %v341 = vld [vmem:[%s291 + $0xc0] sm:$0xff]
          %342 = vst [vmem:[%s292 + $0xc0] sm:$0xff] %v341
          %v343 = vld [vmem:[%s291 + $0xc8] sm:$0xff]
          %344 = vst [vmem:[%s292 + $0xc8] sm:$0xff] %v343
          %v345 = vld [vmem:[%s291 + $0xd0] sm:$0xff]
          %346 = vst [vmem:[%s292 + $0xd0] sm:$0xff] %v345
          %v347 = vld [vmem:[%s291 + $0xd8] sm:$0xff]
          %348 = vst [vmem:[%s292 + $0xd8] sm:$0xff] %v347
          %v349 = vld [vmem:[%s291 + $0xe0] sm:$0xff]
          %350 = vst [vmem:[%s292 + $0xe0] sm:$0xff] %v349
          %v351 = vld [vmem:[%s291 + $0xe8] sm:$0xff]
          %352 = vst [vmem:[%s292 + $0xe8] sm:$0xff] %v351
          %v353 = vld [vmem:[%s291 + $0xf0] sm:$0xff]
          %354 = vst [vmem:[%s292 + $0xf0] sm:$0xff] %v353
          %v355 = vld [vmem:[%s291 + $0xf8] sm:$0xff]
          %356 = vst [vmem:[%s292 + $0xf8] sm:$0xff] %v355
          %v357 = vld [vmem:[%s291 + $0x100] sm:$0xff]
          %358 = vst [vmem:[%s292 + $0x100] sm:$0xff] %v357
          %v359 = vld [vmem:[%s291 + $0x108] sm:$0xff]
          %360 = vst [vmem:[%s292 + $0x108] sm:$0xff] %v359
          %v361 = vld [vmem:[%s291 + $0x110] sm:$0xff]
          %362 = vst [vmem:[%s292 + $0x110] sm:$0xff] %v361
          %v363 = vld [vmem:[%s291 + $0x118] sm:$0xff]
          %364 = vst [vmem:[%s292 + $0x118] sm:$0xff] %v363
          %v365 = vld [vmem:[%s291 + $0x120] sm:$0xff]
          %366 = vst [vmem:[%s292 + $0x120] sm:$0xff] %v365
          %v367 = vld [vmem:[%s291 + $0x128] sm:$0xff]
          %368 = vst [vmem:[%s292 + $0x128] sm:$0xff] %v367
          %v369 = vld [vmem:[%s291 + $0x130] sm:$0xff]
          %370 = vst [vmem:[%s292 + $0x130] sm:$0xff] %v369
          %v371 = vld [vmem:[%s291 + $0x138] sm:$0xff]
          %372 = vst [vmem:[%s292 + $0x138] sm:$0xff] %v371
          %v373 = vld [vmem:[%s291 + $0x140] sm:$0xff]
          %374 = vst [vmem:[%s292 + $0x140] sm:$0xff] %v373
          %v375 = vld [vmem:[%s291 + $0x148] sm:$0xff]
          %376 = vst [vmem:[%s292 + $0x148] sm:$0xff] %v375
          %v377 = vld [vmem:[%s291 + $0x150] sm:$0xff]
          %378 = vst [vmem:[%s292 + $0x150] sm:$0xff] %v377
          %v379 = vld [vmem:[%s291 + $0x158] sm:$0xff]
          %380 = vst [vmem:[%s292 + $0x158] sm:$0xff] %v379
          %v381 = vld [vmem:[%s291 + $0x160] sm:$0xff]
          %382 = vst [vmem:[%s292 + $0x160] sm:$0xff] %v381
          %v383 = vld [vmem:[%s291 + $0x168] sm:$0xff]
          %384 = vst [vmem:[%s292 + $0x168] sm:$0xff] %v383
          %v385 = vld [vmem:[%s291 + $0x170] sm:$0xff]
          %386 = vst [vmem:[%s292 + $0x170] sm:$0xff] %v385
          %v387 = vld [vmem:[%s291 + $0x178] sm:$0xff]
          %388 = vst [vmem:[%s292 + $0x178] sm:$0xff] %v387
          %v389 = vld [vmem:[%s291 + $0x180] sm:$0xff]
          %390 = vst [vmem:[%s292 + $0x180] sm:$0xff] %v389
          %v391 = vld [vmem:[%s291 + $0x188] sm:$0xff]
          %392 = vst [vmem:[%s292 + $0x188] sm:$0xff] %v391
          %v393 = vld [vmem:[%s291 + $0x190] sm:$0xff]
          %394 = vst [vmem:[%s292 + $0x190] sm:$0xff] %v393
          %v395 = vld [vmem:[%s291 + $0x198] sm:$0xff]
          %396 = vst [vmem:[%s292 + $0x198] sm:$0xff] %v395
          %v397 = vld [vmem:[%s291 + $0x1a0] sm:$0xff]
          %398 = vst [vmem:[%s292 + $0x1a0] sm:$0xff] %v397
          %v399 = vld [vmem:[%s291 + $0x1a8] sm:$0xff]
          %400 = vst [vmem:[%s292 + $0x1a8] sm:$0xff] %v399
          %v401 = vld [vmem:[%s291 + $0x1b0] sm:$0xff]
          %402 = vst [vmem:[%s292 + $0x1b0] sm:$0xff] %v401
          %v403 = vld [vmem:[%s291 + $0x1b8] sm:$0xff]
          %404 = vst [vmem:[%s292 + $0x1b8] sm:$0xff] %v403
          %v405 = vld [vmem:[%s291 + $0x1c0] sm:$0xff]
          %406 = vst [vmem:[%s292 + $0x1c0] sm:$0xff] %v405
          %v407 = vld [vmem:[%s291 + $0x1c8] sm:$0xff]
          %408 = vst [vmem:[%s292 + $0x1c8] sm:$0xff] %v407
          %v409 = vld [vmem:[%s291 + $0x1d0] sm:$0xff]
          %410 = vst [vmem:[%s292 + $0x1d0] sm:$0xff] %v409
          %v411 = vld [vmem:[%s291 + $0x1d8] sm:$0xff]
          %412 = vst [vmem:[%s292 + $0x1d8] sm:$0xff] %v411
          %v413 = vld [vmem:[%s291 + $0x1e0] sm:$0xff]
          %414 = vst [vmem:[%s292 + $0x1e0] sm:$0xff] %v413
          %v415 = vld [vmem:[%s291 + $0x1e8] sm:$0xff]
          %416 = vst [vmem:[%s292 + $0x1e8] sm:$0xff] %v415
          %v417 = vld [vmem:[%s291 + $0x1f0] sm:$0xff]
          %418 = vst [vmem:[%s292 + $0x1f0] sm:$0xff] %v417
          %v419 = vld [vmem:[%s291 + $0x1f8] sm:$0xff]
          %420 = vst [vmem:[%s292 + $0x1f8] sm:$0xff] %v419
        $region189: #{_lambda_.1} parent=183 // loop_footer
          %s290 = sadd.s32 1, %s286
        $region190: #{_lambda_.1} parent=183 // loop_footer_branch
          %285 = sbr.rel target = $region186
        $region191: #{_lambda_.1} parent=183 // loop_exit
          _
      $region184: #{_lambda_.1} parent=168 // pred_fallthru
        _
      %p421 = pneg %p281
      // Predicated region
      $region192: #{_lambda_.1} parent=168 // pred_check
        _
      $region193: #{_lambda_.1} parent=168 // pred_check_branch
        %423 = sbr.rel (%p281) target = $region195
      $region194: #{_lambda_.1} parent=168 // pred_region
        %s424 = sand.u32 512, 7
      $region195: #{_lambda_.1} parent=168 // pred_fallthru
        _
    $region169: #{_lambda_.1} parent=1 // pred_fallthru
      _
    // Predicated region
    $region170: #{_lambda_.1} parent=1 // pred_check
      %p266 = pneg %p262
    $region171: #{_lambda_.1} parent=1 // pred_check_branch
      %268 = sbr.rel (%p266) target = $region173
    $region172: #{_lambda_.1} parent=1 // pred_region
      %s269 = sshllo.u32 0, 512
      loop: start=0, step=1, limit=1
      $region174: #{_lambda_.1} parent=172 // loop_pre_header
        _
      $region175: #{_lambda_.1} parent=172 // loop_header
        %s271 = sphi 0, %s275
        %p272 = scmp.ge.s32.totalorder %s271, 1
        %s276 = sphi %s17, %s17
        %s277 = sphi [#allocation2], [#allocation2]
      $region176: #{_lambda_.1} parent=172 // loop_header_branch
        %274 = sbr.rel (%p272) target = $region180
      $region177: #{_lambda_.1} parent=172 // loop_body
        %v278 = vld [vmem:[%s276] sm:%s269]
        %279 = vst [vmem:[%s277] sm:%s269] %v278
      $region178: #{_lambda_.1} parent=172 // loop_footer
        %s275 = sadd.s32 1, %s271
      $region179: #{_lambda_.1} parent=172 // loop_footer_branch
        %270 = sbr.rel target = $region175
      $region180: #{_lambda_.1} parent=172 // loop_exit
        _
    $region173: #{_lambda_.1} parent=1 // pred_fallthru
      _
    // Predicated region
    $region196: #{_lambda_.1} parent=1 // pred_check
      _
    $region197: #{_lambda_.1} parent=1 // pred_check_branch
      %427 = sbr.rel (0) target = $region199
    $region198: #{_lambda_.1} parent=1 // pred_region
      %428 = vsyncadd [#allocation3], 8192
    $region199: #{_lambda_.1} parent=1 // pred_fallthru
      _
    %v429 = vld [vmem:[%s0] sm:$0xff]
    %v430 = vld [vmem:[%s0 + $0x8] sm:$0xff]
    %v431 = vld [vmem:[%s0 + $0x10] sm:$0xff]
    %v432 = vld [vmem:[%s0 + $0x18] sm:$0xff]
    %v433 = vld [vmem:[%s0 + $0x20] sm:$0xff]
    %v434 = vld [vmem:[%s0 + $0x28] sm:$0xff]
    %v435 = vld [vmem:[%s0 + $0x30] sm:$0xff]
    %v436 = vld [vmem:[%s0 + $0x38] sm:$0xff]
    %v437 = vlaneseq
    %v438 = vshrl.u32 %v437, 7
    %v439 = vadd.s32 %v438, 8
    %v440 = vadd.s32 %v438, 16
    %v441 = vadd.s32 %v438, 24
    %v442 = vadd.s32 %v438, 32
    %v443 = vadd.s32 %v438, 40
    %v444 = vadd.s32 %v438, 48
    %v445 = vadd.s32 %v438, 56
    %vm446 = vcmp.lt.s32.totalorder %v438, 0
    %v447 = vsub.s32 0, %v438
    %v448 = vsel %vm446, %v447, %v438
    %v449 = vshrl.u32 %v448, 5
    %v450 = vand.u32 %v448, 31
    %v451 = vsub.s32 0, %v450
    %v452 = vsel %vm446, %v451, %v450
    %vm453 = vcmp.lt.s32.totalorder %v439, 0
    %v454 = vsub.s32 0, %v439
    %v455 = vsel %vm453, %v454, %v439
    %v456 = vshrl.u32 %v455, 5
    %v457 = vand.u32 %v455, 31
    %v458 = vsub.s32 0, %v457
    %v459 = vsel %vm453, %v458, %v457
    %vm460 = vcmp.lt.s32.totalorder %v440, 0
    %v461 = vsub.s32 0, %v440
    %v462 = vsel %vm460, %v461, %v440
    %v463 = vshrl.u32 %v462, 5
    %v464 = vand.u32 %v462, 31
    %v465 = vsub.s32 0, %v464
    %v466 = vsel %vm460, %v465, %v464
    %vm467 = vcmp.lt.s32.totalorder %v441, 0
    %v468 = vsub.s32 0, %v441
    %v469 = vsel %vm467, %v468, %v441
    %v470 = vshrl.u32 %v469, 5
    %v471 = vand.u32 %v469, 31
    %v472 = vsub.s32 0, %v471
    %v473 = vsel %vm467, %v472, %v471
    %vm474 = vcmp.lt.s32.totalorder %v442, 0
    %v475 = vsub.s32 0, %v442
    %v476 = vsel %vm474, %v475, %v442
    %v477 = vshrl.u32 %v476, 5
    %v478 = vand.u32 %v476, 31
    %v479 = vsub.s32 0, %v478
    %v480 = vsel %vm474, %v479, %v478
    %vm481 = vcmp.lt.s32.totalorder %v443, 0
    %v482 = vsub.s32 0, %v443
    %v483 = vsel %vm481, %v482, %v443
    %v484 = vshrl.u32 %v483, 5
    %v485 = vand.u32 %v483, 31
    %v486 = vsub.s32 0, %v485
    %v487 = vsel %vm481, %v486, %v485
    %vm488 = vcmp.lt.s32.totalorder %v444, 0
    %v489 = vsub.s32 0, %v444
    %v490 = vsel %vm488, %v489, %v444
    %v491 = vshrl.u32 %v490, 5
    %v492 = vand.u32 %v490, 31
    %v493 = vsub.s32 0, %v492
    %v494 = vsel %vm488, %v493, %v492
    %vm495 = vcmp.lt.s32.totalorder %v445, 0
    %v496 = vsub.s32 0, %v445
    %v497 = vsel %vm495, %v496, %v445
    %v498 = vshrl.u32 %v497, 5
    %v499 = vand.u32 %v497, 31
    %v500 = vsub.s32 0, %v499
    %v501 = vsel %vm495, %v500, %v499
    %vm502 = vcmp.ne.s32.totalorder %v452, 0
    %vm503 = vcmp.ne.s32.totalorder %v459, 0
    %vm504 = vcmp.ne.s32.totalorder %v466, 0
    %vm505 = vcmp.ne.s32.totalorder %v473, 0
    %vm506 = vcmp.ne.s32.totalorder %v480, 0
    %vm507 = vcmp.ne.s32.totalorder %v487, 0
    %vm508 = vcmp.ne.s32.totalorder %v494, 0
    %vm509 = vcmp.ne.s32.totalorder %v501, 0
    %vm510 = vcmp.lt.s32.totalorder %v452, 0
    %vm511 = vcmp.lt.s32.totalorder %v459, 0
    %vm512 = vcmp.lt.s32.totalorder %v466, 0
    %vm513 = vcmp.lt.s32.totalorder %v473, 0
    %vm514 = vcmp.lt.s32.totalorder %v480, 0
    %vm515 = vcmp.lt.s32.totalorder %v487, 0
    %vm516 = vcmp.lt.s32.totalorder %v494, 0
    %vm517 = vcmp.lt.s32.totalorder %v501, 0
    %vm518 = vmand %vm510, %vm502
    %vm519 = vmand %vm511, %vm503
    %vm520 = vmand %vm512, %vm504
    %vm521 = vmand %vm513, %vm505
    %vm522 = vmand %vm514, %vm506
    %vm523 = vmand %vm515, %vm507
    %vm524 = vmand %vm516, %vm508
    %vm525 = vmand %vm517, %vm509
    %v526 = vadd.s32 %v452, 32
    %v527 = vadd.s32 %v459, 32
    %v528 = vadd.s32 %v466, 32
    %v529 = vadd.s32 %v473, 32
    %v530 = vadd.s32 %v480, 32
    %v531 = vadd.s32 %v487, 32
    %v532 = vadd.s32 %v494, 32
    %v533 = vadd.s32 %v501, 32
    %v534 = vsel %vm518, %v526, %v452
    %v535 = vsel %vm519, %v527, %v459
    %v536 = vsel %vm520, %v528, %v466
    %v537 = vsel %vm521, %v529, %v473
    %v538 = vsel %vm522, %v530, %v480
    %v539 = vsel %vm523, %v531, %v487
    %v540 = vsel %vm524, %v532, %v494
    %v541 = vsel %vm525, %v533, %v501
    %vm542 = vcmp.eq.s32.totalorder %v534, 0
    %vm543 = vcmp.eq.s32.totalorder %v535, 0
    %vm544 = vcmp.eq.s32.totalorder %v536, 0
    %vm545 = vcmp.eq.s32.totalorder %v537, 0
    %vm546 = vcmp.eq.s32.totalorder %v538, 0
    %vm547 = vcmp.eq.s32.totalorder %v539, 0
    %vm548 = vcmp.eq.s32.totalorder %v540, 0
    %vm549 = vcmp.eq.s32.totalorder %v541, 0
    %vm558 = vcmask 1040384
    %v559 = vrot.slane %v429, 7
    %v560 = vrot.slane %v430, 7
    %v561 = vsel %vm558, %v559, %v560
    %v562 = vrot.slane %v431, 7
    %v563 = vsel %vm558, %v560, %v562
    %v564 = vrot.slane %v432, 7
    %v565 = vsel %vm558, %v562, %v564
    %v566 = vrot.slane %v433, 7
    %v567 = vsel %vm558, %v564, %v566
    %v568 = vrot.slane %v434, 7
    %v569 = vsel %vm558, %v566, %v568
    %v570 = vrot.slane %v435, 7
    %v571 = vsel %vm558, %v568, %v570
    %v572 = vrot.slane %v436, 7
    %v573 = vsel %vm558, %v570, %v572
    %v582 = vsel %vm558, 0.0, %v559
    %v583 = vsel %vm542, 0.0, %v582
    %v584 = vsel %vm543, 0.0, %v561
    %v585 = vsel %vm544, 0.0, %v563
    %v586 = vsel %vm545, 0.0, %v565
    %v587 = vsel %vm546, 0.0, %v567
    %v588 = vsel %vm547, 0.0, %v569
    %v589 = vsel %vm548, 0.0, %v571
    %v590 = vsel %vm549, 0.0, %v573
    %vm591 = vcmp.eq.s32.totalorder %v534, 31
    %vm592 = vcmp.eq.s32.totalorder %v535, 31
    %vm593 = vcmp.eq.s32.totalorder %v536, 31
    %vm594 = vcmp.eq.s32.totalorder %v537, 31
    %vm595 = vcmp.eq.s32.totalorder %v538, 31
    %vm596 = vcmp.eq.s32.totalorder %v539, 31
    %vm597 = vcmp.eq.s32.totalorder %v540, 31
    %vm598 = vcmp.eq.s32.totalorder %v541, 31
    %vm599 = vcmask 1046528
    %v600 = vrot.slane %v429, 1
    %v601 = vrot.slane %v430, 1
    %v602 = vsel %vm599, %v600, %v601
    %v603 = vrot.slane %v431, 1
    %v604 = vsel %vm599, %v601, %v603
    %v605 = vrot.slane %v432, 1
    %v606 = vsel %vm599, %v603, %v605
    %v607 = vrot.slane %v433, 1
    %v608 = vsel %vm599, %v605, %v607
    %v609 = vrot.slane %v434, 1
    %v610 = vsel %vm599, %v607, %v609
    %v611 = vrot.slane %v435, 1
    %v612 = vsel %vm599, %v609, %v611
    %v613 = vrot.slane %v436, 1
    %v614 = vsel %vm599, %v611, %v613
    %v623 = vsel %vm599, %v613, 0.0
    %v624 = vsel %vm591, 0.0, %v602
    %v625 = vsel %vm592, 0.0, %v604
    %v626 = vsel %vm593, 0.0, %v606
    %v627 = vsel %vm594, 0.0, %v608
    %v628 = vsel %vm595, 0.0, %v610
    %v629 = vsel %vm596, 0.0, %v612
    %v630 = vsel %vm597, 0.0, %v614
    %v631 = vsel %vm598, 0.0, %v623
    %632 = vrot.lane.b32.xlu0 %v429, 1
    %v633 = vpop.permute.xlu0 %632
    %634 = vrot.lane.b32.xlu0 %v430, 1
    %v635 = vpop.permute.xlu0 %634
    %636 = vrot.lane.b32.xlu0 %v431, 1
    %v637 = vpop.permute.xlu0 %636
    %638 = vrot.lane.b32.xlu0 %v432, 1
    %v639 = vpop.permute.xlu0 %638
    %640 = vrot.lane.b32.xlu0 %v433, 1
    %v641 = vpop.permute.xlu0 %640
    %642 = vrot.lane.b32.xlu0 %v434, 1
    %v643 = vpop.permute.xlu0 %642
    %644 = vrot.lane.b32.xlu0 %v435, 1
    %v645 = vpop.permute.xlu0 %644
    %646 = vrot.lane.b32.xlu0 %v436, 1
    %v647 = vpop.permute.xlu0 %646
    %664 = vrot.lane.b32.xlu0 %v624, 2
    %v665 = vpop.permute.xlu0 %664
    %666 = vrot.lane.b32.xlu0 %v625, 2
    %v667 = vpop.permute.xlu0 %666
    %668 = vrot.lane.b32.xlu0 %v626, 2
    %v669 = vpop.permute.xlu0 %668
    %670 = vrot.lane.b32.xlu0 %v627, 2
    %v671 = vpop.permute.xlu0 %670
    %672 = vrot.lane.b32.xlu0 %v628, 2
    %v673 = vpop.permute.xlu0 %672
    %674 = vrot.lane.b32.xlu0 %v629, 2
    %v675 = vpop.permute.xlu0 %674
    %676 = vrot.lane.b32.xlu0 %v630, 2
    %v677 = vpop.permute.xlu0 %676
    %678 = vrot.lane.b32.xlu0 %v631, 2
    %v679 = vpop.permute.xlu0 %678
    %vm688 = vcmask 7168
    %v689 = vsel %vm688, %v583, %v633
    %v690 = vsel %vm688, %v584, %v635
    %v691 = vsel %vm688, %v585, %v637
    %v692 = vsel %vm688, %v586, %v639
    %v693 = vsel %vm688, %v587, %v641
    %v694 = vsel %vm688, %v588, %v643
    %v695 = vsel %vm688, %v589, %v645
    %v696 = vsel %vm688, %v590, %v647
    %vm697 = vcmask 15360
    %v698 = vsel %vm697, %v689, %v665
    %v699 = vsel %vm697, %v690, %v667
    %v700 = vsel %vm697, %v691, %v669
    %v701 = vsel %vm697, %v692, %v671
    %v702 = vsel %vm697, %v693, %v673
    %v703 = vsel %vm697, %v694, %v675
    %v704 = vsel %vm697, %v695, %v677
    %v705 = vsel %vm697, %v696, %v679
    %v706 = vpack.c.bf16 %v699, %v698
    %v707 = vpack.c.bf16 %v701, %v700
    %v708 = vpack.c.bf16 %v703, %v702
    %v709 = vpack.c.bf16 %v705, %v704
    %v710 = vld [vmem:[#allocation4] sm:$0x3]
    %v711 = vld [vmem:[#allocation7] sm:$0x1]
    %v713 = vlaneseq
    %v714 = vshrl.u32 %v713, 7
    %v715 = vsub.s32 0, %v714
    %v716 = vrot.slane %v711, %v715
    %vm718 = vcmask 23552
    %v720 = vsel %vm718, %v706, 0
    %v723 = vsel %vm718, %v707, 0
    %v726 = vsel %vm718, %v708, 0
    %v729 = vsel %vm718, %v709, 0
    %vm731 = vcmask 1041408
    %v732 = vsel %vm558, 4294967295, 65535
    %v733 = vsel %vm731, %v732, 0
    %v735 = vand.u32 %v710, %v733
    %737 = vmatprep.subr.bf16.mxu0 0
    %738 = vmatpush1.bf16.msra.mxu0 %v735
    %739 = vmatprep.subr.bf16.mxu0 0
    %740 = vmatpush1.bf16.msra.mxu0 0
    %741 = vmatprep.subr.bf16.mxu0 0
    %742 = vmatpush1.bf16.msra.mxu0 0
    %743 = vmatprep.subr.bf16.mxu0 0
    %744 = vmatpush1.bf16.msra.mxu0 0
    %745 = vmatprep.subr.bf16.mxu0 0
    %746 = vmatpush1.bf16.msra.mxu0 0
    %747 = vmatprep.subr.bf16.mxu0 0
    %748 = vmatpush1.bf16.msra.mxu0 0
    %749 = vmatprep.subr.bf16.mxu0 0
    %750 = vmatpush1.bf16.msra.mxu0 0
    %751 = vmatprep.subr.bf16.mxu0 0
    %752 = vmatpush1.bf16.msra.mxu0 0
    %753 = vmatprep.subr.bf16.mxu0 0
    %754 = vmatpush1.bf16.msra.mxu0 0
    %755 = vmatprep.subr.bf16.mxu0 0
    %756 = vmatpush1.bf16.msra.mxu0 0
    %757 = vmatprep.subr.bf16.mxu0 0
    %758 = vmatpush1.bf16.msra.mxu0 0
    %759 = vmatprep.subr.bf16.mxu0 0
    %760 = vmatpush1.bf16.msra.mxu0 0
    %761 = vmatprep.subr.bf16.mxu0 0
    %762 = vmatpush1.bf16.msra.mxu0 0
    %763 = vmatprep.subr.bf16.mxu0 0
    %764 = vmatpush1.bf16.msra.mxu0 0
    %765 = vmatprep.subr.bf16.mxu0 0
    %766 = vmatpush1.bf16.msra.mxu0 0
    %767 = vmatprep.subr.bf16.mxu0 0
    %768 = vmatpush1.bf16.msra.mxu0 0
    %769 = vmatprep.mubr.bf16.mxu0 0
    %770 = vmatmul.mubr.bf16.gmra.mrb[0].mxu0 %v720
    %v771 = vpop.f32.mrb[0].mxu0
    %v772 = vadd.f32 %v716, %v771
    %v773 = vpop.f32.mrb[0].mxu0
    %v774 = vpop.f32.mrb[0].mxu0
    %v775 = vadd.f32 %v716, %v774
    %v776 = vpop.f32.mrb[0].mxu0
    %777 = vmatprep.mubr.bf16.mxu0 0
    %778 = vmatmul.mubr.bf16.gmra.mrb[0].mxu0 %v723
    %v779 = vpop.f32.mrb[0].mxu0
    %v780 = vadd.f32 %v716, %v779
    %v781 = vpop.f32.mrb[0].mxu0
    %v782 = vpop.f32.mrb[0].mxu0
    %v783 = vadd.f32 %v716, %v782
    %v784 = vpop.f32.mrb[0].mxu0
    %785 = vmatprep.mubr.bf16.mxu0 0
    %786 = vmatmul.mubr.bf16.gmra.mrb[0].mxu0 %v726
    %v787 = vpop.f32.mrb[0].mxu0
    %v788 = vadd.f32 %v716, %v787
    %v789 = vpop.f32.mrb[0].mxu0
    %v790 = vpop.f32.mrb[0].mxu0
    %v791 = vadd.f32 %v716, %v790
    %v792 = vpop.f32.mrb[0].mxu0
    %793 = vmatprep.mubr.bf16.mxu0 0
    %794 = vmatmul.mubr.bf16.gmra.mrb[0].mxu0 %v729
    %v795 = vpop.f32.mrb[0].mxu0
    %v796 = vadd.f32 %v716, %v795
    %v797 = vpop.f32.mrb[0].mxu0
    %v798 = vpop.f32.mrb[0].mxu0
    %v799 = vadd.f32 %v716, %v798
    %v800 = vpop.f32.mrb[0].mxu0
    %801 = vdwg.mxu0
    %v802 = vmax.f32 %v772, 0.0
    %v803 = vmax.f32 %v775, 0.0
    %v804 = vmax.f32 %v780, 0.0
    %v805 = vmax.f32 %v783, 0.0
    %v806 = vmax.f32 %v788, 0.0
    %v807 = vmax.f32 %v791, 0.0
    %v808 = vmax.f32 %v796, 0.0
    %v809 = vmax.f32 %v799, 0.0
    %v818 = vrot.slane %v802, 7
    %v819 = vrot.slane %v803, 7
    %v820 = vsel %vm558, %v818, %v819
    %v821 = vrot.slane %v804, 7
    %v822 = vsel %vm558, %v819, %v821
    %v823 = vrot.slane %v805, 7
    %v824 = vsel %vm558, %v821, %v823
    %v825 = vrot.slane %v806, 7
    %v826 = vsel %vm558, %v823, %v825
    %v827 = vrot.slane %v807, 7
    %v828 = vsel %vm558, %v825, %v827
    %v829 = vrot.slane %v808, 7
    %v830 = vsel %vm558, %v827, %v829
    %v831 = vrot.slane %v809, 7
    %v832 = vsel %vm558, %v829, %v831
    %v841 = vsel %vm558, 0.0, %v818
    %v842 = vsel %vm542, 0.0, %v841
    %v843 = vsel %vm543, 0.0, %v820
    %v844 = vsel %vm544, 0.0, %v822
    %v845 = vsel %vm545, 0.0, %v824
    %v846 = vsel %vm546, 0.0, %v826
    %v847 = vsel %vm547, 0.0, %v828
    %v848 = vsel %vm548, 0.0, %v830
    %v849 = vsel %vm549, 0.0, %v832
    %v850 = vrot.slane %v802, 1
    %v851 = vrot.slane %v803, 1
    %v852 = vsel %vm599, %v850, %v851
    %v853 = vrot.slane %v804, 1
    %v854 = vsel %vm599, %v851, %v853
    %v855 = vrot.slane %v805, 1
    %v856 = vsel %vm599, %v853, %v855
    %v857 = vrot.slane %v806, 1
    %v858 = vsel %vm599, %v855, %v857
    %v859 = vrot.slane %v807, 1
    %v860 = vsel %vm599, %v857, %v859
    %v861 = vrot.slane %v808, 1
    %v862 = vsel %vm599, %v859, %v861
    %v863 = vrot.slane %v809, 1
    %v864 = vsel %vm599, %v861, %v863
    %v873 = vsel %vm599, %v863, 0.0
    %v874 = vsel %vm591, 0.0, %v852
    %v875 = vsel %vm592, 0.0, %v854
    %v876 = vsel %vm593, 0.0, %v856
    %v877 = vsel %vm594, 0.0, %v858
    %v878 = vsel %vm595, 0.0, %v860
    %v879 = vsel %vm596, 0.0, %v862
    %v880 = vsel %vm597, 0.0, %v864
    %v881 = vsel %vm598, 0.0, %v873
    %882 = vrot.lane.b32.xlu0 %v802, 4
    %v883 = vpop.permute.xlu0 %882
    %884 = vrot.lane.b32.xlu0 %v803, 4
    %v885 = vpop.permute.xlu0 %884
    %886 = vrot.lane.b32.xlu0 %v804, 4
    %v887 = vpop.permute.xlu0 %886
    %888 = vrot.lane.b32.xlu0 %v805, 4
    %v889 = vpop.permute.xlu0 %888
    %890 = vrot.lane.b32.xlu0 %v806, 4
    %v891 = vpop.permute.xlu0 %890
    %892 = vrot.lane.b32.xlu0 %v807, 4
    %v893 = vpop.permute.xlu0 %892
    %894 = vrot.lane.b32.xlu0 %v808, 4
    %v895 = vpop.permute.xlu0 %894
    %896 = vrot.lane.b32.xlu0 %v809, 4
    %v897 = vpop.permute.xlu0 %896
    %914 = vrot.lane.b32.xlu0 %v874, 8
    %v915 = vpop.permute.xlu0 %914
    %916 = vrot.lane.b32.xlu0 %v875, 8
    %v917 = vpop.permute.xlu0 %916
    %918 = vrot.lane.b32.xlu0 %v876, 8
    %v919 = vpop.permute.xlu0 %918
    %920 = vrot.lane.b32.xlu0 %v877, 8
    %v921 = vpop.permute.xlu0 %920
    %922 = vrot.lane.b32.xlu0 %v878, 8
    %v923 = vpop.permute.xlu0 %922
    %924 = vrot.lane.b32.xlu0 %v879, 8
    %v925 = vpop.permute.xlu0 %924
    %926 = vrot.lane.b32.xlu0 %v880, 8
    %v927 = vpop.permute.xlu0 %926
    %928 = vrot.lane.b32.xlu0 %v881, 8
    %v929 = vpop.permute.xlu0 %928
    %vm938 = vcmask 31744
    %v939 = vsel %vm938, %v842, %v883
    %v940 = vsel %vm938, %v843, %v885
    %v941 = vsel %vm938, %v844, %v887
    %v942 = vsel %vm938, %v845, %v889
    %v943 = vsel %vm938, %v846, %v891
    %v944 = vsel %vm938, %v847, %v893
    %v945 = vsel %vm938, %v848, %v895
    %v946 = vsel %vm938, %v849, %v897
    %vm947 = vcmask 64512
    %v948 = vsel %vm947, %v939, %v915
    %v949 = vsel %vm947, %v940, %v917
    %v950 = vsel %vm947, %v941, %v919
    %v951 = vsel %vm947, %v942, %v921
    %v952 = vsel %vm947, %v943, %v923
    %v953 = vsel %vm947, %v944, %v925
    %v954 = vsel %vm947, %v945, %v927
    %v955 = vsel %vm947, %v946, %v929
    %v956 = vpack.c.bf16 %v949, %v948
    %v957 = vpack.c.bf16 %v951, %v950
    %v958 = vpack.c.bf16 %v953, %v952
    %v959 = vpack.c.bf16 %v955, %v954
    %v960 = vld [vmem:[%s3] sm:$0xf]
    %v961 = vld [vmem:[%s3 + $0x4] sm:$0x3]
    %v962 = vld [vmem:[#allocation9] sm:$0x1]
    %v964 = vlaneseq
    %v965 = vshrl.u32 %v964, 7
    %v966 = vsub.s32 0, %v965
    %v967 = vrot.slane %v962, %v966
    %v971 = vunpack.c.l.b16 %v960
    %v972 = vunpack.c.l.b16 %v961
    %v973 = vpack.c.b16 %v972, %v971
    %vm974 = vcmask 97280
    %v976 = vsel %vm974, %v956, 0
    %v979 = vsel %vm974, %v957, 0
    %v982 = vsel %vm974, %v958, 0
    %v985 = vsel %vm974, %v959, 0
    %vm987 = vcmask 1045504
    %v989 = vsel %vm987, %v973, 0
    %991 = vmatprep.subr.bf16.mxu0 0
    %992 = vmatpush1.bf16.msra.mxu0 %v989
    %993 = vmatprep.subr.bf16.mxu0 0
    %994 = vmatpush1.bf16.msra.mxu0 0
    %995 = vmatprep.subr.bf16.mxu0 0
    %996 = vmatpush1.bf16.msra.mxu0 0
    %997 = vmatprep.subr.bf16.mxu0 0
    %998 = vmatpush1.bf16.msra.mxu0 0
    %999 = vmatprep.subr.bf16.mxu0 0
    %1000 = vmatpush1.bf16.msra.mxu0 0
    %1001 = vmatprep.subr.bf16.mxu0 0
    %1002 = vmatpush1.bf16.msra.mxu0 0
    %1003 = vmatprep.subr.bf16.mxu0 0
    %1004 = vmatpush1.bf16.msra.mxu0 0
    %1005 = vmatprep.subr.bf16.mxu0 0
    %1006 = vmatpush1.bf16.msra.mxu0 0
    %1007 = vmatprep.subr.bf16.mxu0 0
    %1008 = vmatpush1.bf16.msra.mxu0 0
    %1009 = vmatprep.subr.bf16.mxu0 0
    %1010 = vmatpush1.bf16.msra.mxu0 0
    %1011 = vmatprep.subr.bf16.mxu0 0
    %1012 = vmatpush1.bf16.msra.mxu0 0
    %1013 = vmatprep.subr.bf16.mxu0 0
    %1014 = vmatpush1.bf16.msra.mxu0 0
    %1015 = vmatprep.subr.bf16.mxu0 0
    %1016 = vmatpush1.bf16.msra.mxu0 0
    %1017 = vmatprep.subr.bf16.mxu0 0
    %1018 = vmatpush1.bf16.msra.mxu0 0
    %1019 = vmatprep.subr.bf16.mxu0 0
    %1020 = vmatpush1.bf16.msra.mxu0 0
    %1021 = vmatprep.subr.bf16.mxu0 0
    %1022 = vmatpush1.bf16.msra.mxu0 0
    %1023 = vmatprep.mubr.bf16.mxu0 0
    %1024 = vmatmul.mubr.bf16.gmra.mrb[0].mxu0 %v976
    %v1025 = vpop.f32.mrb[0].mxu0
    %v1026 = vadd.f32 %v967, %v1025
    %v1027 = vpop.f32.mrb[0].mxu0
    %v1028 = vpop.f32.mrb[0].mxu0
    %v1029 = vadd.f32 %v967, %v1028
    %v1030 = vpop.f32.mrb[0].mxu0
    %1031 = vmatprep.mubr.bf16.mxu0 0
    %1032 = vmatmul.mubr.bf16.gmra.mrb[0].mxu0 %v979
    %v1033 = vpop.f32.mrb[0].mxu0
    %v1034 = vadd.f32 %v967, %v1033
    %v1035 = vpop.f32.mrb[0].mxu0
    %v1036 = vpop.f32.mrb[0].mxu0
    %v1037 = vadd.f32 %v967, %v1036
    %v1038 = vpop.f32.mrb[0].mxu0
    %1039 = vmatprep.mubr.bf16.mxu0 0
    %1040 = vmatmul.mubr.bf16.gmra.mrb[0].mxu0 %v982
    %v1041 = vpop.f32.mrb[0].mxu0
    %v1042 = vadd.f32 %v967, %v1041
    %v1043 = vpop.f32.mrb[0].mxu0
    %v1044 = vpop.f32.mrb[0].mxu0
    %v1045 = vadd.f32 %v967, %v1044
    %v1046 = vpop.f32.mrb[0].mxu0
    %1047 = vmatprep.mubr.bf16.mxu0 0
    %1048 = vmatmul.mubr.bf16.gmra.mrb[0].mxu0 %v985
    %v1049 = vpop.f32.mrb[0].mxu0
    %v1050 = vadd.f32 %v967, %v1049
    %v1051 = vpop.f32.mrb[0].mxu0
    %v1052 = vpop.f32.mrb[0].mxu0
    %v1053 = vadd.f32 %v967, %v1052
    %v1054 = vpop.f32.mrb[0].mxu0
    %1055 = vdwg.mxu0
    %v1056 = vmax.f32 %v1026, 0.0
    %v1057 = vmax.f32 %v1029, 0.0
    %v1058 = vmax.f32 %v1034, 0.0
    %v1059 = vmax.f32 %v1037, 0.0
    %v1060 = vmax.f32 %v1042, 0.0
    %v1061 = vmax.f32 %v1045, 0.0
    %v1062 = vmax.f32 %v1050, 0.0
    %v1063 = vmax.f32 %v1053, 0.0
    %v1072 = vrot.slane %v1056, 7
    %v1073 = vrot.slane %v1057, 7
    %v1074 = vsel %vm558, %v1072, %v1073
    %v1075 = vrot.slane %v1058, 7
    %v1076 = vsel %vm558, %v1073, %v1075
    %v1077 = vrot.slane %v1059, 7
    %v1078 = vsel %vm558, %v1075, %v1077
    %v1079 = vrot.slane %v1060, 7
    %v1080 = vsel %vm558, %v1077, %v1079
    %v1081 = vrot.slane %v1061, 7
    %v1082 = vsel %vm558, %v1079, %v1081
    %v1083 = vrot.slane %v1062, 7
    %v1084 = vsel %vm558, %v1081, %v1083
    %v1085 = vrot.slane %v1063, 7
    %v1086 = vsel %vm558, %v1083, %v1085
    %v1095 = vsel %vm558, 0.0, %v1072
    %v1096 = vsel %vm542, 0.0, %v1095
    %v1097 = vsel %vm543, 0.0, %v1074
    %v1098 = vsel %vm544, 0.0, %v1076
    %v1099 = vsel %vm545, 0.0, %v1078
    %v1100 = vsel %vm546, 0.0, %v1080
    %v1101 = vsel %vm547, 0.0, %v1082
    %v1102 = vsel %vm548, 0.0, %v1084
    %v1103 = vsel %vm549, 0.0, %v1086
    %v1104 = vrot.slane %v1056, 1
    %v1105 = vrot.slane %v1057, 1
    %v1106 = vsel %vm599, %v1104, %v1105
    %v1107 = vrot.slane %v1058, 1
    %v1108 = vsel %vm599, %v1105, %v1107
    %v1109 = vrot.slane %v1059, 1
    %v1110 = vsel %vm599, %v1107, %v1109
    %v1111 = vrot.slane %v1060, 1
    %v1112 = vsel %vm599, %v1109, %v1111
    %v1113 = vrot.slane %v1061, 1
    %v1114 = vsel %vm599, %v1111, %v1113
    %v1115 = vrot.slane %v1062, 1
    %v1116 = vsel %vm599, %v1113, %v1115
    %v1117 = vrot.slane %v1063, 1
    %v1118 = vsel %vm599, %v1115, %v1117
    %v1127 = vsel %vm599, %v1117, 0.0
    %v1128 = vsel %vm591, 0.0, %v1106
    %v1129 = vsel %vm592, 0.0, %v1108
    %v1130 = vsel %vm593, 0.0, %v1110
    %v1131 = vsel %vm594, 0.0, %v1112
    %v1132 = vsel %vm595, 0.0, %v1114
    %v1133 = vsel %vm596, 0.0, %v1116
    %v1134 = vsel %vm597, 0.0, %v1118
    %v1135 = vsel %vm598, 0.0, %v1127
    %1136 = vrot.lane.b32.xlu0 %v1056, 8
    %v1137 = vpop.permute.xlu0 %1136
    %1138 = vrot.lane.b32.xlu0 %v1057, 8
    %v1139 = vpop.permute.xlu0 %1138
    %1140 = vrot.lane.b32.xlu0 %v1058, 8
    %v1141 = vpop.permute.xlu0 %1140
    %1142 = vrot.lane.b32.xlu0 %v1059, 8
    %v1143 = vpop.permute.xlu0 %1142
    %1144 = vrot.lane.b32.xlu0 %v1060, 8
    %v1145 = vpop.permute.xlu0 %1144
    %1146 = vrot.lane.b32.xlu0 %v1061, 8
    %v1147 = vpop.permute.xlu0 %1146
    %1148 = vrot.lane.b32.xlu0 %v1062, 8
    %v1149 = vpop.permute.xlu0 %1148
    %1150 = vrot.lane.b32.xlu0 %v1063, 8
    %v1151 = vpop.permute.xlu0 %1150
    %1168 = vrot.lane.b32.xlu0 %v1128, 16
    %v1169 = vpop.permute.xlu0 %1168
    %1170 = vrot.lane.b32.xlu0 %v1129, 16
    %v1171 = vpop.permute.xlu0 %1170
    %1172 = vrot.lane.b32.xlu0 %v1130, 16
    %v1173 = vpop.permute.xlu0 %1172
    %1174 = vrot.lane.b32.xlu0 %v1131, 16
    %v1175 = vpop.permute.xlu0 %1174
    %1176 = vrot.lane.b32.xlu0 %v1132, 16
    %v1177 = vpop.permute.xlu0 %1176
    %1178 = vrot.lane.b32.xlu0 %v1133, 16
    %v1179 = vpop.permute.xlu0 %1178
    %1180 = vrot.lane.b32.xlu0 %v1134, 16
    %v1181 = vpop.permute.xlu0 %1180
    %1182 = vrot.lane.b32.xlu0 %v1135, 16
    %v1183 = vpop.permute.xlu0 %1182
    %v1192 = vsel %vm947, %v1096, %v1137
    %v1193 = vsel %vm947, %v1097, %v1139
    %v1194 = vsel %vm947, %v1098, %v1141
    %v1195 = vsel %vm947, %v1099, %v1143
    %v1196 = vsel %vm947, %v1100, %v1145
    %v1197 = vsel %vm947, %v1101, %v1147
    %v1198 = vsel %vm947, %v1102, %v1149
    %v1199 = vsel %vm947, %v1103, %v1151
    %vm1200 = vcmask 130048
    %v1201 = vsel %vm1200, %v1192, %v1169
    %v1202 = vsel %vm1200, %v1193, %v1171
    %v1203 = vsel %vm1200, %v1194, %v1173
    %v1204 = vsel %vm1200, %v1195, %v1175
    %v1205 = vsel %vm1200, %v1196, %v1177
    %v1206 = vsel %vm1200, %v1197, %v1179
    %v1207 = vsel %vm1200, %v1198, %v1181
    %v1208 = vsel %vm1200, %v1199, %v1183
    %v1209 = vpack.c.bf16 %v1202, %v1201
    %v1210 = vpack.c.bf16 %v1204, %v1203
    %v1211 = vpack.c.bf16 %v1206, %v1205
    %v1212 = vpack.c.bf16 %v1208, %v1207
    %v1213 = vld [vmem:[%s5] sm:$0xf]
    %v1214 = vld [vmem:[%s5 + $0x4] sm:$0xf]
    %v1215 = vld [vmem:[%s5 + $0x8] sm:$0xf]
    %v1216 = vld [vmem:[#allocation10] sm:$0x1]
    %v1218 = vlaneseq
    %v1219 = vshrl.u32 %v1218, 7
    %v1220 = vsub.s32 0, %v1219
    %v1221 = vrot.slane %v1216, %v1220
    %v1226 = vunpack.c.l.b16 %v1213
    %v1227 = vunpack.c.l.b16 %v1214
    %v1228 = vunpack.c.l.b16 %v1215
    %v1229 = vpack.c.b16 %v1227, %v1226
    %v1230 = vpack.c.b16 %v1228, %v1228
    %vm1232 = vcmask 195584
    %v1234 = vsel %vm1232, %v1209, 0
    %v1237 = vsel %vm1232, %v1210, 0
    %v1240 = vsel %vm1232, %v1211, 0
    %v1243 = vsel %vm1232, %v1212, 0
    %vm1245 = vcmask 1043456
    %v1247 = vsel %vm1245, %v1230, 0
    %1249 = vmatprep.subr.bf16.mxu0 0
    %1250 = vmatpush1.bf16.msra.mxu0 %v1229
    %1251 = vmatprep.subr.bf16.mxu0 0
    %1252 = vmatpush1.bf16.msra.mxu0 %v1247
    %1253 = vmatprep.subr.bf16.mxu0 0
    %1254 = vmatpush1.bf16.msra.mxu0 0
    %1255 = vmatprep.subr.bf16.mxu0 0
    %1256 = vmatpush1.bf16.msra.mxu0 0
    %1257 = vmatprep.subr.bf16.mxu0 0
    %1258 = vmatpush1.bf16.msra.mxu0 0
    %1259 = vmatprep.subr.bf16.mxu0 0
    %1260 = vmatpush1.bf16.msra.mxu0 0
    %1261 = vmatprep.subr.bf16.mxu0 0
    %1262 = vmatpush1.bf16.msra.mxu0 0
    %1263 = vmatprep.subr.bf16.mxu0 0
    %1264 = vmatpush1.bf16.msra.mxu0 0
    %1265 = vmatprep.subr.bf16.mxu0 0
    %1266 = vmatpush1.bf16.msra.mxu0 0
    %1267 = vmatprep.subr.bf16.mxu0 0
    %1268 = vmatpush1.bf16.msra.mxu0 0
    %1269 = vmatprep.subr.bf16.mxu0 0
    %1270 = vmatpush1.bf16.msra.mxu0 0
    %1271 = vmatprep.subr.bf16.mxu0 0
    %1272 = vmatpush1.bf16.msra.mxu0 0
    %1273 = vmatprep.subr.bf16.mxu0 0
    %1274 = vmatpush1.bf16.msra.mxu0 0
    %1275 = vmatprep.subr.bf16.mxu0 0
    %1276 = vmatpush1.bf16.msra.mxu0 0
    %1277 = vmatprep.subr.bf16.mxu0 0
    %1278 = vmatpush1.bf16.msra.mxu0 0
    %1279 = vmatprep.subr.bf16.mxu0 0
    %1280 = vmatpush1.bf16.msra.mxu0 0
    %1281 = vmatprep.mubr.bf16.mxu0 0
    %1282 = vmatmul.mubr.bf16.gmra.mrb[0].mxu0 %v1234
    %v1283 = vpop.f32.mrb[0].mxu0
    %v1284 = vadd.f32 %v1221, %v1283
    %v1285 = vpop.f32.mrb[0].mxu0
    %v1286 = vpop.f32.mrb[0].mxu0
    %v1287 = vadd.f32 %v1221, %v1286
    %v1288 = vpop.f32.mrb[0].mxu0
    %1289 = vmatprep.mubr.bf16.mxu0 0
    %1290 = vmatmul.mubr.bf16.gmra.mrb[0].mxu0 %v1237
    %v1291 = vpop.f32.mrb[0].mxu0
    %v1292 = vadd.f32 %v1221, %v1291
    %v1293 = vpop.f32.mrb[0].mxu0
    %v1294 = vpop.f32.mrb[0].mxu0
    %v1295 = vadd.f32 %v1221, %v1294
    %v1296 = vpop.f32.mrb[0].mxu0
    %1297 = vmatprep.mubr.bf16.mxu0 0
    %1298 = vmatmul.mubr.bf16.gmra.mrb[0].mxu0 %v1240
    %v1299 = vpop.f32.mrb[0].mxu0
    %v1300 = vadd.f32 %v1221, %v1299
    %v1301 = vpop.f32.mrb[0].mxu0
    %v1302 = vpop.f32.mrb[0].mxu0
    %v1303 = vadd.f32 %v1221, %v1302
    %v1304 = vpop.f32.mrb[0].mxu0
    %1305 = vmatprep.mubr.bf16.mxu0 0
    %1306 = vmatmul.mubr.bf16.gmra.mrb[0].mxu0 %v1243
    %v1307 = vpop.f32.mrb[0].mxu0
    %v1308 = vadd.f32 %v1221, %v1307
    %v1309 = vpop.f32.mrb[0].mxu0
    %v1310 = vpop.f32.mrb[0].mxu0
    %v1311 = vadd.f32 %v1221, %v1310
    %v1312 = vpop.f32.mrb[0].mxu0
    %1313 = vdwg.mxu0
    %v1314 = vmax.f32 %v1284, 0.0
    %v1315 = vmax.f32 %v1287, 0.0
    %v1316 = vmax.f32 %v1292, 0.0
    %v1317 = vmax.f32 %v1295, 0.0
    %v1318 = vmax.f32 %v1300, 0.0
    %v1319 = vmax.f32 %v1303, 0.0
    %v1320 = vmax.f32 %v1308, 0.0
    %v1321 = vmax.f32 %v1311, 0.0
    %v1330 = vrot.slane %v1314, 7
    %v1331 = vrot.slane %v1315, 7
    %v1332 = vsel %vm558, %v1330, %v1331
    %v1333 = vrot.slane %v1316, 7
    %v1334 = vsel %vm558, %v1331, %v1333
    %v1335 = vrot.slane %v1317, 7
    %v1336 = vsel %vm558, %v1333, %v1335
    %v1337 = vrot.slane %v1318, 7
    %v1338 = vsel %vm558, %v1335, %v1337
    %v1339 = vrot.slane %v1319, 7
    %v1340 = vsel %vm558, %v1337, %v1339
    %v1341 = vrot.slane %v1320, 7
    %v1342 = vsel %vm558, %v1339, %v1341
    %v1343 = vrot.slane %v1321, 7
    %v1344 = vsel %vm558, %v1341, %v1343
    %v1353 = vsel %vm558, 0.0, %v1330
    %v1354 = vsel %vm542, 0.0, %v1353
    %v1355 = vsel %vm543, 0.0, %v1332
    %v1356 = vsel %vm544, 0.0, %v1334
    %v1357 = vsel %vm545, 0.0, %v1336
    %v1358 = vsel %vm546, 0.0, %v1338
    %v1359 = vsel %vm547, 0.0, %v1340
    %v1360 = vsel %vm548, 0.0, %v1342
    %v1361 = vsel %vm549, 0.0, %v1344
    %v1362 = vrot.slane %v1314, 1
    %v1363 = vrot.slane %v1315, 1
    %v1364 = vsel %vm599, %v1362, %v1363
    %v1365 = vrot.slane %v1316, 1
    %v1366 = vsel %vm599, %v1363, %v1365
    %v1367 = vrot.slane %v1317, 1
    %v1368 = vsel %vm599, %v1365, %v1367
    %v1369 = vrot.slane %v1318, 1
    %v1370 = vsel %vm599, %v1367, %v1369
    %v1371 = vrot.slane %v1319, 1
    %v1372 = vsel %vm599, %v1369, %v1371
    %v1373 = vrot.slane %v1320, 1
    %v1374 = vsel %vm599, %v1371, %v1373
    %v1375 = vrot.slane %v1321, 1
    %v1376 = vsel %vm599, %v1373, %v1375
    %v1385 = vsel %vm599, %v1375, 0.0
    %v1386 = vsel %vm591, 0.0, %v1364
    %v1387 = vsel %vm592, 0.0, %v1366
    %v1388 = vsel %vm593, 0.0, %v1368
    %v1389 = vsel %vm594, 0.0, %v1370
    %v1390 = vsel %vm595, 0.0, %v1372
    %v1391 = vsel %vm596, 0.0, %v1374
    %v1392 = vsel %vm597, 0.0, %v1376
    %v1393 = vsel %vm598, 0.0, %v1385
    %1394 = vrot.lane.b32.xlu0 %v1314, 16
    %v1395 = vpop.permute.xlu0 %1394
    %1396 = vrot.lane.b32.xlu0 %v1315, 16
    %v1397 = vpop.permute.xlu0 %1396
    %1398 = vrot.lane.b32.xlu0 %v1316, 16
    %v1399 = vpop.permute.xlu0 %1398
    %1400 = vrot.lane.b32.xlu0 %v1317, 16
    %v1401 = vpop.permute.xlu0 %1400
    %1402 = vrot.lane.b32.xlu0 %v1318, 16
    %v1403 = vpop.permute.xlu0 %1402
    %1404 = vrot.lane.b32.xlu0 %v1319, 16
    %v1405 = vpop.permute.xlu0 %1404
    %1406 = vrot.lane.b32.xlu0 %v1320, 16
    %v1407 = vpop.permute.xlu0 %1406
    %1408 = vrot.lane.b32.xlu0 %v1321, 16
    %v1409 = vpop.permute.xlu0 %1408
    %1426 = vrot.lane.b32.xlu0 %v1386, 32
    %v1427 = vpop.permute.xlu0 %1426
    %1428 = vrot.lane.b32.xlu0 %v1387, 32
    %v1429 = vpop.permute.xlu0 %1428
    %1430 = vrot.lane.b32.xlu0 %v1388, 32
    %v1431 = vpop.permute.xlu0 %1430
    %1432 = vrot.lane.b32.xlu0 %v1389, 32
    %v1433 = vpop.permute.xlu0 %1432
    %1434 = vrot.lane.b32.xlu0 %v1390, 32
    %v1435 = vpop.permute.xlu0 %1434
    %1436 = vrot.lane.b32.xlu0 %v1391, 32
    %v1437 = vpop.permute.xlu0 %1436
    %1438 = vrot.lane.b32.xlu0 %v1392, 32
    %v1439 = vpop.permute.xlu0 %1438
    %1440 = vrot.lane.b32.xlu0 %v1393, 32
    %v1441 = vpop.permute.xlu0 %1440
    %v1450 = vsel %vm1200, %v1354, %v1395
    %v1451 = vsel %vm1200, %v1355, %v1397
    %v1452 = vsel %vm1200, %v1356, %v1399
    %v1453 = vsel %vm1200, %v1357, %v1401
    %v1454 = vsel %vm1200, %v1358, %v1403
    %v1455 = vsel %vm1200, %v1359, %v1405
    %v1456 = vsel %vm1200, %v1360, %v1407
    %v1457 = vsel %vm1200, %v1361, %v1409
    %vm1458 = vcmask 261120
    %v1459 = vsel %vm1458, %v1450, %v1427
    %v1460 = vsel %vm1458, %v1451, %v1429
    %v1461 = vsel %vm1458, %v1452, %v1431
    %v1462 = vsel %vm1458, %v1453, %v1433
    %v1463 = vsel %vm1458, %v1454, %v1435
    %v1464 = vsel %vm1458, %v1455, %v1437
    %v1465 = vsel %vm1458, %v1456, %v1439
    %v1466 = vsel %vm1458, %v1457, %v1441
    %v1467 = vpack.c.bf16 %v1460, %v1459
    %v1468 = vpack.c.bf16 %v1462, %v1461
    %v1469 = vpack.c.bf16 %v1464, %v1463
    %v1470 = vpack.c.bf16 %v1466, %v1465
    %v1471 = vld [vmem:[#allocation12] sm:$0xf]
    %v1472 = vld [vmem:[#allocation12 + $0x4] sm:$0xf]
    %v1473 = vld [vmem:[#allocation12 + $0x8] sm:$0xf]
    %v1474 = vld [vmem:[#allocation12 + $0xc] sm:$0xf]
    %v1475 = vld [vmem:[#allocation12 + $0x10] sm:$0xf]
    %v1476 = vld [vmem:[#allocation12 + $0x14] sm:$0xf]
    %v1477 = vld [vmem:[#allocation13] sm:$0x1]
    %v1479 = vlaneseq
    %v1480 = vshrl.u32 %v1479, 7
    %v1481 = vsub.s32 0, %v1480
    %v1482 = vrot.slane %v1477, %v1481
    %v1490 = vunpack.c.l.b16 %v1471
    %v1491 = vunpack.c.l.b16 %v1472
    %v1492 = vunpack.c.l.b16 %v1473
    %v1493 = vunpack.c.l.b16 %v1474
    %v1494 = vunpack.c.l.b16 %v1475
    %v1495 = vunpack.c.l.b16 %v1476
    %v1496 = vpack.c.b16 %v1491, %v1490
    %v1497 = vpack.c.b16 %v1493, %v1492
    %v1498 = vpack.c.b16 %v1495, %v1494
    %vm1502 = vcmask 392192
    %v1504 = vsel %vm1502, %v1467, 0
    %v1507 = vsel %vm1502, %v1468, 0
    %v1510 = vsel %vm1502, %v1469, 0
    %v1513 = vsel %vm1502, %v1470, 0
    %1515 = vmatprep.subr.bf16.mxu0 0
    %1516 = vmatpush1.bf16.msra.mxu0 %v1496
    %1517 = vmatprep.subr.bf16.mxu0 0
    %1518 = vmatpush1.bf16.msra.mxu0 %v1497
    %1519 = vmatprep.subr.bf16.mxu0 0
    %1520 = vmatpush1.bf16.msra.mxu0 %v1498
    %1521 = vmatprep.subr.bf16.mxu0 0
    %1522 = vmatpush1.bf16.msra.mxu0 0
    %1523 = vmatprep.subr.bf16.mxu0 0
    %1524 = vmatpush1.bf16.msra.mxu0 0
    %1525 = vmatprep.subr.bf16.mxu0 0
    %1526 = vmatpush1.bf16.msra.mxu0 0
    %1527 = vmatprep.subr.bf16.mxu0 0
    %1528 = vmatpush1.bf16.msra.mxu0 0
    %1529 = vmatprep.subr.bf16.mxu0 0
    %1530 = vmatpush1.bf16.msra.mxu0 0
    %1531 = vmatprep.subr.bf16.mxu0 0
    %1532 = vmatpush1.bf16.msra.mxu0 0
    %1533 = vmatprep.subr.bf16.mxu0 0
    %1534 = vmatpush1.bf16.msra.mxu0 0
    %1535 = vmatprep.subr.bf16.mxu0 0
    %1536 = vmatpush1.bf16.msra.mxu0 0
    %1537 = vmatprep.subr.bf16.mxu0 0
    %1538 = vmatpush1.bf16.msra.mxu0 0
    %1539 = vmatprep.subr.bf16.mxu0 0
    %1540 = vmatpush1.bf16.msra.mxu0 0
    %1541 = vmatprep.subr.bf16.mxu0 0
    %1542 = vmatpush1.bf16.msra.mxu0 0
    %1543 = vmatprep.subr.bf16.mxu0 0
    %1544 = vmatpush1.bf16.msra.mxu0 0
    %1545 = vmatprep.subr.bf16.mxu0 0
    %1546 = vmatpush1.bf16.msra.mxu0 0
    %1547 = vmatprep.mubr.bf16.mxu0 0
    %1548 = vmatmul.mubr.bf16.gmra.mrb[0].mxu0 %v1504
    %v1549 = vpop.f32.mrb[0].mxu0
    %v1550 = vadd.f32 %v1482, %v1549
    %v1551 = vpop.f32.mrb[0].mxu0
    %v1552 = vpop.f32.mrb[0].mxu0
    %v1553 = vadd.f32 %v1482, %v1552
    %v1554 = vpop.f32.mrb[0].mxu0
    %1555 = vmatprep.mubr.bf16.mxu0 0
    %1556 = vmatmul.mubr.bf16.gmra.mrb[0].mxu0 %v1507
    %v1557 = vpop.f32.mrb[0].mxu0
    %v1558 = vadd.f32 %v1482, %v1557
    %v1559 = vpop.f32.mrb[0].mxu0
    %v1560 = vpop.f32.mrb[0].mxu0
    %v1561 = vadd.f32 %v1482, %v1560
    %v1562 = vpop.f32.mrb[0].mxu0
    %1563 = vmatprep.mubr.bf16.mxu0 0
    %1564 = vmatmul.mubr.bf16.gmra.mrb[0].mxu0 %v1510
    %v1565 = vpop.f32.mrb[0].mxu0
    %v1566 = vadd.f32 %v1482, %v1565
    %v1567 = vpop.f32.mrb[0].mxu0
    %v1568 = vpop.f32.mrb[0].mxu0
    %v1569 = vadd.f32 %v1482, %v1568
    %v1570 = vpop.f32.mrb[0].mxu0
    %1571 = vmatprep.mubr.bf16.mxu0 0
    %1572 = vmatmul.mubr.bf16.gmra.mrb[0].mxu0 %v1513
    %v1573 = vpop.f32.mrb[0].mxu0
    %v1574 = vadd.f32 %v1482, %v1573
    %v1575 = vpop.f32.mrb[0].mxu0
    %v1576 = vpop.f32.mrb[0].mxu0
    %v1577 = vadd.f32 %v1482, %v1576
    %v1578 = vpop.f32.mrb[0].mxu0
    %1579 = vdwg.mxu0
    %v1580 = vmax.f32 %v1550, 0.0
    %v1581 = vmax.f32 %v1553, 0.0
    %v1582 = vmax.f32 %v1558, 0.0
    %v1583 = vmax.f32 %v1561, 0.0
    %v1584 = vmax.f32 %v1566, 0.0
    %v1585 = vmax.f32 %v1569, 0.0
    %v1586 = vmax.f32 %v1574, 0.0
    %v1587 = vmax.f32 %v1577, 0.0
    %v1588 = vld [vmem:[%s9] sm:$0xff]
    %v1589 = vld [vmem:[%s9 + $0x8] sm:$0xff]
    %v1590 = vld [vmem:[%s9 + $0x10] sm:$0xff]
    %v1591 = vld [vmem:[%s9 + $0x18] sm:$0xff]
    %v1592 = vld [vmem:[%s10] sm:$0xff]
    %v1593 = vld [vmem:[%s10 + $0x8] sm:$0xff]
    %v1594 = vld [vmem:[%s10 + $0x10] sm:$0xff]
    %v1595 = vld [vmem:[%s10 + $0x18] sm:$0xff]
    %vm1596 = vcmask 523264
    %v1598 = vsel %vm1596, %v1588, 0
    %v1601 = vsel %vm1596, %v1589, 0
    %v1604 = vsel %vm1596, %v1590, 0
    %v1607 = vsel %vm1596, %v1591, 0
    %1609 = vmatprep.subr.mxu0 0.0
    %1610 = vmatpush1.msra.mxu0 %v1580
    %1611 = vmatprep.subr.mxu0 0.0
    %1612 = vmatpush1.msra.mxu0 %v1581
    %1613 = vmatprep.subr.mxu0 0.0
    %1614 = vmatpush1.msra.mxu0 %v1582
    %1615 = vmatprep.subr.mxu0 0.0
    %1616 = vmatpush1.msra.mxu0 %v1583
    %1617 = vmatprep.subr.mxu0 0.0
    %1618 = vmatpush1.msra.mxu0 %v1584
    %1619 = vmatprep.subr.mxu0 0.0
    %1620 = vmatpush1.msra.mxu0 %v1585
    %1621 = vmatprep.subr.mxu0 0.0
    %1622 = vmatpush1.msra.mxu0 %v1586
    %1623 = vmatprep.subr.mxu0 0.0
    %1624 = vmatpush1.msra.mxu0 %v1587
    %1625 = vmatprep.subr.mxu0 0.0
    %1626 = vmatpush1.msra.mxu0 0.0
    %1627 = vmatprep.subr.mxu0 0.0
    %1628 = vmatpush1.msra.mxu0 0.0
    %1629 = vmatprep.subr.mxu0 0.0
    %1630 = vmatpush1.msra.mxu0 0.0
    %1631 = vmatprep.subr.mxu0 0.0
    %1632 = vmatpush1.msra.mxu0 0.0
    %1633 = vmatprep.subr.mxu0 0.0
    %1634 = vmatpush1.msra.mxu0 0.0
    %1635 = vmatprep.subr.mxu0 0.0
    %1636 = vmatpush1.msra.mxu0 0.0
    %1637 = vmatprep.subr.mxu0 0.0
    %1638 = vmatpush1.msra.mxu0 0.0
    %1639 = vmatprep.subr.mxu0 0.0
    %1640 = vmatpush1.msra.mxu0 0.0
    %1641 = vmatprep.subr.mxu0 0.0
    %1642 = vmatpush1.msra.mxu0 0.0
    %1643 = vmatprep.subr.mxu0 0.0
    %1644 = vmatpush1.msra.mxu0 0.0
    %1645 = vmatprep.subr.mxu0 0.0
    %1646 = vmatpush1.msra.mxu0 0.0
    %1647 = vmatprep.subr.mxu0 0.0
    %1648 = vmatpush1.msra.mxu0 0.0
    %1649 = vmatprep.subr.mxu0 0.0
    %1650 = vmatpush1.msra.mxu0 0.0
    %1651 = vmatprep.subr.mxu0 0.0
    %1652 = vmatpush1.msra.mxu0 0.0
    %1653 = vmatprep.subr.mxu0 0.0
    %1654 = vmatpush1.msra.mxu0 0.0
    %1655 = vmatprep.subr.mxu0 0.0
    %1656 = vmatpush1.msra.mxu0 0.0
    %1657 = vmatprep.subr.mxu0 0.0
    %1658 = vmatpush1.msra.mxu0 0.0
    %1659 = vmatprep.subr.mxu0 0.0
    %1660 = vmatpush1.msra.mxu0 0.0
    %1661 = vmatprep.subr.mxu0 0.0
    %1662 = vmatpush1.msra.mxu0 0.0
    %1663 = vmatprep.subr.mxu0 0.0
    %1664 = vmatpush1.msra.mxu0 0.0
    %1665 = vmatprep.subr.mxu0 0.0
    %1666 = vmatpush1.msra.mxu0 0.0
    %1667 = vmatprep.subr.mxu0 0.0
    %1668 = vmatpush1.msra.mxu0 0.0
    %1669 = vmatprep.subr.mxu0 0.0
    %1670 = vmatpush1.msra.mxu0 0.0
    %1671 = vmatprep.subr.mxu0 0.0
    %1672 = vmatpush1.msra.mxu0 0.0
    %1673 = vmatprep.mubr.f32.mxu0 0.0
    %1674 = vmatmul.mubr.f32.gmra.mrb[0].mxu0 %v1598
    %v1675 = vpop.f32.mrb[0].mxu0
    %v1676 = vadd.f32 %v1592, %v1675
    %v1677 = vpop.f32.mrb[0].mxu0
    %1678 = vmatprep.mubr.f32.mxu0 0.0
    %1679 = vmatmul.mubr.f32.gmra.mrb[0].mxu0 %v1601
    %v1680 = vpop.f32.mrb[0].mxu0
    %v1681 = vadd.f32 %v1593, %v1680
    %v1682 = vpop.f32.mrb[0].mxu0
    %1683 = vmatprep.mubr.f32.mxu0 0.0
    %1684 = vmatmul.mubr.f32.gmra.mrb[0].mxu0 %v1604
    %v1685 = vpop.f32.mrb[0].mxu0
    %v1686 = vadd.f32 %v1594, %v1685
    %v1687 = vpop.f32.mrb[0].mxu0
    %1688 = vmatprep.mubr.f32.mxu0 0.0
    %1689 = vmatmul.mubr.f32.gmra.mrb[0].mxu0 %v1607
    %v1690 = vpop.f32.mrb[0].mxu0
    %v1691 = vadd.f32 %v1595, %v1690
    %v1692 = vpop.f32.mrb[0].mxu0
    %1693 = vdwg.mxu0
    %v1694 = vpack.c.bf16 %v1681, %v1676
    %v1695 = vpack.c.bf16 %v1691, %v1686
    %v1696 = vld [vmem:[%s11] sm:$0xf]
    %v1697 = vld [vmem:[%s11 + $0x4] sm:$0xf]
    %v1698 = vld [vmem:[%s11 + $0x8] sm:$0xf]
    %v1699 = vld [vmem:[%s11 + $0xc] sm:$0xf]
    %v1700 = vld [vmem:[%s11 + $0x10] sm:$0xf]
    %v1701 = vld [vmem:[%s11 + $0x14] sm:$0xf]
    %v1702 = vld [vmem:[%s11 + $0x18] sm:$0xf]
    %v1703 = vld [vmem:[%s11 + $0x1c] sm:$0xf]
    %v1704 = vld [vmem:[#allocation15] sm:$0x1]
    %v1706 = vlaneseq
    %v1707 = vshrl.u32 %v1706, 7
    %v1708 = vsub.s32 0, %v1707
    %v1709 = vrot.slane %v1704, %v1708
    %v1719 = vunpack.c.l.b16 %v1696
    %v1720 = vunpack.c.l.b16 %v1697
    %v1721 = vunpack.c.l.b16 %v1698
    %v1722 = vunpack.c.l.b16 %v1699
    %v1723 = vunpack.c.l.b16 %v1700
    %v1724 = vunpack.c.l.b16 %v1701
    %v1725 = vunpack.c.l.b16 %v1702
    %v1726 = vunpack.c.l.b16 %v1703
    %v1727 = vpack.c.b16 %v1720, %v1719
    %v1728 = vpack.c.b16 %v1722, %v1721
    %v1729 = vpack.c.b16 %v1724, %v1723
    %v1730 = vpack.c.b16 %v1726, %v1725
    %v1736 = vsel %vm1596, %v1694, 0
    %v1739 = vsel %vm1596, %v1695, 0
    %1741 = vmatprep.subr.bf16.mxu0 0
    %1742 = vmatpush1.bf16.msra.mxu0 %v1727
    %1743 = vmatprep.subr.bf16.mxu0 0
    %1744 = vmatpush1.bf16.msra.mxu0 %v1728
    %1745 = vmatprep.subr.bf16.mxu0 0
    %1746 = vmatpush1.bf16.msra.mxu0 %v1729
    %1747 = vmatprep.subr.bf16.mxu0 0
    %1748 = vmatpush1.bf16.msra.mxu0 %v1730
    %1749 = vmatprep.subr.bf16.mxu0 0
    %1750 = vmatpush1.bf16.msra.mxu0 0
    %1751 = vmatprep.subr.bf16.mxu0 0
    %1752 = vmatpush1.bf16.msra.mxu0 0
    %1753 = vmatprep.subr.bf16.mxu0 0
    %1754 = vmatpush1.bf16.msra.mxu0 0
    %1755 = vmatprep.subr.bf16.mxu0 0
    %1756 = vmatpush1.bf16.msra.mxu0 0
    %1757 = vmatprep.subr.bf16.mxu0 0
    %1758 = vmatpush1.bf16.msra.mxu0 0
    %1759 = vmatprep.subr.bf16.mxu0 0
    %1760 = vmatpush1.bf16.msra.mxu0 0
    %1761 = vmatprep.subr.bf16.mxu0 0
    %1762 = vmatpush1.bf16.msra.mxu0 0
    %1763 = vmatprep.subr.bf16.mxu0 0
    %1764 = vmatpush1.bf16.msra.mxu0 0
    %1765 = vmatprep.subr.bf16.mxu0 0
    %1766 = vmatpush1.bf16.msra.mxu0 0
    %1767 = vmatprep.subr.bf16.mxu0 0
    %1768 = vmatpush1.bf16.msra.mxu0 0
    %1769 = vmatprep.subr.bf16.mxu0 0
    %1770 = vmatpush1.bf16.msra.mxu0 0
    %1771 = vmatprep.subr.bf16.mxu0 0
    %1772 = vmatpush1.bf16.msra.mxu0 0
    %1773 = vmatprep.mubr.bf16.mxu0 0
    %1774 = vmatmul.mubr.bf16.gmra.mrb[0].mxu0 %v1736
    %v1775 = vpop.f32.mrb[0].mxu0
    %v1776 = vadd.f32 %v1709, %v1775
    %v1777 = vpop.f32.mrb[0].mxu0
    %v1778 = vpop.f32.mrb[0].mxu0
    %v1779 = vadd.f32 %v1709, %v1778
    %v1780 = vpop.f32.mrb[0].mxu0
    %1781 = vmatprep.mubr.bf16.mxu0 0
    %1782 = vmatmul.mubr.bf16.gmra.mrb[0].mxu0 %v1739
    %v1783 = vpop.f32.mrb[0].mxu0
    %v1784 = vadd.f32 %v1709, %v1783
    %v1785 = vpop.f32.mrb[0].mxu0
    %v1786 = vpop.f32.mrb[0].mxu0
    %v1787 = vadd.f32 %v1709, %v1786
    %v1788 = vpop.f32.mrb[0].mxu0
    %1789 = vdwg.mxu0
    %v1790 = vld [vmem:[%s13] sm:$0xf]
    %v1791 = vld [vmem:[%s13 + $0x4] sm:$0xf]
    %v1792 = vld [vmem:[%s13 + $0x8] sm:$0xf]
    %v1793 = vld [vmem:[%s13 + $0xc] sm:$0xf]
    %v1794 = vld [vmem:[%s13 + $0x10] sm:$0xf]
    %v1795 = vld [vmem:[%s13 + $0x14] sm:$0xf]
    %v1796 = vld [vmem:[%s13 + $0x18] sm:$0xf]
    %v1797 = vld [vmem:[%s13 + $0x1c] sm:$0xf]
    %v1798 = vld [vmem:[#allocation16] sm:$0x1]
    %v1800 = vlaneseq
    %v1801 = vshrl.u32 %v1800, 7
    %v1802 = vsub.s32 0, %v1801
    %v1803 = vrot.slane %v1798, %v1802
    %v1813 = vunpack.c.l.b16 %v1790
    %v1814 = vunpack.c.l.b16 %v1791
    %v1815 = vunpack.c.l.b16 %v1792
    %v1816 = vunpack.c.l.b16 %v1793
    %v1817 = vunpack.c.l.b16 %v1794
    %v1818 = vunpack.c.l.b16 %v1795
    %v1819 = vunpack.c.l.b16 %v1796
    %v1820 = vunpack.c.l.b16 %v1797
    %v1821 = vpack.c.b16 %v1814, %v1813
    %v1822 = vpack.c.b16 %v1816, %v1815
    %v1823 = vpack.c.b16 %v1818, %v1817
    %v1824 = vpack.c.b16 %v1820, %v1819
    %1829 = vmatprep.subr.bf16.mxu0 0
    %1830 = vmatpush1.bf16.msra.mxu0 %v1821
    %1831 = vmatprep.subr.bf16.mxu0 0
    %1832 = vmatpush1.bf16.msra.mxu0 %v1822
    %1833 = vmatprep.subr.bf16.mxu0 0
    %1834 = vmatpush1.bf16.msra.mxu0 %v1823
    %1835 = vmatprep.subr.bf16.mxu0 0
    %1836 = vmatpush1.bf16.msra.mxu0 %v1824
    %1837 = vmatprep.subr.bf16.mxu0 0
    %1838 = vmatpush1.bf16.msra.mxu0 0
    %1839 = vmatprep.subr.bf16.mxu0 0
    %1840 = vmatpush1.bf16.msra.mxu0 0
    %1841 = vmatprep.subr.bf16.mxu0 0
    %1842 = vmatpush1.bf16.msra.mxu0 0
    %1843 = vmatprep.subr.bf16.mxu0 0
    %1844 = vmatpush1.bf16.msra.mxu0 0
    %1845 = vmatprep.subr.bf16.mxu0 0
    %1846 = vmatpush1.bf16.msra.mxu0 0
    %1847 = vmatprep.subr.bf16.mxu0 0
    %1848 = vmatpush1.bf16.msra.mxu0 0
    %1849 = vmatprep.subr.bf16.mxu0 0
    %1850 = vmatpush1.bf16.msra.mxu0 0
    %1851 = vmatprep.subr.bf16.mxu0 0
    %1852 = vmatpush1.bf16.msra.mxu0 0
    %1853 = vmatprep.subr.bf16.mxu0 0
    %1854 = vmatpush1.bf16.msra.mxu0 0
    %1855 = vmatprep.subr.bf16.mxu0 0
    %1856 = vmatpush1.bf16.msra.mxu0 0
    %1857 = vmatprep.subr.bf16.mxu0 0
    %1858 = vmatpush1.bf16.msra.mxu0 0
    %1859 = vmatprep.subr.bf16.mxu0 0
    %1860 = vmatpush1.bf16.msra.mxu0 0
    %1861 = vmatprep.mubr.bf16.mxu0 0
    %1862 = vmatmul.mubr.bf16.gmra.mrb[0].mxu0 %v1736
    %v1863 = vpop.f32.mrb[0].mxu0
    %v1864 = vadd.f32 %v1803, %v1863
    %v1865 = vpop.f32.mrb[0].mxu0
    %v1866 = vpop.f32.mrb[0].mxu0
    %v1867 = vadd.f32 %v1803, %v1866
    %v1868 = vpop.f32.mrb[0].mxu0
    %1869 = vmatprep.mubr.bf16.mxu0 0
    %1870 = vmatmul.mubr.bf16.gmra.mrb[0].mxu0 %v1739
    %v1871 = vpop.f32.mrb[0].mxu0
    %v1872 = vadd.f32 %v1803, %v1871
    %v1873 = vpop.f32.mrb[0].mxu0
    %v1874 = vpop.f32.mrb[0].mxu0
    %v1875 = vadd.f32 %v1803, %v1874
    %v1876 = vpop.f32.mrb[0].mxu0
    %1877 = vdwg.mxu0
    %v1878 = vld [vmem:[%s15] sm:$0xf]
    %v1879 = vld [vmem:[%s15 + $0x4] sm:$0xf]
    %v1880 = vld [vmem:[%s15 + $0x8] sm:$0xf]
    %v1881 = vld [vmem:[%s15 + $0xc] sm:$0xf]
    %v1882 = vld [vmem:[%s15 + $0x10] sm:$0xf]
    %v1883 = vld [vmem:[%s15 + $0x14] sm:$0xf]
    %v1884 = vld [vmem:[%s15 + $0x18] sm:$0xf]
    %v1885 = vld [vmem:[%s15 + $0x1c] sm:$0xf]
    %v1886 = vld [vmem:[#allocation18] sm:$0x1]
    %v1888 = vlaneseq
    %v1889 = vshrl.u32 %v1888, 7
    %v1890 = vsub.s32 0, %v1889
    %v1891 = vrot.slane %v1886, %v1890
    %v1901 = vunpack.c.l.b16 %v1878
    %v1902 = vunpack.c.l.b16 %v1879
    %v1903 = vunpack.c.l.b16 %v1880
    %v1904 = vunpack.c.l.b16 %v1881
    %v1905 = vunpack.c.l.b16 %v1882
    %v1906 = vunpack.c.l.b16 %v1883
    %v1907 = vunpack.c.l.b16 %v1884
    %v1908 = vunpack.c.l.b16 %v1885
    %v1909 = vpack.c.b16 %v1902, %v1901
    %v1910 = vpack.c.b16 %v1904, %v1903
    %v1911 = vpack.c.b16 %v1906, %v1905
    %v1912 = vpack.c.b16 %v1908, %v1907
    %1917 = vmatprep.subr.bf16.mxu0 0
    %1918 = vmatpush1.bf16.msra.mxu0 %v1909
    %1919 = vmatprep.subr.bf16.mxu0 0
    %1920 = vmatpush1.bf16.msra.mxu0 %v1910
    %1921 = vmatprep.subr.bf16.mxu0 0
    %1922 = vmatpush1.bf16.msra.mxu0 %v1911
    %1923 = vmatprep.subr.bf16.mxu0 0
    %1924 = vmatpush1.bf16.msra.mxu0 %v1912
    %1925 = vmatprep.subr.bf16.mxu0 0
    %1926 = vmatpush1.bf16.msra.mxu0 0
    %1927 = vmatprep.subr.bf16.mxu0 0
    %1928 = vmatpush1.bf16.msra.mxu0 0
    %1929 = vmatprep.subr.bf16.mxu0 0
    %1930 = vmatpush1.bf16.msra.mxu0 0
    %1931 = vmatprep.subr.bf16.mxu0 0
    %1932 = vmatpush1.bf16.msra.mxu0 0
    %1933 = vmatprep.subr.bf16.mxu0 0
    %1934 = vmatpush1.bf16.msra.mxu0 0
    %1935 = vmatprep.subr.bf16.mxu0 0
    %1936 = vmatpush1.bf16.msra.mxu0 0
    %1937 = vmatprep.subr.bf16.mxu0 0
    %1938 = vmatpush1.bf16.msra.mxu0 0
    %1939 = vmatprep.subr.bf16.mxu0 0
    %1940 = vmatpush1.bf16.msra.mxu0 0
    %1941 = vmatprep.subr.bf16.mxu0 0
    %1942 = vmatpush1.bf16.msra.mxu0 0
    %1943 = vmatprep.subr.bf16.mxu0 0
    %1944 = vmatpush1.bf16.msra.mxu0 0
    %1945 = vmatprep.subr.bf16.mxu0 0
    %1946 = vmatpush1.bf16.msra.mxu0 0
    %1947 = vmatprep.subr.bf16.mxu0 0
    %1948 = vmatpush1.bf16.msra.mxu0 0
    %1949 = vmatprep.mubr.bf16.mxu0 0
    %1950 = vmatmul.mubr.bf16.gmra.mrb[0].mxu0 %v1736
    %v1951 = vpop.f32.mrb[0].mxu0
    %v1952 = vadd.f32 %v1891, %v1951
    %v1953 = vpop.f32.mrb[0].mxu0
    %v1954 = vpop.f32.mrb[0].mxu0
    %v1955 = vadd.f32 %v1891, %v1954
    %v1956 = vpop.f32.mrb[0].mxu0
    %1957 = vmatprep.mubr.bf16.mxu0 0
    %1958 = vmatmul.mubr.bf16.gmra.mrb[0].mxu0 %v1739
    %v1959 = vpop.f32.mrb[0].mxu0
    %v1960 = vadd.f32 %v1891, %v1959
    %v1961 = vpop.f32.mrb[0].mxu0
    %v1962 = vpop.f32.mrb[0].mxu0
    %v1963 = vadd.f32 %v1891, %v1962
    %v1964 = vpop.f32.mrb[0].mxu0
    %1965 = vdwg.mxu0
    %v1966 = vpack.c.bf16 %v1779, %v1776
    %v1967 = vpack.c.bf16 %v1867, %v1864
    %v1968 = vpack.c.bf16 %v1955, %v1952
    %v1970 = vsel %vm1596, %v1966, 0
    %v1973 = vsel %vm1596, %v1967, 0
    %1975 = vmatprep.subr.bf16.mxu0 0
    %1976 = vmatpush1.bf16.xpose.msra.mxu0 %v1973
    %1977 = vmatprep.subr.bf16.mxu0 0
    %1978 = vmatpush1.bf16.xpose.msra.mxu0 0
    %1979 = vmatprep.subr.bf16.mxu0 0
    %1980 = vmatpush1.bf16.xpose.msra.mxu0 0
    %1981 = vmatprep.subr.bf16.mxu0 0
    %1982 = vmatpush1.bf16.xpose.msra.mxu0 0
    %1983 = vmatprep.subr.bf16.mxu0 0
    %1984 = vmatpush1.bf16.xpose.msra.mxu0 0
    %1985 = vmatprep.subr.bf16.mxu0 0
    %1986 = vmatpush1.bf16.xpose.msra.mxu0 0
    %1987 = vmatprep.subr.bf16.mxu0 0
    %1988 = vmatpush1.bf16.xpose.msra.mxu0 0
    %1989 = vmatprep.subr.bf16.mxu0 0
    %1990 = vmatpush1.bf16.xpose.msra.mxu0 0
    %1991 = vmatprep.subr.bf16.mxu0 0
    %1992 = vmatpush1.bf16.xpose.msra.mxu0 0
    %1993 = vmatprep.subr.bf16.mxu0 0
    %1994 = vmatpush1.bf16.xpose.msra.mxu0 0
    %1995 = vmatprep.subr.bf16.mxu0 0
    %1996 = vmatpush1.bf16.xpose.msra.mxu0 0
    %1997 = vmatprep.subr.bf16.mxu0 0
    %1998 = vmatpush1.bf16.xpose.msra.mxu0 0
    %1999 = vmatprep.subr.bf16.mxu0 0
    %2000 = vmatpush1.bf16.xpose.msra.mxu0 0
    %2001 = vmatprep.subr.bf16.mxu0 0
    %2002 = vmatpush1.bf16.xpose.msra.mxu0 0
    %2003 = vmatprep.subr.bf16.mxu0 0
    %2004 = vmatpush1.bf16.xpose.msra.mxu0 0
    %2005 = vmatprep.subr.bf16.mxu0 0
    %2006 = vmatpush1.bf16.xpose.msra.mxu0 0
    %2007 = vmatprep.mubr.bf16.mxu0 0
    %2008 = vmatmul.mubr.bf16.gmra.mrb[0].mxu0 %v1970
    %v2009 = vpop.f32.mrb[0].mxu0
    %v2010 = vadd.f32 0.0, %v2009
    %v2011 = vpop.f32.mrb[0].mxu0
    %v2012 = vpop.f32.mrb[0].mxu0
    %v2013 = vadd.f32 0.0, %v2012
    %v2014 = vpop.f32.mrb[0].mxu0
    %2015 = vdwg.mxu0
    %v2016 = vsel %vm1200, %v2010, -inf
    %2017 = vmax.xlane.f32.xlu0 %v2016
    %v2018 = vpop.xlane.xlu0 %2017
    %v2019 = vsel %vm1200, %v2013, -inf
    %2020 = vmax.xlane.f32.xlu0 %v2019
    %v2021 = vpop.xlane.xlu0 %2020
    %v2022 = vsub.f32 %v2010, %v2018
    %v2023 = vsub.f32 %v2013, %v2021
    %v2024 = vmul.f32 %v2022, 1.442695
    %v2025 = vpow.pop %v2024
    %v2026 = vmul.f32 %v2023, 1.442695
    %v2027 = vpow.pop %v2026
    %v2028 = vsel %vm1200, %v2025, 0.0
    %2029 = vadd.xlane.f32.xlu0 %v2028
    %v2030 = vpop.xlane.xlu0 %2029
    %v2031 = vsel %vm1200, %v2027, 0.0
    %2032 = vadd.xlane.f32.xlu0 %v2031
    %v2033 = vpop.xlane.xlu0 %2032
    %v2034 = vrcp.pop %v2030
    %v2035 = vrcp.pop %v2033
    %v2036 = vmul.f32 %v2025, %v2034
    %v2037 = vmul.f32 %v2027, %v2035
    %v2038 = vpack.c.bf16 %v2037, %v2036
    %v2040 = vsel %vm1200, %v2038, 0
    %2042 = vmatprep.subr.bf16.mxu0 0
    %2043 = vmatpush1.bf16.msra.mxu0 %v1968
    %2044 = vmatprep.subr.bf16.mxu0 0
    %2045 = vmatpush1.bf16.msra.mxu0 0
    %2046 = vmatprep.subr.bf16.mxu0 0
    %2047 = vmatpush1.bf16.msra.mxu0 0
    %2048 = vmatprep.subr.bf16.mxu0 0
    %2049 = vmatpush1.bf16.msra.mxu0 0
    %2050 = vmatprep.subr.bf16.mxu0 0
    %2051 = vmatpush1.bf16.msra.mxu0 0
    %2052 = vmatprep.subr.bf16.mxu0 0
    %2053 = vmatpush1.bf16.msra.mxu0 0
    %2054 = vmatprep.subr.bf16.mxu0 0
    %2055 = vmatpush1.bf16.msra.mxu0 0
    %2056 = vmatprep.subr.bf16.mxu0 0
    %2057 = vmatpush1.bf16.msra.mxu0 0
    %2058 = vmatprep.subr.bf16.mxu0 0
    %2059 = vmatpush1.bf16.msra.mxu0 0
    %2060 = vmatprep.subr.bf16.mxu0 0
    %2061 = vmatpush1.bf16.msra.mxu0 0
    %2062 = vmatprep.subr.bf16.mxu0 0
    %2063 = vmatpush1.bf16.msra.mxu0 0
    %2064 = vmatprep.subr.bf16.mxu0 0
    %2065 = vmatpush1.bf16.msra.mxu0 0
    %2066 = vmatprep.subr.bf16.mxu0 0
    %2067 = vmatpush1.bf16.msra.mxu0 0
    %2068 = vmatprep.subr.bf16.mxu0 0
    %2069 = vmatpush1.bf16.msra.mxu0 0
    %2070 = vmatprep.subr.bf16.mxu0 0
    %2071 = vmatpush1.bf16.msra.mxu0 0
    %2072 = vmatprep.subr.bf16.mxu0 0
    %2073 = vmatpush1.bf16.msra.mxu0 0
    %2074 = vmatprep.mubr.bf16.mxu0 0
    %2075 = vmatmul.mubr.bf16.gmra.mrb[0].mxu0 %v2040
    %v2076 = vpop.f32.mrb[0].mxu0
    %v2077 = vadd.f32 0.0, %v2076
    %v2078 = vpop.f32.mrb[0].mxu0
    %v2079 = vpop.f32.mrb[0].mxu0
    %v2080 = vadd.f32 0.0, %v2079
    %v2081 = vpop.f32.mrb[0].mxu0
    %2082 = vdwg.mxu0
    %v2084 = vrot.slane %v2077, 1
    %2085 = vrot.lane.b32.xlu0 %v2084, 64
    %v2086 = vpop.permute.xlu0 %2085
    %v2088 = vrot.slane %v2077, 2
    %v2090 = vrot.slane %v2077, 3
    %2091 = vrot.lane.b32.xlu0 %v2090, 64
    %v2092 = vpop.permute.xlu0 %2091
    %v2094 = vrot.slane %v2077, 4
    %v2096 = vrot.slane %v2077, 5
    %2097 = vrot.lane.b32.xlu0 %v2096, 64
    %v2098 = vpop.permute.xlu0 %2097
    %v2100 = vrot.slane %v2077, 6
    %v2102 = vrot.slane %v2077, 7
    %2103 = vrot.lane.b32.xlu0 %v2102, 64
    %v2104 = vpop.permute.xlu0 %2103
    %v2107 = vrot.slane %v2080, 1
    %2108 = vrot.lane.b32.xlu0 %v2107, 64
    %v2109 = vpop.permute.xlu0 %2108
    %v2111 = vrot.slane %v2080, 2
    %v2113 = vrot.slane %v2080, 3
    %2114 = vrot.lane.b32.xlu0 %v2113, 64
    %v2115 = vpop.permute.xlu0 %2114
    %v2117 = vrot.slane %v2080, 4
    %v2119 = vrot.slane %v2080, 5
    %2120 = vrot.lane.b32.xlu0 %v2119, 64
    %v2121 = vpop.permute.xlu0 %2120
    %v2123 = vrot.slane %v2080, 6
    %v2125 = vrot.slane %v2080, 7
    %2126 = vrot.lane.b32.xlu0 %v2125, 64
    %v2127 = vpop.permute.xlu0 %2126
    %v2129 = vsel %vm1596, %v2077, %v2086
    %v2130 = vsel %vm1596, %v2088, %v2092
    %v2131 = vsel %vm1596, %v2094, %v2098
    %v2132 = vsel %vm1596, %v2100, %v2104
    %v2133 = vsel %vm1596, %v2080, %v2109
    %v2134 = vsel %vm1596, %v2111, %v2115
    %v2135 = vsel %vm1596, %v2117, %v2121
    %v2136 = vsel %vm1596, %v2123, %v2127
    %v2137 = vpack.c.bf16 %v1787, %v1784
    %v2138 = vpack.c.bf16 %v1875, %v1872
    %v2139 = vpack.c.bf16 %v1963, %v1960
    %v2141 = vsel %vm1596, %v2137, 0
    %v2144 = vsel %vm1596, %v2138, 0
    %2146 = vmatprep.subr.bf16.mxu0 0
    %2147 = vmatpush1.bf16.xpose.msra.mxu0 %v2144
    %2148 = vmatprep.subr.bf16.mxu0 0
    %2149 = vmatpush1.bf16.xpose.msra.mxu0 0
    %2150 = vmatprep.subr.bf16.mxu0 0
    %2151 = vmatpush1.bf16.xpose.msra.mxu0 0
    %2152 = vmatprep.subr.bf16.mxu0 0
    %2153 = vmatpush1.bf16.xpose.msra.mxu0 0
    %2154 = vmatprep.subr.bf16.mxu0 0
    %2155 = vmatpush1.bf16.xpose.msra.mxu0 0
    %2156 = vmatprep.subr.bf16.mxu0 0
    %2157 = vmatpush1.bf16.xpose.msra.mxu0 0
    %2158 = vmatprep.subr.bf16.mxu0 0
    %2159 = vmatpush1.bf16.xpose.msra.mxu0 0
    %2160 = vmatprep.subr.bf16.mxu0 0
    %2161 = vmatpush1.bf16.xpose.msra.mxu0 0
    %2162 = vmatprep.subr.bf16.mxu0 0
    %2163 = vmatpush1.bf16.xpose.msra.mxu0 0
    %2164 = vmatprep.subr.bf16.mxu0 0
    %2165 = vmatpush1.bf16.xpose.msra.mxu0 0
    %2166 = vmatprep.subr.bf16.mxu0 0
    %2167 = vmatpush1.bf16.xpose.msra.mxu0 0
    %2168 = vmatprep.subr.bf16.mxu0 0
    %2169 = vmatpush1.bf16.xpose.msra.mxu0 0
    %2170 = vmatprep.subr.bf16.mxu0 0
    %2171 = vmatpush1.bf16.xpose.msra.mxu0 0
    %2172 = vmatprep.subr.bf16.mxu0 0
    %2173 = vmatpush1.bf16.xpose.msra.mxu0 0
    %2174 = vmatprep.subr.bf16.mxu0 0
    %2175 = vmatpush1.bf16.xpose.msra.mxu0 0
    %2176 = vmatprep.subr.bf16.mxu0 0
    %2177 = vmatpush1.bf16.xpose.msra.mxu0 0
    %2178 = vmatprep.mubr.bf16.mxu0 0
    %2179 = vmatmul.mubr.bf16.gmra.mrb[0].mxu0 %v2141
    %v2180 = vpop.f32.mrb[0].mxu0
    %v2181 = vadd.f32 0.0, %v2180
    %v2182 = vpop.f32.mrb[0].mxu0
    %v2183 = vpop.f32.mrb[0].mxu0
    %v2184 = vadd.f32 0.0, %v2183
    %v2185 = vpop.f32.mrb[0].mxu0
    %2186 = vdwg.mxu0
    %v2187 = vsel %vm1200, %v2181, -inf
    %2188 = vmax.xlane.f32.xlu0 %v2187
    %v2189 = vpop.xlane.xlu0 %2188
    %v2190 = vsel %vm1200, %v2184, -inf
    %2191 = vmax.xlane.f32.xlu0 %v2190
    %v2192 = vpop.xlane.xlu0 %2191
    %v2193 = vsub.f32 %v2181, %v2189
    %v2194 = vsub.f32 %v2184, %v2192
    %v2195 = vmul.f32 %v2193, 1.442695
    %v2196 = vpow.pop %v2195
    %v2197 = vmul.f32 %v2194, 1.442695
    %v2198 = vpow.pop %v2197
    %v2199 = vsel %vm1200, %v2196, 0.0
    %2200 = vadd.xlane.f32.xlu0 %v2199
    %v2201 = vpop.xlane.xlu0 %2200
    %v2202 = vsel %vm1200, %v2198, 0.0
    %2203 = vadd.xlane.f32.xlu0 %v2202
    %v2204 = vpop.xlane.xlu0 %2203
    %v2205 = vrcp.pop %v2201
    %v2206 = vrcp.pop %v2204
    %v2207 = vmul.f32 %v2196, %v2205
    %v2208 = vmul.f32 %v2198, %v2206
    %v2209 = vpack.c.bf16 %v2208, %v2207
    %v2211 = vsel %vm1200, %v2209, 0
    %2213 = vmatprep.subr.bf16.mxu0 0
    %2214 = vmatpush1.bf16.msra.mxu0 %v2139
    %2215 = vmatprep.subr.bf16.mxu0 0
    %2216 = vmatpush1.bf16.msra.mxu0 0
    %2217 = vmatprep.subr.bf16.mxu0 0
    %2218 = vmatpush1.bf16.msra.mxu0 0
    %2219 = vmatprep.subr.bf16.mxu0 0
    %2220 = vmatpush1.bf16.msra.mxu0 0
    %2221 = vmatprep.subr.bf16.mxu0 0
    %2222 = vmatpush1.bf16.msra.mxu0 0
    %2223 = vmatprep.subr.bf16.mxu0 0
    %2224 = vmatpush1.bf16.msra.mxu0 0
    %2225 = vmatprep.subr.bf16.mxu0 0
    %2226 = vmatpush1.bf16.msra.mxu0 0
    %2227 = vmatprep.subr.bf16.mxu0 0
    %2228 = vmatpush1.bf16.msra.mxu0 0
    %2229 = vmatprep.subr.bf16.mxu0 0
    %2230 = vmatpush1.bf16.msra.mxu0 0
    %2231 = vmatprep.subr.bf16.mxu0 0
    %2232 = vmatpush1.bf16.msra.mxu0 0
    %2233 = vmatprep.subr.bf16.mxu0 0
    %2234 = vmatpush1.bf16.msra.mxu0 0
    %2235 = vmatprep.subr.bf16.mxu0 0
    %2236 = vmatpush1.bf16.msra.mxu0 0
    %2237 = vmatprep.subr.bf16.mxu0 0
    %2238 = vmatpush1.bf16.msra.mxu0 0
    %2239 = vmatprep.subr.bf16.mxu0 0
    %2240 = vmatpush1.bf16.msra.mxu0 0
    %2241 = vmatprep.subr.bf16.mxu0 0
    %2242 = vmatpush1.bf16.msra.mxu0 0
    %2243 = vmatprep.subr.bf16.mxu0 0
    %2244 = vmatpush1.bf16.msra.mxu0 0
    %2245 = vmatprep.mubr.bf16.mxu0 0
    %2246 = vmatmul.mubr.bf16.gmra.mrb[0].mxu0 %v2211
    %v2247 = vpop.f32.mrb[0].mxu0
    %v2248 = vadd.f32 0.0, %v2247
    %v2249 = vpop.f32.mrb[0].mxu0
    %v2250 = vpop.f32.mrb[0].mxu0
    %v2251 = vadd.f32 0.0, %v2250
    %v2252 = vpop.f32.mrb[0].mxu0
    %2253 = vdwg.mxu0
    %v2255 = vrot.slane %v2248, 1
    %2256 = vrot.lane.b32.xlu0 %v2255, 64
    %v2257 = vpop.permute.xlu0 %2256
    %v2259 = vrot.slane %v2248, 2
    %v2261 = vrot.slane %v2248, 3
    %2262 = vrot.lane.b32.xlu0 %v2261, 64
    %v2263 = vpop.permute.xlu0 %2262
    %v2265 = vrot.slane %v2248, 4
    %v2267 = vrot.slane %v2248, 5
    %2268 = vrot.lane.b32.xlu0 %v2267, 64
    %v2269 = vpop.permute.xlu0 %2268
    %v2271 = vrot.slane %v2248, 6
    %v2273 = vrot.slane %v2248, 7
    %2274 = vrot.lane.b32.xlu0 %v2273, 64
    %v2275 = vpop.permute.xlu0 %2274
    %v2278 = vrot.slane %v2251, 1
    %2279 = vrot.lane.b32.xlu0 %v2278, 64
    %v2280 = vpop.permute.xlu0 %2279
    %v2282 = vrot.slane %v2251, 2
    %v2284 = vrot.slane %v2251, 3
    %2285 = vrot.lane.b32.xlu0 %v2284, 64
    %v2286 = vpop.permute.xlu0 %2285
    %v2288 = vrot.slane %v2251, 4
    %v2290 = vrot.slane %v2251, 5
    %2291 = vrot.lane.b32.xlu0 %v2290, 64
    %v2292 = vpop.permute.xlu0 %2291
    %v2294 = vrot.slane %v2251, 6
    %v2296 = vrot.slane %v2251, 7
    %2297 = vrot.lane.b32.xlu0 %v2296, 64
    %v2298 = vpop.permute.xlu0 %2297
    %v2300 = vsel %vm1596, %v2248, %v2257
    %v2301 = vsel %vm1596, %v2259, %v2263
    %v2302 = vsel %vm1596, %v2265, %v2269
    %v2303 = vsel %vm1596, %v2271, %v2275
    %v2304 = vsel %vm1596, %v2251, %v2280
    %v2305 = vsel %vm1596, %v2282, %v2286
    %v2306 = vsel %vm1596, %v2288, %v2292
    %v2307 = vsel %vm1596, %v2294, %v2298
    %v2316 = vrot.slane %v2300, 7
    %v2317 = vrot.slane %v2301, 7
    %v2318 = vrot.slane %v2302, 7
    %v2319 = vrot.slane %v2303, 7
    %v2320 = vrot.slane %v2304, 7
    %v2321 = vrot.slane %v2305, 7
    %v2322 = vrot.slane %v2306, 7
    %v2323 = vrot.slane %v2307, 7
    %v2332 = vsel %vm558, %v2129, %v2316
    %v2333 = vsel %vm558, %v2130, %v2317
    %v2334 = vsel %vm558, %v2131, %v2318
    %v2335 = vsel %vm558, %v2132, %v2319
    %v2336 = vsel %vm558, %v2133, %v2320
    %v2337 = vsel %vm558, %v2134, %v2321
    %v2338 = vsel %vm558, %v2135, %v2322
    %v2339 = vsel %vm558, %v2136, %v2323
    %v2340 = vpack.c.bf16 %v2332, %v2332
    %v2341 = vpack.c.bf16 %v2333, %v2333
    %v2342 = vpack.c.bf16 %v2334, %v2334
    %v2343 = vpack.c.bf16 %v2335, %v2335
    %v2344 = vpack.c.bf16 %v2336, %v2336
    %v2345 = vpack.c.bf16 %v2337, %v2337
    %v2346 = vpack.c.bf16 %v2338, %v2338
    %v2347 = vpack.c.bf16 %v2339, %v2339
    %s2348 = smul.u32 4, 128
    %s2349 = smul.u32 %s2348, 1
    %s2350 = sshll.u32 %s2349, 4
    %2351 = dma.done [#allocation3], %s2350
    %v2352 = vld [vmem:[#allocation2] sm:$0xff]
    %v2353 = vld [vmem:[#allocation2 + $0x8] sm:$0xff]
    %v2354 = vld [vmem:[#allocation2 + $0x10] sm:$0xff]
    %v2355 = vld [vmem:[#allocation2 + $0x18] sm:$0xff]
    %v2356 = vld [vmem:[#allocation2 + $0x20] sm:$0xff]
    %v2357 = vld [vmem:[#allocation2 + $0x28] sm:$0xff]
    %v2358 = vld [vmem:[#allocation2 + $0x30] sm:$0xff]
    %v2359 = vld [vmem:[#allocation2 + $0x38] sm:$0xff]
    %v2360 = vld [vmem:[#allocation2 + $0x40] sm:$0xff]
    %v2361 = vld [vmem:[#allocation2 + $0x48] sm:$0xff]
    %v2362 = vld [vmem:[#allocation2 + $0x50] sm:$0xff]
    %v2363 = vld [vmem:[#allocation2 + $0x58] sm:$0xff]
    %v2364 = vld [vmem:[#allocation2 + $0x60] sm:$0xff]
    %v2365 = vld [vmem:[#allocation2 + $0x68] sm:$0xff]
    %v2366 = vld [vmem:[#allocation2 + $0x70] sm:$0xff]
    %v2367 = vld [vmem:[#allocation2 + $0x78] sm:$0xff]
    %v2368 = vld [vmem:[#allocation2 + $0x80] sm:$0xff]
    %v2369 = vld [vmem:[#allocation2 + $0x88] sm:$0xff]
    %v2370 = vld [vmem:[#allocation2 + $0x90] sm:$0xff]
    %v2371 = vld [vmem:[#allocation2 + $0x98] sm:$0xff]
    %v2372 = vld [vmem:[#allocation2 + $0xa0] sm:$0xff]
    %v2373 = vld [vmem:[#allocation2 + $0xa8] sm:$0xff]
    %v2374 = vld [vmem:[#allocation2 + $0xb0] sm:$0xff]
    %v2375 = vld [vmem:[#allocation2 + $0xb8] sm:$0xff]
    %v2376 = vld [vmem:[#allocation2 + $0xc0] sm:$0xff]
    %v2377 = vld [vmem:[#allocation2 + $0xc8] sm:$0xff]
    %v2378 = vld [vmem:[#allocation2 + $0xd0] sm:$0xff]
    %v2379 = vld [vmem:[#allocation2 + $0xd8] sm:$0xff]
    %v2380 = vld [vmem:[#allocation2 + $0xe0] sm:$0xff]
    %v2381 = vld [vmem:[#allocation2 + $0xe8] sm:$0xff]
    %v2382 = vld [vmem:[#allocation2 + $0xf0] sm:$0xff]
    %v2383 = vld [vmem:[#allocation2 + $0xf8] sm:$0xff]
    %v2384 = vld [vmem:[#allocation2 + $0x100] sm:$0xff]
    %v2385 = vld [vmem:[#allocation2 + $0x108] sm:$0xff]
    %v2386 = vld [vmem:[#allocation2 + $0x110] sm:$0xff]
    %v2387 = vld [vmem:[#allocation2 + $0x118] sm:$0xff]
    %v2388 = vld [vmem:[#allocation2 + $0x120] sm:$0xff]
    %v2389 = vld [vmem:[#allocation2 + $0x128] sm:$0xff]
    %v2390 = vld [vmem:[#allocation2 + $0x130] sm:$0xff]
    %v2391 = vld [vmem:[#allocation2 + $0x138] sm:$0xff]
    %v2392 = vld [vmem:[#allocation2 + $0x140] sm:$0xff]
    %v2393 = vld [vmem:[#allocation2 + $0x148] sm:$0xff]
    %v2394 = vld [vmem:[#allocation2 + $0x150] sm:$0xff]
    %v2395 = vld [vmem:[#allocation2 + $0x158] sm:$0xff]
    %v2396 = vld [vmem:[#allocation2 + $0x160] sm:$0xff]
    %v2397 = vld [vmem:[#allocation2 + $0x168] sm:$0xff]
    %v2398 = vld [vmem:[#allocation2 + $0x170] sm:$0xff]
    %v2399 = vld [vmem:[#allocation2 + $0x178] sm:$0xff]
    %v2400 = vld [vmem:[#allocation2 + $0x180] sm:$0xff]
    %v2401 = vld [vmem:[#allocation2 + $0x188] sm:$0xff]
    %v2402 = vld [vmem:[#allocation2 + $0x190] sm:$0xff]
    %v2403 = vld [vmem:[#allocation2 + $0x198] sm:$0xff]
    %v2404 = vld [vmem:[#allocation2 + $0x1a0] sm:$0xff]
    %v2405 = vld [vmem:[#allocation2 + $0x1a8] sm:$0xff]
    %v2406 = vld [vmem:[#allocation2 + $0x1b0] sm:$0xff]
    %v2407 = vld [vmem:[#allocation2 + $0x1b8] sm:$0xff]
    %v2408 = vld [vmem:[#allocation2 + $0x1c0] sm:$0xff]
    %v2409 = vld [vmem:[#allocation2 + $0x1c8] sm:$0xff]
    %v2410 = vld [vmem:[#allocation2 + $0x1d0] sm:$0xff]
    %v2411 = vld [vmem:[#allocation2 + $0x1d8] sm:$0xff]
    %v2412 = vld [vmem:[#allocation2 + $0x1e0] sm:$0xff]
    %v2413 = vld [vmem:[#allocation2 + $0x1e8] sm:$0xff]
    %v2414 = vld [vmem:[#allocation2 + $0x1f0] sm:$0xff]
    %v2415 = vld [vmem:[#allocation2 + $0x1f8] sm:$0xff]
    %v2416 = vld [vmem:[#allocation19] sm:$0x1]
    %v2418 = vlaneseq
    %v2419 = vshrl.u32 %v2418, 7
    %v2420 = vsub.s32 0, %v2419
    %v2421 = vrot.slane %v2416, %v2420
    %2423 = vmatprep.subr.bf16.mxu0 0
    %2424 = vmatpush1.bf16.msra.mxu0 %v2352
    %2425 = vmatprep.subr.bf16.mxu0 0
    %2426 = vmatpush1.bf16.msra.mxu0 %v2353
    %2427 = vmatprep.subr.bf16.mxu0 0
    %2428 = vmatpush1.bf16.msra.mxu0 %v2354
    %2429 = vmatprep.subr.bf16.mxu0 0
    %2430 = vmatpush1.bf16.msra.mxu0 %v2355
    %2431 = vmatprep.subr.bf16.mxu0 0
    %2432 = vmatpush1.bf16.msra.mxu0 %v2356
    %2433 = vmatprep.subr.bf16.mxu0 0
    %2434 = vmatpush1.bf16.msra.mxu0 %v2357
    %2435 = vmatprep.subr.bf16.mxu0 0
    %2436 = vmatpush1.bf16.msra.mxu0 %v2358
    %2437 = vmatprep.subr.bf16.mxu0 0
    %2438 = vmatpush1.bf16.msra.mxu0 %v2359
    %2439 = vmatprep.subr.bf16.mxu0 0
    %2440 = vmatpush1.bf16.msra.mxu0 %v2360
    %2441 = vmatprep.subr.bf16.mxu0 0
    %2442 = vmatpush1.bf16.msra.mxu0 %v2361
    %2443 = vmatprep.subr.bf16.mxu0 0
    %2444 = vmatpush1.bf16.msra.mxu0 %v2362
    %2445 = vmatprep.subr.bf16.mxu0 0
    %2446 = vmatpush1.bf16.msra.mxu0 %v2363
    %2447 = vmatprep.subr.bf16.mxu0 0
    %2448 = vmatpush1.bf16.msra.mxu0 %v2364
    %2449 = vmatprep.subr.bf16.mxu0 0
    %2450 = vmatpush1.bf16.msra.mxu0 %v2365
    %2451 = vmatprep.subr.bf16.mxu0 0
    %2452 = vmatpush1.bf16.msra.mxu0 %v2366
    %2453 = vmatprep.subr.bf16.mxu0 0
    %2454 = vmatpush1.bf16.msra.mxu0 %v2367
    %2455 = vmatprep.mubr.bf16.mxu0 %v2341
    %2456 = vmatmul.mubr.bf16.gmra.mrb[0].mxu0 %v2340
    %v2457 = vpop.f32.mrb[0].mxu0
    %v2458 = vadd.f32 %v2421, %v2457
    %v2459 = vpop.f32.mrb[0].mxu0
    %v2460 = vpop.f32.mrb[0].mxu0
    %v2461 = vpop.f32.mrb[0].mxu0
    %2462 = vdwg.mxu0
    %2463 = vmatprep.subr.bf16.mxu0 0
    %2464 = vmatpush1.bf16.msra.mxu0 %v2368
    %2465 = vmatprep.subr.bf16.mxu0 0
    %2466 = vmatpush1.bf16.msra.mxu0 %v2369
    %2467 = vmatprep.subr.bf16.mxu0 0
    %2468 = vmatpush1.bf16.msra.mxu0 %v2370
    %2469 = vmatprep.subr.bf16.mxu0 0
    %2470 = vmatpush1.bf16.msra.mxu0 %v2371
    %2471 = vmatprep.subr.bf16.mxu0 0
    %2472 = vmatpush1.bf16.msra.mxu0 %v2372
    %2473 = vmatprep.subr.bf16.mxu0 0
    %2474 = vmatpush1.bf16.msra.mxu0 %v2373
    %2475 = vmatprep.subr.bf16.mxu0 0
    %2476 = vmatpush1.bf16.msra.mxu0 %v2374
    %2477 = vmatprep.subr.bf16.mxu0 0
    %2478 = vmatpush1.bf16.msra.mxu0 %v2375
    %2479 = vmatprep.subr.bf16.mxu0 0
    %2480 = vmatpush1.bf16.msra.mxu0 %v2376
    %2481 = vmatprep.subr.bf16.mxu0 0
    %2482 = vmatpush1.bf16.msra.mxu0 %v2377
    %2483 = vmatprep.subr.bf16.mxu0 0
    %2484 = vmatpush1.bf16.msra.mxu0 %v2378
    %2485 = vmatprep.subr.bf16.mxu0 0
    %2486 = vmatpush1.bf16.msra.mxu0 %v2379
    %2487 = vmatprep.subr.bf16.mxu0 0
    %2488 = vmatpush1.bf16.msra.mxu0 %v2380
    %2489 = vmatprep.subr.bf16.mxu0 0
    %2490 = vmatpush1.bf16.msra.mxu0 %v2381
    %2491 = vmatprep.subr.bf16.mxu0 0
    %2492 = vmatpush1.bf16.msra.mxu0 %v2382
    %2493 = vmatprep.subr.bf16.mxu0 0
    %2494 = vmatpush1.bf16.msra.mxu0 %v2383
    %2495 = vmatprep.mubr.bf16.mxu0 %v2343
    %2496 = vmatmul.mubr.bf16.gmra.mrb[0].mxu0 %v2342
    %v2497 = vpop.f32.mrb[0].mxu0
    %v2498 = vadd.f32 %v2458, %v2497
    %v2499 = vpop.f32.mrb[0].mxu0
    %v2500 = vpop.f32.mrb[0].mxu0
    %v2501 = vpop.f32.mrb[0].mxu0
    %2502 = vdwg.mxu0
    %2503 = vmatprep.subr.bf16.mxu0 0
    %2504 = vmatpush1.bf16.msra.mxu0 %v2384
    %2505 = vmatprep.subr.bf16.mxu0 0
    %2506 = vmatpush1.bf16.msra.mxu0 %v2385
    %2507 = vmatprep.subr.bf16.mxu0 0
    %2508 = vmatpush1.bf16.msra.mxu0 %v2386
    %2509 = vmatprep.subr.bf16.mxu0 0
    %2510 = vmatpush1.bf16.msra.mxu0 %v2387
    %2511 = vmatprep.subr.bf16.mxu0 0
    %2512 = vmatpush1.bf16.msra.mxu0 %v2388
    %2513 = vmatprep.subr.bf16.mxu0 0
    %2514 = vmatpush1.bf16.msra.mxu0 %v2389
    %2515 = vmatprep.subr.bf16.mxu0 0
    %2516 = vmatpush1.bf16.msra.mxu0 %v2390
    %2517 = vmatprep.subr.bf16.mxu0 0
    %2518 = vmatpush1.bf16.msra.mxu0 %v2391
    %2519 = vmatprep.subr.bf16.mxu0 0
    %2520 = vmatpush1.bf16.msra.mxu0 %v2392
    %2521 = vmatprep.subr.bf16.mxu0 0
    %2522 = vmatpush1.bf16.msra.mxu0 %v2393
    %2523 = vmatprep.subr.bf16.mxu0 0
    %2524 = vmatpush1.bf16.msra.mxu0 %v2394
    %2525 = vmatprep.subr.bf16.mxu0 0
    %2526 = vmatpush1.bf16.msra.mxu0 %v2395
    %2527 = vmatprep.subr.bf16.mxu0 0
    %2528 = vmatpush1.bf16.msra.mxu0 %v2396
    %2529 = vmatprep.subr.bf16.mxu0 0
    %2530 = vmatpush1.bf16.msra.mxu0 %v2397
    %2531 = vmatprep.subr.bf16.mxu0 0
    %2532 = vmatpush1.bf16.msra.mxu0 %v2398
    %2533 = vmatprep.subr.bf16.mxu0 0
    %2534 = vmatpush1.bf16.msra.mxu0 %v2399
    %2535 = vmatprep.mubr.bf16.mxu0 %v2345
    %2536 = vmatmul.mubr.bf16.gmra.mrb[0].mxu0 %v2344
    %v2537 = vpop.f32.mrb[0].mxu0
    %v2538 = vadd.f32 %v2498, %v2537
    %v2539 = vpop.f32.mrb[0].mxu0
    %v2540 = vpop.f32.mrb[0].mxu0
    %v2541 = vpop.f32.mrb[0].mxu0
    %2542 = vdwg.mxu0
    %2543 = vmatprep.subr.bf16.mxu0 0
    %2544 = vmatpush1.bf16.msra.mxu0 %v2400
    %2545 = vmatprep.subr.bf16.mxu0 0
    %2546 = vmatpush1.bf16.msra.mxu0 %v2401
    %2547 = vmatprep.subr.bf16.mxu0 0
    %2548 = vmatpush1.bf16.msra.mxu0 %v2402
    %2549 = vmatprep.subr.bf16.mxu0 0
    %2550 = vmatpush1.bf16.msra.mxu0 %v2403
    %2551 = vmatprep.subr.bf16.mxu0 0
    %2552 = vmatpush1.bf16.msra.mxu0 %v2404
    %2553 = vmatprep.subr.bf16.mxu0 0
    %2554 = vmatpush1.bf16.msra.mxu0 %v2405
    %2555 = vmatprep.subr.bf16.mxu0 0
    %2556 = vmatpush1.bf16.msra.mxu0 %v2406
    %2557 = vmatprep.subr.bf16.mxu0 0
    %2558 = vmatpush1.bf16.msra.mxu0 %v2407
    %2559 = vmatprep.subr.bf16.mxu0 0
    %2560 = vmatpush1.bf16.msra.mxu0 %v2408
    %2561 = vmatprep.subr.bf16.mxu0 0
    %2562 = vmatpush1.bf16.msra.mxu0 %v2409
    %2563 = vmatprep.subr.bf16.mxu0 0
    %2564 = vmatpush1.bf16.msra.mxu0 %v2410
    %2565 = vmatprep.subr.bf16.mxu0 0
    %2566 = vmatpush1.bf16.msra.mxu0 %v2411
    %2567 = vmatprep.subr.bf16.mxu0 0
    %2568 = vmatpush1.bf16.msra.mxu0 %v2412
    %2569 = vmatprep.subr.bf16.mxu0 0
    %2570 = vmatpush1.bf16.msra.mxu0 %v2413
    %2571 = vmatprep.subr.bf16.mxu0 0
    %2572 = vmatpush1.bf16.msra.mxu0 %v2414
    %2573 = vmatprep.subr.bf16.mxu0 0
    %2574 = vmatpush1.bf16.msra.mxu0 %v2415
    %2575 = vmatprep.mubr.bf16.mxu0 %v2347
    %2576 = vmatmul.mubr.bf16.gmra.mrb[0].mxu0 %v2346
    %v2577 = vpop.f32.mrb[0].mxu0
    %v2578 = vadd.f32 %v2538, %v2577
    %v2579 = vpop.f32.mrb[0].mxu0
    %v2580 = vpop.f32.mrb[0].mxu0
    %v2581 = vpop.f32.mrb[0].mxu0
    %2582 = vdwg.mxu0
    %v2583 = vsel %vm731, %v2578, 0.0
    %2584 = vadd.xlane.f32.xlu0 %v2583
    %v2585 = vpop.xlane.xlu0 %2584
    %v2586 = vrcp.pop 128.0
    %v2587 = vmul.f32 %v2585, %v2586
    %v2588 = vsub.f32 %v2578, %v2587
    %v2589 = vmul.f32 %v2588, %v2588
    %v2590 = vsel %vm731, %v2589, 0.0
    %2591 = vadd.xlane.f32.xlu0 %v2590
    %v2592 = vpop.xlane.xlu0 %2591
    %v2593 = vmul.f32 %v2592, %v2586
    %v2594 = vadd.f32 %v2593, 1e-05
    %v2595 = vrsqrt.pop %v2594
    %v2596 = vmul.f32 %v2588, %v2595
    %v2597 = vld [vmem:[#allocation21] sm:$0x1]
    %v2599 = vlaneseq
    %v2600 = vshrl.u32 %v2599, 7
    %v2601 = vsub.s32 0, %v2600
    %v2602 = vrot.slane %v2597, %v2601
    %v2604 = vmul.f32 %v2596, %v2602
    %v2605 = vld [vmem:[#allocation22] sm:$0x1]
    %v2607 = vlaneseq
    %v2608 = vshrl.u32 %v2607, 7
    %v2609 = vsub.s32 0, %v2608
    %v2610 = vrot.slane %v2605, %v2609
    %v2612 = vadd.f32 %v2604, %v2610
    %v2613 = vmax.f32 %v2612, 0.0
    %v2614 = vpack.c.bf16 %v2613, %v2613
    %v2615 = vld [vmem:[%s21] sm:$0xf]
    %v2616 = vld [vmem:[%s21 + $0x4] sm:$0xf]
    %v2617 = vld [vmem:[%s21 + $0x8] sm:$0xf]
    %v2618 = vld [vmem:[%s21 + $0xc] sm:$0xf]
    %v2619 = vld [vmem:[%s21 + $0x10] sm:$0xf]
    %v2620 = vld [vmem:[%s21 + $0x14] sm:$0xf]
    %v2621 = vld [vmem:[%s21 + $0x18] sm:$0xf]
    %v2622 = vld [vmem:[%s21 + $0x1c] sm:$0xf]
    %v2623 = vld [vmem:[%s21 + $0x20] sm:$0xf]
    %v2624 = vld [vmem:[%s21 + $0x24] sm:$0xf]
    %v2625 = vld [vmem:[%s21 + $0x28] sm:$0xf]
    %v2626 = vld [vmem:[%s21 + $0x2c] sm:$0xf]
    %v2627 = vld [vmem:[%s21 + $0x30] sm:$0xf]
    %v2628 = vld [vmem:[%s21 + $0x34] sm:$0xf]
    %v2629 = vld [vmem:[%s21 + $0x38] sm:$0xf]
    %v2630 = vld [vmem:[%s21 + $0x3c] sm:$0xf]
    %v2631 = vld [vmem:[#allocation24] sm:$0x1]
    %v2633 = vlaneseq
    %v2634 = vshrl.u32 %v2633, 7
    %v2635 = vsub.s32 0, %v2634
    %v2636 = vrot.slane %v2631, %v2635
    %v2654 = vunpack.c.l.b16 %v2615
    %v2655 = vunpack.c.l.b16 %v2616
    %v2656 = vunpack.c.l.b16 %v2617
    %v2657 = vunpack.c.l.b16 %v2618
    %v2658 = vunpack.c.l.b16 %v2619
    %v2659 = vunpack.c.l.b16 %v2620
    %v2660 = vunpack.c.l.b16 %v2621
    %v2661 = vunpack.c.l.b16 %v2622
    %v2662 = vunpack.c.l.b16 %v2623
    %v2663 = vunpack.c.l.b16 %v2624
    %v2664 = vunpack.c.l.b16 %v2625
    %v2665 = vunpack.c.l.b16 %v2626
    %v2666 = vunpack.c.l.b16 %v2627
    %v2667 = vunpack.c.l.b16 %v2628
    %v2668 = vunpack.c.l.b16 %v2629
    %v2669 = vunpack.c.l.b16 %v2630
    %v2670 = vpack.c.b16 %v2655, %v2654
    %v2671 = vpack.c.b16 %v2657, %v2656
    %v2672 = vpack.c.b16 %v2659, %v2658
    %v2673 = vpack.c.b16 %v2661, %v2660
    %v2674 = vpack.c.b16 %v2663, %v2662
    %v2675 = vpack.c.b16 %v2665, %v2664
    %v2676 = vpack.c.b16 %v2667, %v2666
    %v2677 = vpack.c.b16 %v2669, %v2668
    %2686 = vmatprep.subr.bf16.mxu0 0
    %2687 = vmatpush1.bf16.msra.mxu0 %v2670
    %2688 = vmatprep.subr.bf16.mxu0 0
    %2689 = vmatpush1.bf16.msra.mxu0 %v2671
    %2690 = vmatprep.subr.bf16.mxu0 0
    %2691 = vmatpush1.bf16.msra.mxu0 %v2672
    %2692 = vmatprep.subr.bf16.mxu0 0
    %2693 = vmatpush1.bf16.msra.mxu0 %v2673
    %2694 = vmatprep.subr.bf16.mxu0 0
    %2695 = vmatpush1.bf16.msra.mxu0 %v2674
    %2696 = vmatprep.subr.bf16.mxu0 0
    %2697 = vmatpush1.bf16.msra.mxu0 %v2675
    %2698 = vmatprep.subr.bf16.mxu0 0
    %2699 = vmatpush1.bf16.msra.mxu0 %v2676
    %2700 = vmatprep.subr.bf16.mxu0 0
    %2701 = vmatpush1.bf16.msra.mxu0 %v2677
    %2702 = vmatprep.subr.bf16.mxu0 0
    %2703 = vmatpush1.bf16.msra.mxu0 0
    %2704 = vmatprep.subr.bf16.mxu0 0
    %2705 = vmatpush1.bf16.msra.mxu0 0
    %2706 = vmatprep.subr.bf16.mxu0 0
    %2707 = vmatpush1.bf16.msra.mxu0 0
    %2708 = vmatprep.subr.bf16.mxu0 0
    %2709 = vmatpush1.bf16.msra.mxu0 0
    %2710 = vmatprep.subr.bf16.mxu0 0
    %2711 = vmatpush1.bf16.msra.mxu0 0
    %2712 = vmatprep.subr.bf16.mxu0 0
    %2713 = vmatpush1.bf16.msra.mxu0 0
    %2714 = vmatprep.subr.bf16.mxu0 0
    %2715 = vmatpush1.bf16.msra.mxu0 0
    %2716 = vmatprep.subr.bf16.mxu0 0
    %2717 = vmatpush1.bf16.msra.mxu0 0
    %2718 = vmatprep.mubr.bf16.mxu0 0
    %2719 = vmatmul.mubr.bf16.gmra.mrb[0].mxu0 %v2614
    %v2720 = vpop.f32.mrb[0].mxu0
    %v2721 = vadd.f32 %v2636, %v2720
    %v2722 = vpop.f32.mrb[0].mxu0
    %v2723 = vpop.f32.mrb[0].mxu0
    %v2724 = vpop.f32.mrb[0].mxu0
    %2725 = vdwg.mxu0
    %v2726 = vmax.f32 %v2721, 0.0
    %v2727 = vpack.c.bf16 %v2726, %v2726
    %v2728 = vld [vmem:[%s23] sm:$0xf]
    %v2729 = vld [vmem:[%s23 + $0x4] sm:$0xf]
    %v2730 = vld [vmem:[%s23 + $0x8] sm:$0xf]
    %v2731 = vld [vmem:[%s23 + $0xc] sm:$0xf]
    %v2732 = vld [vmem:[%s23 + $0x10] sm:$0xf]
    %v2733 = vld [vmem:[%s23 + $0x14] sm:$0xf]
    %v2734 = vld [vmem:[%s23 + $0x18] sm:$0xf]
    %v2735 = vld [vmem:[%s23 + $0x1c] sm:$0xf]
    %v2736 = vld [vmem:[%s23 + $0x20] sm:$0xf]
    %v2737 = vld [vmem:[%s23 + $0x24] sm:$0xf]
    %v2738 = vld [vmem:[%s23 + $0x28] sm:$0xf]
    %v2739 = vld [vmem:[%s23 + $0x2c] sm:$0xf]
    %v2740 = vld [vmem:[%s23 + $0x30] sm:$0xf]
    %v2741 = vld [vmem:[%s23 + $0x34] sm:$0xf]
    %v2742 = vld [vmem:[%s23 + $0x38] sm:$0xf]
    %v2743 = vld [vmem:[%s23 + $0x3c] sm:$0xf]
    %v2744 = vld [vmem:[#allocation25] sm:$0x1]
    %v2746 = vlaneseq
    %v2747 = vshrl.u32 %v2746, 7
    %v2748 = vsub.s32 0, %v2747
    %v2749 = vrot.slane %v2744, %v2748
    %v2767 = vunpack.c.l.b16 %v2728
    %v2768 = vunpack.c.l.b16 %v2729
    %v2769 = vunpack.c.l.b16 %v2730
    %v2770 = vunpack.c.l.b16 %v2731
    %v2771 = vunpack.c.l.b16 %v2732
    %v2772 = vunpack.c.l.b16 %v2733
    %v2773 = vunpack.c.l.b16 %v2734
    %v2774 = vunpack.c.l.b16 %v2735
    %v2775 = vunpack.c.l.b16 %v2736
    %v2776 = vunpack.c.l.b16 %v2737
    %v2777 = vunpack.c.l.b16 %v2738
    %v2778 = vunpack.c.l.b16 %v2739
    %v2779 = vunpack.c.l.b16 %v2740
    %v2780 = vunpack.c.l.b16 %v2741
    %v2781 = vunpack.c.l.b16 %v2742
    %v2782 = vunpack.c.l.b16 %v2743
    %v2783 = vpack.c.b16 %v2768, %v2767
    %v2784 = vpack.c.b16 %v2770, %v2769
    %v2785 = vpack.c.b16 %v2772, %v2771
    %v2786 = vpack.c.b16 %v2774, %v2773
    %v2787 = vpack.c.b16 %v2776, %v2775
    %v2788 = vpack.c.b16 %v2778, %v2777
    %v2789 = vpack.c.b16 %v2780, %v2779
    %v2790 = vpack.c.b16 %v2782, %v2781
    %2799 = vmatprep.subr.bf16.mxu0 0
    %2800 = vmatpush1.bf16.msra.mxu0 %v2783
    %2801 = vmatprep.subr.bf16.mxu0 0
    %2802 = vmatpush1.bf16.msra.mxu0 %v2784
    %2803 = vmatprep.subr.bf16.mxu0 0
    %2804 = vmatpush1.bf16.msra.mxu0 %v2785
    %2805 = vmatprep.subr.bf16.mxu0 0
    %2806 = vmatpush1.bf16.msra.mxu0 %v2786
    %2807 = vmatprep.subr.bf16.mxu0 0
    %2808 = vmatpush1.bf16.msra.mxu0 %v2787
    %2809 = vmatprep.subr.bf16.mxu0 0
    %2810 = vmatpush1.bf16.msra.mxu0 %v2788
    %2811 = vmatprep.subr.bf16.mxu0 0
    %2812 = vmatpush1.bf16.msra.mxu0 %v2789
    %2813 = vmatprep.subr.bf16.mxu0 0
    %2814 = vmatpush1.bf16.msra.mxu0 %v2790
    %2815 = vmatprep.subr.bf16.mxu0 0
    %2816 = vmatpush1.bf16.msra.mxu0 0
    %2817 = vmatprep.subr.bf16.mxu0 0
    %2818 = vmatpush1.bf16.msra.mxu0 0
    %2819 = vmatprep.subr.bf16.mxu0 0
    %2820 = vmatpush1.bf16.msra.mxu0 0
    %2821 = vmatprep.subr.bf16.mxu0 0
    %2822 = vmatpush1.bf16.msra.mxu0 0
    %2823 = vmatprep.subr.bf16.mxu0 0
    %2824 = vmatpush1.bf16.msra.mxu0 0
    %2825 = vmatprep.subr.bf16.mxu0 0
    %2826 = vmatpush1.bf16.msra.mxu0 0
    %2827 = vmatprep.subr.bf16.mxu0 0
    %2828 = vmatpush1.bf16.msra.mxu0 0
    %2829 = vmatprep.subr.bf16.mxu0 0
    %2830 = vmatpush1.bf16.msra.mxu0 0
    %2831 = vmatprep.mubr.bf16.mxu0 0
    %2832 = vmatmul.mubr.bf16.gmra.mrb[0].mxu0 %v2727
    %v2833 = vpop.f32.mrb[0].mxu0
    %v2834 = vadd.f32 %v2749, %v2833
    %v2835 = vpop.f32.mrb[0].mxu0
    %v2836 = vpop.f32.mrb[0].mxu0
    %v2837 = vpop.f32.mrb[0].mxu0
    %2838 = vdwg.mxu0
    %v2839 = vmax.f32 %v2834, 0.0
    %v2840 = vpack.c.bf16 %v2839, %v2839
    %v2841 = vld [vmem:[%s25] sm:$0xf]
    %v2842 = vld [vmem:[%s25 + $0x4] sm:$0xf]
    %v2843 = vld [vmem:[%s25 + $0x8] sm:$0xf]
    %v2844 = vld [vmem:[%s25 + $0xc] sm:$0xf]
    %v2845 = vld [vmem:[%s25 + $0x10] sm:$0xf]
    %v2846 = vld [vmem:[%s25 + $0x14] sm:$0xf]
    %v2847 = vld [vmem:[%s25 + $0x18] sm:$0xf]
    %v2848 = vld [vmem:[%s25 + $0x1c] sm:$0xf]
    %v2849 = vld [vmem:[%s25 + $0x20] sm:$0xf]
    %v2850 = vld [vmem:[%s25 + $0x24] sm:$0xf]
    %v2851 = vld [vmem:[%s25 + $0x28] sm:$0xf]
    %v2852 = vld [vmem:[%s25 + $0x2c] sm:$0xf]
    %v2853 = vld [vmem:[%s25 + $0x30] sm:$0xf]
    %v2854 = vld [vmem:[%s25 + $0x34] sm:$0xf]
    %v2855 = vld [vmem:[%s25 + $0x38] sm:$0xf]
    %v2856 = vld [vmem:[%s25 + $0x3c] sm:$0xf]
    %v2857 = vld [vmem:[#allocation27] sm:$0x1]
    %v2859 = vlaneseq
    %v2860 = vshrl.u32 %v2859, 7
    %v2861 = vsub.s32 0, %v2860
    %v2862 = vrot.slane %v2857, %v2861
    %v2880 = vunpack.c.l.b16 %v2841
    %v2881 = vunpack.c.l.b16 %v2842
    %v2882 = vunpack.c.l.b16 %v2843
    %v2883 = vunpack.c.l.b16 %v2844
    %v2884 = vunpack.c.l.b16 %v2845
    %v2885 = vunpack.c.l.b16 %v2846
    %v2886 = vunpack.c.l.b16 %v2847
    %v2887 = vunpack.c.l.b16 %v2848
    %v2888 = vunpack.c.l.b16 %v2849
    %v2889 = vunpack.c.l.b16 %v2850
    %v2890 = vunpack.c.l.b16 %v2851
    %v2891 = vunpack.c.l.b16 %v2852
    %v2892 = vunpack.c.l.b16 %v2853
    %v2893 = vunpack.c.l.b16 %v2854
    %v2894 = vunpack.c.l.b16 %v2855
    %v2895 = vunpack.c.l.b16 %v2856
    %v2896 = vpack.c.b16 %v2881, %v2880
    %v2897 = vpack.c.b16 %v2883, %v2882
    %v2898 = vpack.c.b16 %v2885, %v2884
    %v2899 = vpack.c.b16 %v2887, %v2886
    %v2900 = vpack.c.b16 %v2889, %v2888
    %v2901 = vpack.c.b16 %v2891, %v2890
    %v2902 = vpack.c.b16 %v2893, %v2892
    %v2903 = vpack.c.b16 %v2895, %v2894
    %2912 = vmatprep.subr.bf16.mxu0 0
    %2913 = vmatpush1.bf16.msra.mxu0 %v2896
    %2914 = vmatprep.subr.bf16.mxu0 0
    %2915 = vmatpush1.bf16.msra.mxu0 %v2897
    %2916 = vmatprep.subr.bf16.mxu0 0
    %2917 = vmatpush1.bf16.msra.mxu0 %v2898
    %2918 = vmatprep.subr.bf16.mxu0 0
    %2919 = vmatpush1.bf16.msra.mxu0 %v2899
    %2920 = vmatprep.subr.bf16.mxu0 0
    %2921 = vmatpush1.bf16.msra.mxu0 %v2900
    %2922 = vmatprep.subr.bf16.mxu0 0
    %2923 = vmatpush1.bf16.msra.mxu0 %v2901
    %2924 = vmatprep.subr.bf16.mxu0 0
    %2925 = vmatpush1.bf16.msra.mxu0 %v2902
    %2926 = vmatprep.subr.bf16.mxu0 0
    %2927 = vmatpush1.bf16.msra.mxu0 %v2903
    %2928 = vmatprep.subr.bf16.mxu0 0
    %2929 = vmatpush1.bf16.msra.mxu0 0
    %2930 = vmatprep.subr.bf16.mxu0 0
    %2931 = vmatpush1.bf16.msra.mxu0 0
    %2932 = vmatprep.subr.bf16.mxu0 0
    %2933 = vmatpush1.bf16.msra.mxu0 0
    %2934 = vmatprep.subr.bf16.mxu0 0
    %2935 = vmatpush1.bf16.msra.mxu0 0
    %2936 = vmatprep.subr.bf16.mxu0 0
    %2937 = vmatpush1.bf16.msra.mxu0 0
    %2938 = vmatprep.subr.bf16.mxu0 0
    %2939 = vmatpush1.bf16.msra.mxu0 0
    %2940 = vmatprep.subr.bf16.mxu0 0
    %2941 = vmatpush1.bf16.msra.mxu0 0
    %2942 = vmatprep.subr.bf16.mxu0 0
    %2943 = vmatpush1.bf16.msra.mxu0 0
    %2944 = vmatprep.mubr.bf16.mxu0 0
    %2945 = vmatmul.mubr.bf16.gmra.mrb[0].mxu0 %v2840
    %v2946 = vpop.f32.mrb[0].mxu0
    %v2947 = vadd.f32 %v2862, %v2946
    %v2948 = vpop.f32.mrb[0].mxu0
    %v2949 = vpop.f32.mrb[0].mxu0
    %v2950 = vpop.f32.mrb[0].mxu0
    %2951 = vdwg.mxu0
    %vm2952 = vcmask 58368
    %2953 = vst.msk [vmem:[#allocation28] sm:$0x3] %vm2952, %v2947
    // Predicated region
    $region200: #{_lambda_.1} parent=1 // pred_check
      _
    $region201: #{_lambda_.1} parent=1 // pred_check_branch
      %2955 = sbr.rel (0) target = $region203
    $region202: #{_lambda_.1} parent=1 // pred_region
      %s2957 = ssub.s32 32, 32
      %2958 = vsyncadd [#allocation6], %s2957
      %s2960 = sshll.u32 [#allocation28], 4
      %s2961 = int_to_ptr.vmem [resolvable:$true] %s2960
      %2963 = dma.vmem_to_hbm [thread:$0]  %s2961, 32, %s27, [#allocation6]
    $region203: #{_lambda_.1} parent=1 // pred_fallthru
      _
    // Predicated region
    $region204: #{_lambda_.1} parent=1 // pred_check
      _
    $region205: #{_lambda_.1} parent=1 // pred_check_branch
      %2965 = sbr.rel (0) target = $region207
    $region206: #{_lambda_.1} parent=1 // pred_region
      %2966 = dma.done [#allocation6], 32
    $region207: #{_lambda_.1} parent=1 // pred_fallthru
      _
    %2967 = vsyncpa [#allocation5], 1
    %2968 = vsyncpa [#allocation8], 1
    %2969 = vsyncpa [#allocation11], 1
    %2970 = vsyncpa [#allocation14], 1
    %2971 = vsyncpa [#allocation17], 1
    %2972 = vsyncpa [#allocation20], 1
    %2973 = vsyncpa [#allocation23], 1
    %2974 = vsyncpa [#allocation26], 1
    %2975 = vsyncpa [#allocation6], 1
  %2976 = vsyncmov [#allocation3]
  %s2977 = vpop.sfrf %2976
  %p2978 = scmp.eq.s32.totalorder %s2977, 0
  %p2979 = pneg %p2978
  %2981 = shalt.err (%p2979)

</llo_original>
